<compile_context>
chip_gen: v7x
topology: tpu7x:2x2x1
jax: 0.10.0
libtpu: 0.0.40
codegen_flags: <defaults>
</compile_context>

<pallas_src>
import jax
import jax.numpy as jnp
from jax.experimental import pallas as pl
from jax.experimental.pallas import tpu as pltpu

IMAGE_SIZE = 16          # stand-in for 224
PATCH = 8                # stand-in for 16
HIDDEN = 32              # stand-in for 768
HEADS = 4                # stand-in for 12
DH = HIDDEN // HEADS
MLP_DIM = 64             # stand-in for 3072
LAYERS = 2               # stand-in for 12
NUM_CLASSES = 128        # stand-in for 1000
DEC_HIDDEN = 256         # stand-in for 1024
NUM_INTERP = 1           # see note above
LN_EPS = 1e-6

GP = IMAGE_SIZE // PATCH
N_PATCHES = GP * GP
SEQ = N_PATCHES + 1                  # real tokens (cls + patches)
S_PAD = ((SEQ + 7) // 8) * 8         # tokens padded to a multiple of 8 sublanes
PATCH_DIM = 3 * PATCH * PATCH
OUT_DIM = 3 * IMAGE_SIZE * IMAGE_SIZE
DEC_TN = 256                         # decoder output-column tile (OUT_DIM % DEC_TN == 0)


# --------------------------- in-kernel helpers ------------------------------

def _layer_norm(x_f32, g, b):
    """LayerNorm with f32 statistics; g/b may be bf16 (promoted)."""
    mu = jnp.mean(x_f32, axis=-1, keepdims=True)
    xc = x_f32 - mu
    var = jnp.mean(xc * xc, axis=-1, keepdims=True)
    return xc * jax.lax.rsqrt(var + LN_EPS) * g + b


# ----------------------------- Pallas kernels -------------------------------

def _embed_kernel(patches_ref, cw_ref, cb_ref, cls_ref, pos_ref, o_ref):
    """conv_proj-as-linear + cls token + pos emb + sublane padding, one batch/step.

    The full (S_PAD, HIDDEN) block is assembled in registers and stored with a
    single unmasked full-block store (no masked row-sliced vst.msk stores).
    """
    tok = jnp.dot(patches_ref[0], cw_ref[...],
                  preferred_element_type=jnp.float32) + cb_ref[...]   # [NP, H] f32
    pos = pos_ref[...].astype(jnp.float32)                            # [SEQ, H]
    cls_row = cls_ref[...].astype(jnp.float32) + pos[0:1, :]          # [1, H]
    body = tok + pos[1:SEQ, :]                                        # [NP, H]
    pad = jnp.zeros((S_PAD - SEQ, HIDDEN), jnp.float32)
    full = jnp.concatenate([cls_row, body, pad], axis=0)              # [S_PAD, H]
    o_ref[...] = full[None].astype(o_ref.dtype)                       # one store


def _encoder_layer_kernel(h0_ref, ln1g_ref, ln1b_ref, qkvw_ref, qkvb_ref,
                          outw_ref, outb_ref, ln2g_ref, ln2b_ref,
                          m1w_ref, m1b_ref, m2w_ref, m2b_ref, o_ref):
    """One full pre-LN encoder layer per (batch, layer) grid cell.

    The per-batch activation block is resident in VMEM across the layer axis
    (output BlockSpec returns the same block for every layer step).
    """
    @pl.when(pl.program_id(1) == 0)
    def _():
        o_ref[...] = h0_ref[...]            # seed the resident activation block

    x = o_ref[0].astype(jnp.float32)        # [S_PAD, H] f32 working copy

    # ---- multi-head self-attention block (pre-LN, residual fused) ----
    y = _layer_norm(x, ln1g_ref[0], ln1b_ref[0]).astype(jnp.bfloat16)
    qkv = (jnp.dot(y, qkvw_ref[0], preferred_element_type=jnp.float32)
           + qkvb_ref[0]).astype(jnp.bfloat16)                        # [S_PAD, 3H]

    key_pos = jax.lax.broadcasted_iota(jnp.int32, (1, S_PAD), 1)
    bias = jnp.where(key_pos < SEQ, 0.0, -1e30).astype(jnp.float32)   # mask pad keys
    scale = 1.0 / float(DH) ** 0.5
    out_w = outw_ref[0]                                               # [H, H] bf16

    acc = jnp.zeros((S_PAD, HIDDEN), jnp.float32)
    # TODO(synk): at real ViT-B scale switch to lax.fori_loop over heads with a
    #             lane-aligned (head-major) qkv layout; with HEADS=4 and 3H=96 < 128
    #             lanes the static unroll + lane slices are cheap here.
    for hh in range(HEADS):
        c0 = hh * DH
        qh = qkv[:, c0:c0 + DH]
        kh = qkv[:, HIDDEN + c0:HIDDEN + c0 + DH]
        vh = qkv[:, 2 * HIDDEN + c0:2 * HIDDEN + c0 + DH]
        # q @ k^T without materializing the transpose.
        s = jax.lax.dot_general(
            qh, kh, (((1,), (1,)), ((), ())),
            preferred_element_type=jnp.float32) * scale               # [S_PAD, S_PAD]
        s = s + bias
        m = jnp.max(s, axis=-1, keepdims=True)
        p = jnp.exp(s - m)
        p = p * pl.reciprocal(jnp.sum(p, axis=-1, keepdims=True), approx=True)
        oh = jnp.dot(p.astype(jnp.bfloat16), vh,
                     preferred_element_type=jnp.float32)              # [S_PAD, DH]
        # Head-concat + output projection folded into per-head partial projections.
        acc = acc + jnp.dot(oh.astype(jnp.bfloat16), out_w[c0:c0 + DH, :],
                            preferred_element_type=jnp.float32)
    x = x + acc + outb_ref[0]                                         # fused residual

    # ---- MLP block (pre-LN, residual fused) ----
    y = _layer_norm(x, ln2g_ref[0], ln2b_ref[0]).astype(jnp.bfloat16)
    y = jnp.dot(y, m1w_ref[0], preferred_element_type=jnp.float32) + m1b_ref[0]
    y = jax.nn.gelu(y, approximate=True).astype(jnp.bfloat16)         # tanh GELU (EUP)
    y = jnp.dot(y, m2w_ref[0], preferred_element_type=jnp.float32) + m2b_ref[0]
    o_ref[...] = (x + y)[None].astype(o_ref.dtype)
    # NOTE: padding rows (tokens SEQ..S_PAD-1) accumulate bias garbage across
    # layers; harmless — only the cls row is read downstream.


def _head_decoder_kernel(h_ref, lng_ref, lnb_ref, hw_ref, hb_ref,
                         d1w_ref, d1b_ref, d2w_ref, d2b_ref, o_ref, d_sc):
    """Final LN + cls slice + classifier head + decoder, streaming dec2_w N-tiles.

    LN/cls/head/dec1 run once (pl.when on the first column tile) into a resident
    scratch; every grid step computes one lane-dense (B, DEC_TN) output tile.
    """
    @pl.when(pl.program_id(0) == 0)
    def _():
        cls = h_ref[...][:, 0, :].astype(jnp.float32)                 # [B, H] sublane slice
        x = _layer_norm(cls, lng_ref[...], lnb_ref[...]).astype(jnp.bfloat16)
        enc = jnp.dot(x, hw_ref[...], preferred_element_type=jnp.float32) + hb_ref[...]
        d = jnp.dot(enc.astype(jnp.bfloat16), d1w_ref[...],
                    preferred_element_type=jnp.float32) + d1b_ref[...]
        d_sc[...] = jnp.maximum(d, 0.0)                               # [B, DEC_HIDDEN] f32

    d = d_sc[...].astype(jnp.bfloat16)
    o = jnp.dot(d, d2w_ref[...], preferred_element_type=jnp.float32) + d2b_ref[...]
    o_ref[...] = jnp.tanh(o).astype(o_ref.dtype)                      # [B, DEC_TN]


# ------------------------------ parameters ----------------------------------

def init_params(key):
    keys = jax.random.split(key, 10)
    it = iter(keys)

    def nrm(shape, scale=0.02):
        return (scale * jax.random.normal(next(it), shape, jnp.float32)
                ).astype(jnp.bfloat16)

    def zeros(shape):
        return jnp.zeros(shape, jnp.bfloat16)

    def ones(shape):
        return jnp.ones(shape, jnp.bfloat16)

    return {
        "conv_w": nrm((PATCH_DIM, HIDDEN)),
        "conv_b": zeros((1, HIDDEN)),
        "cls_token": nrm((1, HIDDEN)),
        "pos_emb": nrm((SEQ, HIDDEN)),
        # per-layer weights stacked along a leading LAYERS axis (selected by the
        # encoder kernel's index_map)
        "ln1_g": ones((LAYERS, 1, HIDDEN)),
        "ln1_b": zeros((LAYERS, 1, HIDDEN)),
        "qkv_w": nrm((LAYERS, HIDDEN, 3 * HIDDEN)),
        "qkv_b": zeros((LAYERS, 1, 3 * HIDDEN)),
        "out_w": nrm((LAYERS, HIDDEN, HIDDEN)),
        "out_b": zeros((LAYERS, 1, HIDDEN)),
        "ln2_g": ones((LAYERS, 1, HIDDEN)),
        "ln2_b": zeros((LAYERS, 1, HIDDEN)),
        "mlp1_w": nrm((LAYERS, HIDDEN, MLP_DIM)),
        "mlp1_b": zeros((LAYERS, 1, MLP_DIM)),
        "mlp2_w": nrm((LAYERS, MLP_DIM, HIDDEN)),
        "mlp2_b": zeros((LAYERS, 1, HIDDEN)),
        "ln_g": ones((1, HIDDEN)),
        "ln_b": zeros((1, HIDDEN)),
        "head_w": nrm((HIDDEN, NUM_CLASSES)),
        "head_b": zeros((1, NUM_CLASSES)),
        "dec1_w": nrm((NUM_CLASSES, DEC_HIDDEN)),
        "dec1_b": zeros((1, DEC_HIDDEN)),
        "dec2_w": nrm((DEC_HIDDEN, OUT_DIM)),
        "dec2_b": zeros((1, OUT_DIM)),
    }


# -------------------------------- forward -----------------------------------

def vision_transformer_forward(params, x):
    B = x.shape[0]

    # conv_proj(kernel=stride=patch) == per-patch linear on (C, ph, pw) pixels.
    # TODO(synk): for real 224x224 inputs fold this reshape/transpose into the embed
    #             kernel's BlockSpec index_map; at this stand-in size it is negligible.
    patches = x.reshape(B, 3, GP, PATCH, GP, PATCH).transpose(0, 2, 4, 1, 3, 5)
    patches = patches.reshape(B, N_PATCHES, PATCH_DIM).astype(jnp.bfloat16)

    # --- kernel 1: patch embedding + cls + pos emb + sublane padding (grid over B) ---
    h0 = pl.pallas_call(
        _embed_kernel,
        out_shape=jax.ShapeDtypeStruct((B, S_PAD, HIDDEN), jnp.bfloat16),
        grid=(B,),
        in_specs=[
            pl.BlockSpec((1, N_PATCHES, PATCH_DIM), lambda b: (b, 0, 0)),
            pl.BlockSpec((PATCH_DIM, HIDDEN), lambda b: (0, 0)),
            pl.BlockSpec((1, HIDDEN), lambda b: (0, 0)),
            pl.BlockSpec((1, HIDDEN), lambda b: (0, 0)),
            pl.BlockSpec((SEQ, HIDDEN), lambda b: (0, 0)),
        ],
        out_specs=pl.BlockSpec((1, S_PAD, HIDDEN), lambda b: (b, 0, 0)),
        compiler_params=pltpu.CompilerParams(dimension_semantics=("parallel",)),
    )(patches, params["conv_w"], params["conv_b"],
      params["cls_token"], params["pos_emb"])

    # --- kernel 2: full encoder stack; grid=(batch, layers), activations resident ---
    def wspec(shape):
        return pl.BlockSpec((1,) + shape, lambda b, l: (l, 0, 0))

    # TODO(synk): at real ViT-B scale, additionally tile mlp1_w/mlp2_w along MLP_DIM
    #             (extra inner grid axis) so double-buffered weights fit v7x's 64 MiB.
    h = pl.pallas_call(
        _encoder_layer_kernel,
        out_shape=jax.ShapeDtypeStruct((B, S_PAD, HIDDEN), jnp.bfloat16),
        grid=(B, LAYERS),
        in_specs=[
            pl.BlockSpec((1, S_PAD, HIDDEN), lambda b, l: (b, 0, 0)),
            wspec((1, HIDDEN)), wspec((1, HIDDEN)),
            wspec((HIDDEN, 3 * HIDDEN)), wspec((1, 3 * HIDDEN)),
            wspec((HIDDEN, HIDDEN)), wspec((1, HIDDEN)),
            wspec((1, HIDDEN)), wspec((1, HIDDEN)),
            wspec((HIDDEN, MLP_DIM)), wspec((1, MLP_DIM)),
            wspec((MLP_DIM, HIDDEN)), wspec((1, HIDDEN)),
        ],
        out_specs=pl.BlockSpec((1, S_PAD, HIDDEN), lambda b, l: (b, 0, 0)),
        compiler_params=pltpu.CompilerParams(
            dimension_semantics=("parallel", "arbitrary"),  # batch || , layers seq
            vmem_limit_bytes=32 * 1024 * 1024),
    )(h0,
      params["ln1_g"], params["ln1_b"], params["qkv_w"], params["qkv_b"],
      params["out_w"], params["out_b"], params["ln2_g"], params["ln2_b"],
      params["mlp1_w"], params["mlp1_b"], params["mlp2_w"], params["mlp2_b"])

    # --- kernel 3: final LN + cls slice + head + decoder, streamed over OUT_DIM ---
    dec = pl.pallas_call(
        _head_decoder_kernel,
        out_shape=jax.ShapeDtypeStruct((B, OUT_DIM), jnp.float32),
        grid=(OUT_DIM // DEC_TN,),
        in_specs=[
            pl.BlockSpec((B, S_PAD, HIDDEN), lambda j: (0, 0, 0)),
            pl.BlockSpec((1, HIDDEN), lambda j: (0, 0)),
            pl.BlockSpec((1, HIDDEN), lambda j: (0, 0)),
            pl.BlockSpec((HIDDEN, NUM_CLASSES), lambda j: (0, 0)),
            pl.BlockSpec((1, NUM_CLASSES), lambda j: (0, 0)),
            pl.BlockSpec((NUM_CLASSES, DEC_HIDDEN), lambda j: (0, 0)),
            pl.BlockSpec((1, DEC_HIDDEN), lambda j: (0, 0)),
            pl.BlockSpec((DEC_HIDDEN, DEC_TN), lambda j: (0, j)),   # streamed dec2_w
            pl.BlockSpec((1, DEC_TN), lambda j: (0, j)),
        ],
        out_specs=pl.BlockSpec((B, DEC_TN), lambda j: (0, j)),
        scratch_shapes=[pltpu.VMEM((B, DEC_HIDDEN), jnp.float32)],
        compiler_params=pltpu.CompilerParams(dimension_semantics=("arbitrary",)),
    )(h, params["ln_g"], params["ln_b"], params["head_w"], params["head_b"],
      params["dec1_w"], params["dec1_b"], params["dec2_w"], params["dec2_b"])

    return dec.reshape(B * NUM_INTERP, 3, IMAGE_SIZE, IMAGE_SIZE)


# ---------------------------------- main -------------------------------------

if __name__ == "__main__":
    key = jax.random.PRNGKey(0)
    pkey, xkey = jax.random.split(key)
    params = init_params(pkey)

    batch = 2
    x = jax.random.normal(xkey, (batch, 3, IMAGE_SIZE, IMAGE_SIZE), jnp.float32)

    fwd = jax.jit(vision_transformer_forward)
    out = fwd(params, x)
    jax.block_until_ready(out)

    assert out.shape == (batch * NUM_INTERP, 3, IMAGE_SIZE, IMAGE_SIZE), out.shape
    assert bool(jnp.all(jnp.isfinite(out)))
    assert bool(jnp.all(jnp.abs(out) <= 1.0 + 1e-6))  # tanh range
    print("KERNEL_OK")
</pallas_src>

<mosaic_0001>
module attributes {stable_mosaic.version = 11 : i64} {
  func.func @_embed_kernel(%arg0: i32, %arg1: memref<1x4x192xbf16, #tpu.memory_space<vmem>>, %arg2: memref<192x32xbf16, #tpu.memory_space<vmem>>, %arg3: memref<1x32xbf16, #tpu.memory_space<vmem>>, %arg4: memref<1x32xbf16, #tpu.memory_space<vmem>>, %arg5: memref<5x32xbf16, #tpu.memory_space<vmem>>, %arg6: memref<1x8x32xbf16, #tpu.memory_space<vmem>>) attributes {dimension_semantics = [#tpu.dimension_semantics<parallel>], iteration_bounds = array<i64: 2>, scalar_prefetch = 0 : i64, scratch_operands = 0 : i64, tpu.core_type = #tpu.core_type<tc>, window_params = [{transform_indices = @transform_0, window_bounds = array<i64: 1, 4, 192>}, {pipeline_mode = #tpu.pipeline_mode<synchronous>, transform_indices = @transform_1, window_bounds = array<i64: 192, 32>}, {pipeline_mode = #tpu.pipeline_mode<synchronous>, transform_indices = @transform_2, window_bounds = array<i64: 1, 32>}, {pipeline_mode = #tpu.pipeline_mode<synchronous>, transform_indices = @transform_3, window_bounds = array<i64: 1, 32>}, {pipeline_mode = #tpu.pipeline_mode<synchronous>, transform_indices = @transform_4, window_bounds = array<i64: 5, 32>}, {transform_indices = @transform_5, window_bounds = array<i64: 1, 8, 32>}]} {
    %c0 = arith.constant 0 : index
    %c0_0 = arith.constant 0 : index
    %c0_1 = arith.constant 0 : index
    %0 = vector.load %arg1[%c0, %c0_0, %c0_1] : memref<1x4x192xbf16, #tpu.memory_space<vmem>>, vector<1x4x192xbf16>
    %1 = vector.shape_cast %0 : vector<1x4x192xbf16> to vector<4x192xbf16>
    %c0_2 = arith.constant 0 : index
    %c0_3 = arith.constant 0 : index
    %2 = vector.load %arg2[%c0_2, %c0_3] : memref<192x32xbf16, #tpu.memory_space<vmem>>, vector<192x32xbf16>
    %cst = arith.constant dense<0.000000e+00> : vector<4x32xf32>
    %3 = tpu.matmul %1, %2, %cst {dimension_numbers = #tpu.dot_dimension_numbers<[1], [0], [0], [1], [0, 0, 1, 1], [], []>} : vector<4x192xbf16>, vector<192x32xbf16>, vector<4x32xf32> -> vector<4x32xf32>
    %c0_4 = arith.constant 0 : index
    %c0_5 = arith.constant 0 : index
    %4 = vector.load %arg3[%c0_4, %c0_5] : memref<1x32xbf16, #tpu.memory_space<vmem>>, vector<1x32xbf16>
    %5 = arith.extf %4 : vector<1x32xbf16> to vector<1x32xf32>
    %6 = vector.broadcast %5 : vector<1x32xf32> to vector<4x32xf32>
    %7 = arith.addf %3, %6 : vector<4x32xf32>
    %c0_6 = arith.constant 0 : index
    %c0_7 = arith.constant 0 : index
    %8 = vector.load %arg5[%c0_6, %c0_7] : memref<5x32xbf16, #tpu.memory_space<vmem>>, vector<5x32xbf16>
    %9 = arith.extf %8 : vector<5x32xbf16> to vector<5x32xf32>
    %c0_8 = arith.constant 0 : index
    %c0_9 = arith.constant 0 : index
    %10 = vector.load %arg4[%c0_8, %c0_9] : memref<1x32xbf16, #tpu.memory_space<vmem>>, vector<1x32xbf16>
    %11 = arith.extf %10 : vector<1x32xbf16> to vector<1x32xf32>
    %12 = vector.extract_strided_slice %9 {offsets = [0, 0], sizes = [1, 32], strides = [1, 1]} : vector<5x32xf32> to vector<1x32xf32>
    %13 = arith.addf %11, %12 : vector<1x32xf32>
    %14 = vector.extract_strided_slice %9 {offsets = [1, 0], sizes = [4, 32], strides = [1, 1]} : vector<5x32xf32> to vector<4x32xf32>
    %15 = arith.addf %7, %14 : vector<4x32xf32>
    %cst_10 = arith.constant 0.000000e+00 : f32
    %16 = vector.broadcast %cst_10 : f32 to vector<3x32xf32>
    %17 = tpu.concatenate %13, %15, %16 in 0 : vector<1x32xf32>, vector<4x32xf32>, vector<3x32xf32> -> vector<8x32xf32>
    %18 = vector.shape_cast %17 : vector<8x32xf32> to vector<1x8x32xf32>
    %19 = arith.truncf %18 : vector<1x8x32xf32> to vector<1x8x32xbf16>
    %c0_11 = arith.constant 0 : index
    %c0_12 = arith.constant 0 : index
    %c0_13 = arith.constant 0 : index
    %20 = vector.load %arg6[%c0_11, %c0_12, %c0_13] : memref<1x8x32xbf16, #tpu.memory_space<vmem>>, vector<1x8x32xbf16>
    tpu.vector_store %arg6[%c0_11, %c0_12, %c0_13], %19 {strides = array<i32>} : memref<1x8x32xbf16, #tpu.memory_space<vmem>>, vector<1x8x32xbf16>,
    return
  }
  func.func @transform_0(%arg0: i32) -> (i32, i32, i32) {
    %c0_i32 = arith.constant 0 : i32
    %c0_i32_0 = arith.constant 0 : i32
    %c0_i32_1 = arith.constant 0 : i32
    return %arg0, %c0_i32, %c0_i32_0 : i32, i32, i32
  }
  func.func @transform_1(%arg0: i32) -> (i32, i32) {
    %c0_i32 = arith.constant 0 : i32
    %c0_i32_0 = arith.constant 0 : i32
    %c0_i32_1 = arith.constant 0 : i32
    return %c0_i32, %c0_i32_0 : i32, i32
  }
  func.func @transform_2(%arg0: i32) -> (i32, i32) {
    %c0_i32 = arith.constant 0 : i32
    %c0_i32_0 = arith.constant 0 : i32
    %c0_i32_1 = arith.constant 0 : i32
    return %c0_i32, %c0_i32_0 : i32, i32
  }
  func.func @transform_3(%arg0: i32) -> (i32, i32) {
    %c0_i32 = arith.constant 0 : i32
    %c0_i32_0 = arith.constant 0 : i32
    %c0_i32_1 = arith.constant 0 : i32
    return %c0_i32, %c0_i32_0 : i32, i32
  }
  func.func @transform_4(%arg0: i32) -> (i32, i32) {
    %c0_i32 = arith.constant 0 : i32
    %c0_i32_0 = arith.constant 0 : i32
    %c0_i32_1 = arith.constant 0 : i32
    return %c0_i32, %c0_i32_0 : i32, i32
  }
  func.func @transform_5(%arg0: i32) -> (i32, i32, i32) {
    %c0_i32 = arith.constant 0 : i32
    %c0_i32_0 = arith.constant 0 : i32
    %c0_i32_1 = arith.constant 0 : i32
    return %arg0, %c0_i32, %c0_i32_0 : i32, i32, i32
  }
}

module attributes {stable_mosaic.version = 11 : i64} {
  func.func @_head_decoder_kernel(%arg0: i32, %arg1: memref<2x8x32xbf16, #tpu.memory_space<vmem>>, %arg2: memref<1x32xbf16, #tpu.memory_space<vmem>>, %arg3: memref<1x32xbf16, #tpu.memory_space<vmem>>, %arg4: memref<32x128xbf16, #tpu.memory_space<vmem>>, %arg5: memref<1x128xbf16, #tpu.memory_space<vmem>>, %arg6: memref<128x256xbf16, #tpu.memory_space<vmem>>, %arg7: memref<1x256xbf16, #tpu.memory_space<vmem>>, %arg8: memref<256x256xbf16, #tpu.memory_space<vmem>>, %arg9: memref<1x256xbf16, #tpu.memory_space<vmem>>, %arg10: memref<2x256xf32, #tpu.memory_space<vmem>>, %arg11: memref<2x256xf32, #tpu.memory_space<vmem>>) attributes {dimension_semantics = [#tpu.dimension_semantics<arbitrary>], iteration_bounds = array<i64: 3>, scalar_prefetch = 0 : i64, scratch_operands = 1 : i64, tpu.core_type = #tpu.core_type<tc>, window_params = [{pipeline_mode = #tpu.pipeline_mode<synchronous>, transform_indices = @transform_0, window_bounds = array<i64: 2, 8, 32>}, {pipeline_mode = #tpu.pipeline_mode<synchronous>, transform_indices = @transform_1, window_bounds = array<i64: 1, 32>}, {pipeline_mode = #tpu.pipeline_mode<synchronous>, transform_indices = @transform_2, window_bounds = array<i64: 1, 32>}, {pipeline_mode = #tpu.pipeline_mode<synchronous>, transform_indices = @transform_3, window_bounds = array<i64: 32, 128>}, {pipeline_mode = #tpu.pipeline_mode<synchronous>, transform_indices = @transform_4, window_bounds = array<i64: 1, 128>}, {pipeline_mode = #tpu.pipeline_mode<synchronous>, transform_indices = @transform_5, window_bounds = array<i64: 128, 256>}, {pipeline_mode = #tpu.pipeline_mode<synchronous>, transform_indices = @transform_6, window_bounds = array<i64: 1, 256>}, {transform_indices = @transform_7, window_bounds = array<i64: 256, 256>}, {transform_indices = @transform_8, window_bounds = array<i64: 1, 256>}, {transform_indices = @transform_9, window_bounds = array<i64: 2, 256>}]} {
    %c0_i32 = arith.constant 0 : i32
    %0 = arith.cmpi eq, %arg0, %c0_i32 : i32
    %1 = arith.extui %0 : i1 to i32
    %c0_i32_0 = arith.constant 0 : i32
    %2 = arith.cmpi ne, %1, %c0_i32_0 : i32
    scf.if %2 {
      %c0_8 = arith.constant 0 : index
      %c0_9 = arith.constant 0 : index
      %c0_10 = arith.constant 0 : index
      %13 = vector.load %arg1[%c0_8, %c0_9, %c0_10] : memref<2x8x32xbf16, #tpu.memory_space<vmem>>, vector<2x8x32xbf16>
      %14 = vector.extract_strided_slice %13 {offsets = [0, 0, 0], sizes = [2, 1, 32], strides = [1, 1, 1]} : vector<2x8x32xbf16> to vector<2x1x32xbf16>
      %15 = vector.shape_cast %14 : vector<2x1x32xbf16> to vector<2x32xbf16>
      %16 = arith.extf %15 : vector<2x32xbf16> to vector<2x32xf32>
      %c0_11 = arith.constant 0 : index
      %c0_12 = arith.constant 0 : index
      %17 = vector.load %arg2[%c0_11, %c0_12] : memref<1x32xbf16, #tpu.memory_space<vmem>>, vector<1x32xbf16>
      %c0_13 = arith.constant 0 : index
      %c0_14 = arith.constant 0 : index
      %18 = vector.load %arg3[%c0_13, %c0_14] : memref<1x32xbf16, #tpu.memory_space<vmem>>, vector<1x32xbf16>
      %cst_15 = arith.constant dense<0.000000e+00> : vector<2xf32>
      %19 = vector.multi_reduction <add>, %16, %cst_15 [1] : vector<2x32xf32> to vector<2xf32>
      %20 = vector.shape_cast %19 : vector<2xf32> to vector<2x1xf32>
      %cst_16 = arith.constant 3.200000e+01 : f32
      %21 = vector.broadcast %cst_16 : f32 to vector<2x1xf32>
      %22 = arith.divf %20, %21 : vector<2x1xf32>
      %23 = vector.broadcast %22 : vector<2x1xf32> to vector<2x32xf32>
      %24 = arith.subf %16, %23 : vector<2x32xf32>
      %25 = arith.mulf %24, %24 : vector<2x32xf32>
      %cst_17 = arith.constant dense<0.000000e+00> : vector<2xf32>
      %26 = vector.multi_reduction <add>, %25, %cst_17 [1] : vector<2x32xf32> to vector<2xf32>
      %27 = vector.shape_cast %26 : vector<2xf32> to vector<2x1xf32>
      %cst_18 = arith.constant 3.200000e+01 : f32
      %28 = vector.broadcast %cst_18 : f32 to vector<2x1xf32>
      %29 = arith.divf %27, %28 : vector<2x1xf32>
      %cst_19 = arith.constant 9.99999997E-7 : f32
      %30 = vector.broadcast %cst_19 : f32 to vector<2x1xf32>
      %31 = arith.addf %29, %30 : vector<2x1xf32>
      %32 = math.rsqrt %31 : vector<2x1xf32>
      %33 = vector.broadcast %32 : vector<2x1xf32> to vector<2x32xf32>
      %34 = arith.mulf %24, %33 : vector<2x32xf32>
      %35 = arith.extf %17 : vector<1x32xbf16> to vector<1x32xf32>
      %36 = vector.broadcast %35 : vector<1x32xf32> to vector<2x32xf32>
      %37 = arith.mulf %34, %36 : vector<2x32xf32>
      %38 = arith.extf %18 : vector<1x32xbf16> to vector<1x32xf32>
      %39 = vector.broadcast %38 : vector<1x32xf32> to vector<2x32xf32>
      %40 = arith.addf %37, %39 : vector<2x32xf32>
      %41 = arith.truncf %40 : vector<2x32xf32> to vector<2x32xbf16>
      %c0_20 = arith.constant 0 : index
      %c0_21 = arith.constant 0 : index
      %42 = vector.load %arg4[%c0_20, %c0_21] : memref<32x128xbf16, #tpu.memory_space<vmem>>, vector<32x128xbf16>
      %cst_22 = arith.constant dense<0.000000e+00> : vector<2x128xf32>
      %43 = tpu.matmul %41, %42, %cst_22 {dimension_numbers = #tpu.dot_dimension_numbers<[1], [0], [0], [1], [0, 0, 1, 1], [], []>} : vector<2x32xbf16>, vector<32x128xbf16>, vector<2x128xf32> -> vector<2x128xf32>
      %c0_23 = arith.constant 0 : index
      %c0_24 = arith.constant 0 : index
      %44 = vector.load %arg5[%c0_23, %c0_24] : memref<1x128xbf16, #tpu.memory_space<vmem>>, vector<1x128xbf16>
      %45 = arith.extf %44 : vector<1x128xbf16> to vector<1x128xf32>
      %46 = vector.broadcast %45 : vector<1x128xf32> to vector<2x128xf32>
      %47 = arith.addf %43, %46 : vector<2x128xf32>
      %48 = arith.truncf %47 : vector<2x128xf32> to vector<2x128xbf16>
      %c0_25 = arith.constant 0 : index
      %c0_26 = arith.constant 0 : index
      %49 = vector.load %arg6[%c0_25, %c0_26] : memref<128x256xbf16, #tpu.memory_space<vmem>>, vector<128x256xbf16>
      %cst_27 = arith.constant dense<0.000000e+00> : vector<2x256xf32>
      %50 = tpu.matmul %48, %49, %cst_27 {dimension_numbers = #tpu.dot_dimension_numbers<[1], [0], [0], [1], [0, 0, 1, 1], [], []>} : vector<2x128xbf16>, vector<128x256xbf16>, vector<2x256xf32> -> vector<2x256xf32>
      %c0_28 = arith.constant 0 : index
      %c0_29 = arith.constant 0 : index
      %51 = vector.load %arg7[%c0_28, %c0_29] : memref<1x256xbf16, #tpu.memory_space<vmem>>, vector<1x256xbf16>
      %52 = arith.extf %51 : vector<1x256xbf16> to vector<1x256xf32>
      %53 = vector.broadcast %52 : vector<1x256xf32> to vector<2x256xf32>
      %54 = arith.addf %50, %53 : vector<2x256xf32>
      %cst_30 = arith.constant 0.000000e+00 : f32
      %55 = vector.broadcast %cst_30 : f32 to vector<2x256xf32>
      %56 = arith.maximumf %54, %55 : vector<2x256xf32>
      %c0_31 = arith.constant 0 : index
      %c0_32 = arith.constant 0 : index
      %57 = vector.load %arg11[%c0_31, %c0_32] : memref<2x256xf32, #tpu.memory_space<vmem>>, vector<2x256xf32>
      tpu.vector_store %arg11[%c0_31, %c0_32], %56 {strides = array<i32>} : memref<2x256xf32, #tpu.memory_space<vmem>>, vector<2x256xf32>,
    } else {
    }
    %c0 = arith.constant 0 : index
    %c0_1 = arith.constant 0 : index
    %3 = vector.load %arg11[%c0, %c0_1] : memref<2x256xf32, #tpu.memory_space<vmem>>, vector<2x256xf32>
    %4 = arith.truncf %3 : vector<2x256xf32> to vector<2x256xbf16>
    %c0_2 = arith.constant 0 : index
    %c0_3 = arith.constant 0 : index
    %5 = vector.load %arg8[%c0_2, %c0_3] : memref<256x256xbf16, #tpu.memory_space<vmem>>, vector<256x256xbf16>
    %cst = arith.constant dense<0.000000e+00> : vector<2x256xf32>
    %6 = tpu.matmul %4, %5, %cst {dimension_numbers = #tpu.dot_dimension_numbers<[1], [0], [0], [1], [0, 0, 1, 1], [], []>} : vector<2x256xbf16>, vector<256x256xbf16>, vector<2x256xf32> -> vector<2x256xf32>
    %c0_4 = arith.constant 0 : index
    %c0_5 = arith.constant 0 : index
    %7 = vector.load %arg9[%c0_4, %c0_5] : memref<1x256xbf16, #tpu.memory_space<vmem>>, vector<1x256xbf16>
    %8 = arith.extf %7 : vector<1x256xbf16> to vector<1x256xf32>
    %9 = vector.broadcast %8 : vector<1x256xf32> to vector<2x256xf32>
    %10 = arith.addf %6, %9 : vector<2x256xf32>
    %11 = math.tanh %10 : vector<2x256xf32>
    %c0_6 = arith.constant 0 : index
    %c0_7 = arith.constant 0 : index
    %12 = vector.load %arg10[%c0_6, %c0_7] : memref<2x256xf32, #tpu.memory_space<vmem>>, vector<2x256xf32>
    tpu.vector_store %arg10[%c0_6, %c0_7], %11 {strides = array<i32>} : memref<2x256xf32, #tpu.memory_space<vmem>>, vector<2x256xf32>,
    return
  }
  func.func @transform_0(%arg0: i32) -> (i32, i32, i32) {
    %c0_i32 = arith.constant 0 : i32
    %c0_i32_0 = arith.constant 0 : i32
    %c0_i32_1 = arith.constant 0 : i32
    %c0_i32_2 = arith.constant 0 : i32
    return %c0_i32, %c0_i32_0, %c0_i32_1 : i32, i32, i32
  }
  func.func @transform_1(%arg0: i32) -> (i32, i32) {
    %c0_i32 = arith.constant 0 : i32
    %c0_i32_0 = arith.constant 0 : i32
    %c0_i32_1 = arith.constant 0 : i32
    return %c0_i32, %c0_i32_0 : i32, i32
  }
  func.func @transform_2(%arg0: i32) -> (i32, i32) {
    %c0_i32 = arith.constant 0 : i32
    %c0_i32_0 = arith.constant 0 : i32
    %c0_i32_1 = arith.constant 0 : i32
    return %c0_i32, %c0_i32_0 : i32, i32
  }
  func.func @transform_3(%arg0: i32) -> (i32, i32) {
    %c0_i32 = arith.constant 0 : i32
    %c0_i32_0 = arith.constant 0 : i32
    %c0_i32_1 = arith.constant 0 : i32
    return %c0_i32, %c0_i32_0 : i32, i32
  }
  func.func @transform_4(%arg0: i32) -> (i32, i32) {
    %c0_i32 = arith.constant 0 : i32
    %c0_i32_0 = arith.constant 0 : i32
    %c0_i32_1 = arith.constant 0 : i32
    return %c0_i32, %c0_i32_0 : i32, i32
  }
  func.func @transform_5(%arg0: i32) -> (i32, i32) {
    %c0_i32 = arith.constant 0 : i32
    %c0_i32_0 = arith.constant 0 : i32
    %c0_i32_1 = arith.constant 0 : i32
    return %c0_i32, %c0_i32_0 : i32, i32
  }
  func.func @transform_6(%arg0: i32) -> (i32, i32) {
    %c0_i32 = arith.constant 0 : i32
    %c0_i32_0 = arith.constant 0 : i32
    %c0_i32_1 = arith.constant 0 : i32
    return %c0_i32, %c0_i32_0 : i32, i32
  }
  func.func @transform_7(%arg0: i32) -> (i32, i32) {
    %c0_i32 = arith.constant 0 : i32
    %c0_i32_0 = arith.constant 0 : i32
    return %c0_i32, %arg0 : i32, i32
  }
  func.func @transform_8(%arg0: i32) -> (i32, i32) {
    %c0_i32 = arith.constant 0 : i32
    %c0_i32_0 = arith.constant 0 : i32
    return %c0_i32, %arg0 : i32, i32
  }
  func.func @transform_9(%arg0: i32) -> (i32, i32) {
    %c0_i32 = arith.constant 0 : i32
    %c0_i32_0 = arith.constant 0 : i32
    return %c0_i32, %arg0 : i32, i32
  }
}

module attributes {stable_mosaic.version = 11 : i64} {
  func.func @_encoder_layer_kernel(%arg0: i32, %arg1: i32, %arg2: memref<1x8x32xbf16, #tpu.memory_space<vmem>>, %arg3: memref<1x1x32xbf16, #tpu.memory_space<vmem>>, %arg4: memref<1x1x32xbf16, #tpu.memory_space<vmem>>, %arg5: memref<1x32x96xbf16, #tpu.memory_space<vmem>>, %arg6: memref<1x1x96xbf16, #tpu.memory_space<vmem>>, %arg7: memref<1x32x32xbf16, #tpu.memory_space<vmem>>, %arg8: memref<1x1x32xbf16, #tpu.memory_space<vmem>>, %arg9: memref<1x1x32xbf16, #tpu.memory_space<vmem>>, %arg10: memref<1x1x32xbf16, #tpu.memory_space<vmem>>, %arg11: memref<1x32x64xbf16, #tpu.memory_space<vmem>>, %arg12: memref<1x1x64xbf16, #tpu.memory_space<vmem>>, %arg13: memref<1x64x32xbf16, #tpu.memory_space<vmem>>, %arg14: memref<1x1x32xbf16, #tpu.memory_space<vmem>>, %arg15: memref<1x8x32xbf16, #tpu.memory_space<vmem>>) attributes {dimension_semantics = [#tpu.dimension_semantics<parallel>, #tpu.dimension_semantics<arbitrary>], iteration_bounds = array<i64: 2, 2>, scalar_prefetch = 0 : i64, scratch_operands = 0 : i64, tpu.core_type = #tpu.core_type<tc>, window_params = [{transform_indices = @transform_0, window_bounds = array<i64: 1, 8, 32>}, {transform_indices = @transform_1, window_bounds = array<i64: 1, 1, 32>}, {transform_indices = @transform_2, window_bounds = array<i64: 1, 1, 32>}, {transform_indices = @transform_3, window_bounds = array<i64: 1, 32, 96>}, {transform_indices = @transform_4, window_bounds = array<i64: 1, 1, 96>}, {transform_indices = @transform_5, window_bounds = array<i64: 1, 32, 32>}, {transform_indices = @transform_6, window_bounds = array<i64: 1, 1, 32>}, {transform_indices = @transform_7, window_bounds = array<i64: 1, 1, 32>}, {transform_indices = @transform_8, window_bounds = array<i64: 1, 1, 32>}, {transform_indices = @transform_9, window_bounds = array<i64: 1, 32, 64>}, {transform_indices = @transform_10, window_bounds = array<i64: 1, 1, 64>}, {transform_indices = @transform_11, window_bounds = array<i64: 1, 64, 32>}, {transform_indices = @transform_12, window_bounds = array<i64: 1, 1, 32>}, {transform_indices = @transform_13, window_bounds = array<i64: 1, 8, 32>}]} {
    %c0_i32 = arith.constant 0 : i32
    %0 = arith.cmpi eq, %arg1, %c0_i32 : i32
    %1 = arith.extui %0 : i1 to i32
    %c0_i32_0 = arith.constant 0 : i32
    %2 = arith.cmpi ne, %1, %c0_i32_0 : i32
    scf.if %2 {
      %c0_85 = arith.constant 0 : index
      %c0_86 = arith.constant 0 : index
      %c0_87 = arith.constant 0 : index
      %214 = vector.load %arg2[%c0_85, %c0_86, %c0_87] : memref<1x8x32xbf16, #tpu.memory_space<vmem>>, vector<1x8x32xbf16>
      %c0_88 = arith.constant 0 : index
      %c0_89 = arith.constant 0 : index
      %c0_90 = arith.constant 0 : index
      %215 = vector.load %arg15[%c0_88, %c0_89, %c0_90] : memref<1x8x32xbf16, #tpu.memory_space<vmem>>, vector<1x8x32xbf16>
      tpu.vector_store %arg15[%c0_88, %c0_89, %c0_90], %214 {strides = array<i32>} : memref<1x8x32xbf16, #tpu.memory_space<vmem>>, vector<1x8x32xbf16>,
    } else {
    }
    %c0 = arith.constant 0 : index
    %c0_1 = arith.constant 0 : index
    %c0_2 = arith.constant 0 : index
    %3 = vector.load %arg15[%c0, %c0_1, %c0_2] : memref<1x8x32xbf16, #tpu.memory_space<vmem>>, vector<1x8x32xbf16>
    %4 = vector.shape_cast %3 : vector<1x8x32xbf16> to vector<8x32xbf16>
    %5 = arith.extf %4 : vector<8x32xbf16> to vector<8x32xf32>
    %c0_3 = arith.constant 0 : index
    %c0_4 = arith.constant 0 : index
    %c0_5 = arith.constant 0 : index
    %6 = vector.load %arg3[%c0_3, %c0_4, %c0_5] : memref<1x1x32xbf16, #tpu.memory_space<vmem>>, vector<1x1x32xbf16>
    %7 = vector.shape_cast %6 : vector<1x1x32xbf16> to vector<1x32xbf16>
    %c0_6 = arith.constant 0 : index
    %c0_7 = arith.constant 0 : index
    %c0_8 = arith.constant 0 : index
    %8 = vector.load %arg4[%c0_6, %c0_7, %c0_8] : memref<1x1x32xbf16, #tpu.memory_space<vmem>>, vector<1x1x32xbf16>
    %9 = vector.shape_cast %8 : vector<1x1x32xbf16> to vector<1x32xbf16>
    %cst = arith.constant dense<0.000000e+00> : vector<8xf32>
    %10 = vector.multi_reduction <add>, %5, %cst [1] : vector<8x32xf32> to vector<8xf32>
    %11 = vector.shape_cast %10 : vector<8xf32> to vector<8x1xf32>
    %cst_9 = arith.constant 3.200000e+01 : f32
    %12 = vector.broadcast %cst_9 : f32 to vector<8x1xf32>
    %13 = arith.divf %11, %12 : vector<8x1xf32>
    %14 = vector.broadcast %13 : vector<8x1xf32> to vector<8x32xf32>
    %15 = arith.subf %5, %14 : vector<8x32xf32>
    %16 = arith.mulf %15, %15 : vector<8x32xf32>
    %cst_10 = arith.constant dense<0.000000e+00> : vector<8xf32>
    %17 = vector.multi_reduction <add>, %16, %cst_10 [1] : vector<8x32xf32> to vector<8xf32>
    %18 = vector.shape_cast %17 : vector<8xf32> to vector<8x1xf32>
    %cst_11 = arith.constant 3.200000e+01 : f32
    %19 = vector.broadcast %cst_11 : f32 to vector<8x1xf32>
    %20 = arith.divf %18, %19 : vector<8x1xf32>
    %cst_12 = arith.constant 9.99999997E-7 : f32
    %21 = vector.broadcast %cst_12 : f32 to vector<8x1xf32>
    %22 = arith.addf %20, %21 : vector<8x1xf32>
    %23 = math.rsqrt %22 : vector<8x1xf32>
    %24 = vector.broadcast %23 : vector<8x1xf32> to vector<8x32xf32>
    %25 = arith.mulf %15, %24 : vector<8x32xf32>
    %26 = arith.extf %7 : vector<1x32xbf16> to vector<1x32xf32>
    %27 = vector.broadcast %26 : vector<1x32xf32> to vector<8x32xf32>
    %28 = arith.mulf %25, %27 : vector<8x32xf32>
    %29 = arith.extf %9 : vector<1x32xbf16> to vector<1x32xf32>
    %30 = vector.broadcast %29 : vector<1x32xf32> to vector<8x32xf32>
    %31 = arith.addf %28, %30 : vector<8x32xf32>
    %32 = arith.truncf %31 : vector<8x32xf32> to vector<8x32xbf16>
    %c0_13 = arith.constant 0 : index
    %c0_14 = arith.constant 0 : index
    %c0_15 = arith.constant 0 : index
    %33 = vector.load %arg5[%c0_13, %c0_14, %c0_15] : memref<1x32x96xbf16, #tpu.memory_space<vmem>>, vector<1x32x96xbf16>
    %34 = vector.shape_cast %33 : vector<1x32x96xbf16> to vector<32x96xbf16>
    %cst_16 = arith.constant dense<0.000000e+00> : vector<8x96xf32>
    %35 = tpu.matmul %32, %34, %cst_16 {dimension_numbers = #tpu.dot_dimension_numbers<[1], [0], [0], [1], [0, 0, 1, 1], [], []>} : vector<8x32xbf16>, vector<32x96xbf16>, vector<8x96xf32> -> vector<8x96xf32>
    %c0_17 = arith.constant 0 : index
    %c0_18 = arith.constant 0 : index
    %c0_19 = arith.constant 0 : index
    %36 = vector.load %arg6[%c0_17, %c0_18, %c0_19] : memref<1x1x96xbf16, #tpu.memory_space<vmem>>, vector<1x1x96xbf16>
    %37 = vector.shape_cast %36 : vector<1x1x96xbf16> to vector<1x96xbf16>
    %38 = arith.extf %37 : vector<1x96xbf16> to vector<1x96xf32>
    %39 = vector.broadcast %38 : vector<1x96xf32> to vector<8x96xf32>
    %40 = arith.addf %35, %39 : vector<8x96xf32>
    %41 = arith.truncf %40 : vector<8x96xf32> to vector<8x96xbf16>
    %42 = tpu.iota {dimensions = array<i32: 1>} : vector<1x8xi32>
    %c5_i32 = arith.constant 5 : i32
    %43 = vector.broadcast %c5_i32 : i32 to vector<1x8xi32>
    %44 = arith.cmpi slt, %42, %43 : vector<1x8xi32>
    %cst_20 = arith.constant 0.000000e+00 : f32
    %cst_21 = arith.constant -1.000000e+30 : f32
    %45 = vector.broadcast %cst_20 : f32 to vector<1x8xf32>
    %46 = vector.broadcast %cst_21 : f32 to vector<1x8xf32>
    %47 = arith.select %44, %45, %46 : vector<1x8xi1>, vector<1x8xf32>
    %c0_22 = arith.constant 0 : index
    %c0_23 = arith.constant 0 : index
    %c0_24 = arith.constant 0 : index
    %48 = vector.load %arg7[%c0_22, %c0_23, %c0_24] : memref<1x32x32xbf16, #tpu.memory_space<vmem>>, vector<1x32x32xbf16>
    %49 = vector.shape_cast %48 : vector<1x32x32xbf16> to vector<32x32xbf16>
    %cst_25 = arith.constant 0.000000e+00 : f32
    %50 = vector.broadcast %cst_25 : f32 to vector<8x32xf32>
    %51 = vector.extract_strided_slice %41 {offsets = [0, 0], sizes = [8, 8], strides = [1, 1]} : vector<8x96xbf16> to vector<8x8xbf16>
    %52 = vector.extract_strided_slice %41 {offsets = [0, 32], sizes = [8, 8], strides = [1, 1]} : vector<8x96xbf16> to vector<8x8xbf16>
    %53 = vector.extract_strided_slice %41 {offsets = [0, 64], sizes = [8, 8], strides = [1, 1]} : vector<8x96xbf16> to vector<8x8xbf16>
    %cst_26 = arith.constant dense<0.000000e+00> : vector<8x8xf32>
    %54 = tpu.matmul %51, %52, %cst_26 {dimension_numbers = #tpu.dot_dimension_numbers<[1], [1], [0], [0], [0, 0, 1, 0], [], []>} : vector<8x8xbf16>, vector<8x8xbf16>, vector<8x8xf32> -> vector<8x8xf32>
    %cst_27 = arith.constant 0.353553385 : f32
    %55 = vector.broadcast %cst_27 : f32 to vector<8x8xf32>
    %56 = arith.mulf %54, %55 : vector<8x8xf32>
    %57 = vector.broadcast %47 : vector<1x8xf32> to vector<8x8xf32>
    %58 = arith.addf %56, %57 : vector<8x8xf32>
    %cst_28 = arith.constant dense<0xFF800000> : vector<8xf32>
    %59 = vector.multi_reduction <maximumf>, %58, %cst_28 [1] : vector<8x8xf32> to vector<8xf32>
    %60 = vector.shape_cast %59 : vector<8xf32> to vector<8x1xf32>
    %61 = vector.broadcast %60 : vector<8x1xf32> to vector<8x8xf32>
    %62 = arith.subf %58, %61 : vector<8x8xf32>
    %63 = math.exp %62 : vector<8x8xf32>
    %cst_29 = arith.constant dense<0.000000e+00> : vector<8xf32>
    %64 = vector.multi_reduction <add>, %63, %cst_29 [1] : vector<8x8xf32> to vector<8xf32>
    %65 = vector.shape_cast %64 : vector<8xf32> to vector<8x1xf32>
    %66 = tpu.reciprocal %65 {approx = true} : vector<8x1xf32> -> vector<8x1xf32>
    %67 = vector.broadcast %66 : vector<8x1xf32> to vector<8x8xf32>
    %68 = arith.mulf %63, %67 : vector<8x8xf32>
    %69 = arith.truncf %68 : vector<8x8xf32> to vector<8x8xbf16>
    %cst_30 = arith.constant dense<0.000000e+00> : vector<8x8xf32>
    %70 = tpu.matmul %69, %53, %cst_30 {dimension_numbers = #tpu.dot_dimension_numbers<[1], [0], [0], [1], [0, 0, 1, 1], [], []>} : vector<8x8xbf16>, vector<8x8xbf16>, vector<8x8xf32> -> vector<8x8xf32>
    %71 = arith.truncf %70 : vector<8x8xf32> to vector<8x8xbf16>
    %72 = vector.extract_strided_slice %49 {offsets = [0, 0], sizes = [8, 32], strides = [1, 1]} : vector<32x32xbf16> to vector<8x32xbf16>
    %cst_31 = arith.constant dense<0.000000e+00> : vector<8x32xf32>
    %73 = tpu.matmul %71, %72, %cst_31 {dimension_numbers = #tpu.dot_dimension_numbers<[1], [0], [0], [1], [0, 0, 1, 1], [], []>} : vector<8x8xbf16>, vector<8x32xbf16>, vector<8x32xf32> -> vector<8x32xf32>
    %74 = arith.addf %50, %73 : vector<8x32xf32>
    %75 = vector.extract_strided_slice %41 {offsets = [0, 8], sizes = [8, 8], strides = [1, 1]} : vector<8x96xbf16> to vector<8x8xbf16>
    %76 = vector.extract_strided_slice %41 {offsets = [0, 40], sizes = [8, 8], strides = [1, 1]} : vector<8x96xbf16> to vector<8x8xbf16>
    %77 = vector.extract_strided_slice %41 {offsets = [0, 72], sizes = [8, 8], strides = [1, 1]} : vector<8x96xbf16> to vector<8x8xbf16>
    %cst_32 = arith.constant dense<0.000000e+00> : vector<8x8xf32>
    %78 = tpu.matmul %75, %76, %cst_32 {dimension_numbers = #tpu.dot_dimension_numbers<[1], [1], [0], [0], [0, 0, 1, 0], [], []>} : vector<8x8xbf16>, vector<8x8xbf16>, vector<8x8xf32> -> vector<8x8xf32>
    %cst_33 = arith.constant 0.353553385 : f32
    %79 = vector.broadcast %cst_33 : f32 to vector<8x8xf32>
    %80 = arith.mulf %78, %79 : vector<8x8xf32>
    %81 = vector.broadcast %47 : vector<1x8xf32> to vector<8x8xf32>
    %82 = arith.addf %80, %81 : vector<8x8xf32>
    %cst_34 = arith.constant dense<0xFF800000> : vector<8xf32>
    %83 = vector.multi_reduction <maximumf>, %82, %cst_34 [1] : vector<8x8xf32> to vector<8xf32>
    %84 = vector.shape_cast %83 : vector<8xf32> to vector<8x1xf32>
    %85 = vector.broadcast %84 : vector<8x1xf32> to vector<8x8xf32>
    %86 = arith.subf %82, %85 : vector<8x8xf32>
    %87 = math.exp %86 : vector<8x8xf32>
    %cst_35 = arith.constant dense<0.000000e+00> : vector<8xf32>
    %88 = vector.multi_reduction <add>, %87, %cst_35 [1] : vector<8x8xf32> to vector<8xf32>
    %89 = vector.shape_cast %88 : vector<8xf32> to vector<8x1xf32>
    %90 = tpu.reciprocal %89 {approx = true} : vector<8x1xf32> -> vector<8x1xf32>
    %91 = vector.broadcast %90 : vector<8x1xf32> to vector<8x8xf32>
    %92 = arith.mulf %87, %91 : vector<8x8xf32>
    %93 = arith.truncf %92 : vector<8x8xf32> to vector<8x8xbf16>
    %cst_36 = arith.constant dense<0.000000e+00> : vector<8x8xf32>
    %94 = tpu.matmul %93, %77, %cst_36 {dimension_numbers = #tpu.dot_dimension_numbers<[1], [0], [0], [1], [0, 0, 1, 1], [], []>} : vector<8x8xbf16>, vector<8x8xbf16>, vector<8x8xf32> -> vector<8x8xf32>
    %95 = arith.truncf %94 : vector<8x8xf32> to vector<8x8xbf16>
    %96 = vector.extract_strided_slice %49 {offsets = [8, 0], sizes = [8, 32], strides = [1, 1]} : vector<32x32xbf16> to vector<8x32xbf16>
    %cst_37 = arith.constant dense<0.000000e+00> : vector<8x32xf32>
    %97 = tpu.matmul %95, %96, %cst_37 {dimension_numbers = #tpu.dot_dimension_numbers<[1], [0], [0], [1], [0, 0, 1, 1], [], []>} : vector<8x8xbf16>, vector<8x32xbf16>, vector<8x32xf32> -> vector<8x32xf32>
    %98 = arith.addf %74, %97 : vector<8x32xf32>
    %99 = vector.extract_strided_slice %41 {offsets = [0, 16], sizes = [8, 8], strides = [1, 1]} : vector<8x96xbf16> to vector<8x8xbf16>
    %100 = vector.extract_strided_slice %41 {offsets = [0, 48], sizes = [8, 8], strides = [1, 1]} : vector<8x96xbf16> to vector<8x8xbf16>
    %101 = vector.extract_strided_slice %41 {offsets = [0, 80], sizes = [8, 8], strides = [1, 1]} : vector<8x96xbf16> to vector<8x8xbf16>
    %cst_38 = arith.constant dense<0.000000e+00> : vector<8x8xf32>
    %102 = tpu.matmul %99, %100, %cst_38 {dimension_numbers = #tpu.dot_dimension_numbers<[1], [1], [0], [0], [0, 0, 1, 0], [], []>} : vector<8x8xbf16>, vector<8x8xbf16>, vector<8x8xf32> -> vector<8x8xf32>
    %cst_39 = arith.constant 0.353553385 : f32
    %103 = vector.broadcast %cst_39 : f32 to vector<8x8xf32>
    %104 = arith.mulf %102, %103 : vector<8x8xf32>
    %105 = vector.broadcast %47 : vector<1x8xf32> to vector<8x8xf32>
    %106 = arith.addf %104, %105 : vector<8x8xf32>
    %cst_40 = arith.constant dense<0xFF800000> : vector<8xf32>
    %107 = vector.multi_reduction <maximumf>, %106, %cst_40 [1] : vector<8x8xf32> to vector<8xf32>
    %108 = vector.shape_cast %107 : vector<8xf32> to vector<8x1xf32>
    %109 = vector.broadcast %108 : vector<8x1xf32> to vector<8x8xf32>
    %110 = arith.subf %106, %109 : vector<8x8xf32>
    %111 = math.exp %110 : vector<8x8xf32>
    %cst_41 = arith.constant dense<0.000000e+00> : vector<8xf32>
    %112 = vector.multi_reduction <add>, %111, %cst_41 [1] : vector<8x8xf32> to vector<8xf32>
    %113 = vector.shape_cast %112 : vector<8xf32> to vector<8x1xf32>
    %114 = tpu.reciprocal %113 {approx = true} : vector<8x1xf32> -> vector<8x1xf32>
    %115 = vector.broadcast %114 : vector<8x1xf32> to vector<8x8xf32>
    %116 = arith.mulf %111, %115 : vector<8x8xf32>
    %117 = arith.truncf %116 : vector<8x8xf32> to vector<8x8xbf16>
    %cst_42 = arith.constant dense<0.000000e+00> : vector<8x8xf32>
    %118 = tpu.matmul %117, %101, %cst_42 {dimension_numbers = #tpu.dot_dimension_numbers<[1], [0], [0], [1], [0, 0, 1, 1], [], []>} : vector<8x8xbf16>, vector<8x8xbf16>, vector<8x8xf32> -> vector<8x8xf32>
    %119 = arith.truncf %118 : vector<8x8xf32> to vector<8x8xbf16>
    %120 = vector.extract_strided_slice %49 {offsets = [16, 0], sizes = [8, 32], strides = [1, 1]} : vector<32x32xbf16> to vector<8x32xbf16>
    %cst_43 = arith.constant dense<0.000000e+00> : vector<8x32xf32>
    %121 = tpu.matmul %119, %120, %cst_43 {dimension_numbers = #tpu.dot_dimension_numbers<[1], [0], [0], [1], [0, 0, 1, 1], [], []>} : vector<8x8xbf16>, vector<8x32xbf16>, vector<8x32xf32> -> vector<8x32xf32>
    %122 = arith.addf %98, %121 : vector<8x32xf32>
    %123 = vector.extract_strided_slice %41 {offsets = [0, 24], sizes = [8, 8], strides = [1, 1]} : vector<8x96xbf16> to vector<8x8xbf16>
    %124 = vector.extract_strided_slice %41 {offsets = [0, 56], sizes = [8, 8], strides = [1, 1]} : vector<8x96xbf16> to vector<8x8xbf16>
    %125 = vector.extract_strided_slice %41 {offsets = [0, 88], sizes = [8, 8], strides = [1, 1]} : vector<8x96xbf16> to vector<8x8xbf16>
    %cst_44 = arith.constant dense<0.000000e+00> : vector<8x8xf32>
    %126 = tpu.matmul %123, %124, %cst_44 {dimension_numbers = #tpu.dot_dimension_numbers<[1], [1], [0], [0], [0, 0, 1, 0], [], []>} : vector<8x8xbf16>, vector<8x8xbf16>, vector<8x8xf32> -> vector<8x8xf32>
    %cst_45 = arith.constant 0.353553385 : f32
    %127 = vector.broadcast %cst_45 : f32 to vector<8x8xf32>
    %128 = arith.mulf %126, %127 : vector<8x8xf32>
    %129 = vector.broadcast %47 : vector<1x8xf32> to vector<8x8xf32>
    %130 = arith.addf %128, %129 : vector<8x8xf32>
    %cst_46 = arith.constant dense<0xFF800000> : vector<8xf32>
    %131 = vector.multi_reduction <maximumf>, %130, %cst_46 [1] : vector<8x8xf32> to vector<8xf32>
    %132 = vector.shape_cast %131 : vector<8xf32> to vector<8x1xf32>
    %133 = vector.broadcast %132 : vector<8x1xf32> to vector<8x8xf32>
    %134 = arith.subf %130, %133 : vector<8x8xf32>
    %135 = math.exp %134 : vector<8x8xf32>
    %cst_47 = arith.constant dense<0.000000e+00> : vector<8xf32>
    %136 = vector.multi_reduction <add>, %135, %cst_47 [1] : vector<8x8xf32> to vector<8xf32>
    %137 = vector.shape_cast %136 : vector<8xf32> to vector<8x1xf32>
    %138 = tpu.reciprocal %137 {approx = true} : vector<8x1xf32> -> vector<8x1xf32>
    %139 = vector.broadcast %138 : vector<8x1xf32> to vector<8x8xf32>
    %140 = arith.mulf %135, %139 : vector<8x8xf32>
    %141 = arith.truncf %140 : vector<8x8xf32> to vector<8x8xbf16>
    %cst_48 = arith.constant dense<0.000000e+00> : vector<8x8xf32>
    %142 = tpu.matmul %141, %125, %cst_48 {dimension_numbers = #tpu.dot_dimension_numbers<[1], [0], [0], [1], [0, 0, 1, 1], [], []>} : vector<8x8xbf16>, vector<8x8xbf16>, vector<8x8xf32> -> vector<8x8xf32>
    %143 = arith.truncf %142 : vector<8x8xf32> to vector<8x8xbf16>
    %144 = vector.extract_strided_slice %49 {offsets = [24, 0], sizes = [8, 32], strides = [1, 1]} : vector<32x32xbf16> to vector<8x32xbf16>
    %cst_49 = arith.constant dense<0.000000e+00> : vector<8x32xf32>
    %145 = tpu.matmul %143, %144, %cst_49 {dimension_numbers = #tpu.dot_dimension_numbers<[1], [0], [0], [1], [0, 0, 1, 1], [], []>} : vector<8x8xbf16>, vector<8x32xbf16>, vector<8x32xf32> -> vector<8x32xf32>
    %146 = arith.addf %122, %145 : vector<8x32xf32>
    %147 = arith.addf %5, %146 : vector<8x32xf32>
    %c0_50 = arith.constant 0 : index
    %c0_51 = arith.constant 0 : index
    %c0_52 = arith.constant 0 : index
    %148 = vector.load %arg8[%c0_50, %c0_51, %c0_52] : memref<1x1x32xbf16, #tpu.memory_space<vmem>>, vector<1x1x32xbf16>
    %149 = vector.shape_cast %148 : vector<1x1x32xbf16> to vector<1x32xbf16>
    %150 = arith.extf %149 : vector<1x32xbf16> to vector<1x32xf32>
    %151 = vector.broadcast %150 : vector<1x32xf32> to vector<8x32xf32>
    %152 = arith.addf %147, %151 : vector<8x32xf32>
    %c0_53 = arith.constant 0 : index
    %c0_54 = arith.constant 0 : index
    %c0_55 = arith.constant 0 : index
    %153 = vector.load %arg9[%c0_53, %c0_54, %c0_55] : memref<1x1x32xbf16, #tpu.memory_space<vmem>>, vector<1x1x32xbf16>
    %154 = vector.shape_cast %153 : vector<1x1x32xbf16> to vector<1x32xbf16>
    %c0_56 = arith.constant 0 : index
    %c0_57 = arith.constant 0 : index
    %c0_58 = arith.constant 0 : index
    %155 = vector.load %arg10[%c0_56, %c0_57, %c0_58] : memref<1x1x32xbf16, #tpu.memory_space<vmem>>, vector<1x1x32xbf16>
    %156 = vector.shape_cast %155 : vector<1x1x32xbf16> to vector<1x32xbf16>
    %cst_59 = arith.constant dense<0.000000e+00> : vector<8xf32>
    %157 = vector.multi_reduction <add>, %152, %cst_59 [1] : vector<8x32xf32> to vector<8xf32>
    %158 = vector.shape_cast %157 : vector<8xf32> to vector<8x1xf32>
    %cst_60 = arith.constant 3.200000e+01 : f32
    %159 = vector.broadcast %cst_60 : f32 to vector<8x1xf32>
    %160 = arith.divf %158, %159 : vector<8x1xf32>
    %161 = vector.broadcast %160 : vector<8x1xf32> to vector<8x32xf32>
    %162 = arith.subf %152, %161 : vector<8x32xf32>
    %163 = arith.mulf %162, %162 : vector<8x32xf32>
    %cst_61 = arith.constant dense<0.000000e+00> : vector<8xf32>
    %164 = vector.multi_reduction <add>, %163, %cst_61 [1] : vector<8x32xf32> to vector<8xf32>
    %165 = vector.shape_cast %164 : vector<8xf32> to vector<8x1xf32>
    %cst_62 = arith.constant 3.200000e+01 : f32
    %166 = vector.broadcast %cst_62 : f32 to vector<8x1xf32>
    %167 = arith.divf %165, %166 : vector<8x1xf32>
    %cst_63 = arith.constant 9.99999997E-7 : f32
    %168 = vector.broadcast %cst_63 : f32 to vector<8x1xf32>
    %169 = arith.addf %167, %168 : vector<8x1xf32>
    %170 = math.rsqrt %169 : vector<8x1xf32>
    %171 = vector.broadcast %170 : vector<8x1xf32> to vector<8x32xf32>
    %172 = arith.mulf %162, %171 : vector<8x32xf32>
    %173 = arith.extf %154 : vector<1x32xbf16> to vector<1x32xf32>
    %174 = vector.broadcast %173 : vector<1x32xf32> to vector<8x32xf32>
    %175 = arith.mulf %172, %174 : vector<8x32xf32>
    %176 = arith.extf %156 : vector<1x32xbf16> to vector<1x32xf32>
    %177 = vector.broadcast %176 : vector<1x32xf32> to vector<8x32xf32>
    %178 = arith.addf %175, %177 : vector<8x32xf32>
    %179 = arith.truncf %178 : vector<8x32xf32> to vector<8x32xbf16>
    %c0_64 = arith.constant 0 : index
    %c0_65 = arith.constant 0 : index
    %c0_66 = arith.constant 0 : index
    %180 = vector.load %arg11[%c0_64, %c0_65, %c0_66] : memref<1x32x64xbf16, #tpu.memory_space<vmem>>, vector<1x32x64xbf16>
    %181 = vector.shape_cast %180 : vector<1x32x64xbf16> to vector<32x64xbf16>
    %cst_67 = arith.constant dense<0.000000e+00> : vector<8x64xf32>
    %182 = tpu.matmul %179, %181, %cst_67 {dimension_numbers = #tpu.dot_dimension_numbers<[1], [0], [0], [1], [0, 0, 1, 1], [], []>} : vector<8x32xbf16>, vector<32x64xbf16>, vector<8x64xf32> -> vector<8x64xf32>
    %c0_68 = arith.constant 0 : index
    %c0_69 = arith.constant 0 : index
    %c0_70 = arith.constant 0 : index
    %183 = vector.load %arg12[%c0_68, %c0_69, %c0_70] : memref<1x1x64xbf16, #tpu.memory_space<vmem>>, vector<1x1x64xbf16>
    %184 = vector.shape_cast %183 : vector<1x1x64xbf16> to vector<1x64xbf16>
    %185 = arith.extf %184 : vector<1x64xbf16> to vector<1x64xf32>
    %186 = vector.broadcast %185 : vector<1x64xf32> to vector<8x64xf32>
    %187 = arith.addf %182, %186 : vector<8x64xf32>
    %188 = arith.mulf %187, %187 : vector<8x64xf32>
    %189 = arith.mulf %187, %188 : vector<8x64xf32>
    %cst_71 = arith.constant 4.471500e-02 : f32
    %190 = vector.broadcast %cst_71 : f32 to vector<8x64xf32>
    %191 = arith.mulf %190, %189 : vector<8x64xf32>
    %192 = arith.addf %187, %191 : vector<8x64xf32>
    %cst_72 = arith.constant 0.797884583 : f32
    %193 = vector.broadcast %cst_72 : f32 to vector<8x64xf32>
    %194 = arith.mulf %193, %192 : vector<8x64xf32>
    %195 = math.tanh %194 : vector<8x64xf32>
    %cst_73 = arith.constant 1.000000e+00 : f32
    %196 = vector.broadcast %cst_73 : f32 to vector<8x64xf32>
    %197 = arith.addf %196, %195 : vector<8x64xf32>
    %cst_74 = arith.constant 5.000000e-01 : f32
    %198 = vector.broadcast %cst_74 : f32 to vector<8x64xf32>
    %199 = arith.mulf %198, %197 : vector<8x64xf32>
    %200 = arith.mulf %187, %199 : vector<8x64xf32>
    %201 = arith.truncf %200 : vector<8x64xf32> to vector<8x64xbf16>
    %c0_75 = arith.constant 0 : index
    %c0_76 = arith.constant 0 : index
    %c0_77 = arith.constant 0 : index
    %202 = vector.load %arg13[%c0_75, %c0_76, %c0_77] : memref<1x64x32xbf16, #tpu.memory_space<vmem>>, vector<1x64x32xbf16>
    %203 = vector.shape_cast %202 : vector<1x64x32xbf16> to vector<64x32xbf16>
    %cst_78 = arith.constant dense<0.000000e+00> : vector<8x32xf32>
    %204 = tpu.matmul %201, %203, %cst_78 {dimension_numbers = #tpu.dot_dimension_numbers<[1], [0], [0], [1], [0, 0, 1, 1], [], []>} : vector<8x64xbf16>, vector<64x32xbf16>, vector<8x32xf32> -> vector<8x32xf32>
    %c0_79 = arith.constant 0 : index
    %c0_80 = arith.constant 0 : index
    %c0_81 = arith.constant 0 : index
    %205 = vector.load %arg14[%c0_79, %c0_80, %c0_81] : memref<1x1x32xbf16, #tpu.memory_space<vmem>>, vector<1x1x32xbf16>
    %206 = vector.shape_cast %205 : vector<1x1x32xbf16> to vector<1x32xbf16>
    %207 = arith.extf %206 : vector<1x32xbf16> to vector<1x32xf32>
    %208 = vector.broadcast %207 : vector<1x32xf32> to vector<8x32xf32>
    %209 = arith.addf %204, %208 : vector<8x32xf32>
    %210 = arith.addf %152, %209 : vector<8x32xf32>
    %211 = vector.shape_cast %210 : vector<8x32xf32> to vector<1x8x32xf32>
    %212 = arith.truncf %211 : vector<1x8x32xf32> to vector<1x8x32xbf16>
    %c0_82 = arith.constant 0 : index
    %c0_83 = arith.constant 0 : index
    %c0_84 = arith.constant 0 : index
    %213 = vector.load %arg15[%c0_82, %c0_83, %c0_84] : memref<1x8x32xbf16, #tpu.memory_space<vmem>>, vector<1x8x32xbf16>
    tpu.vector_store %arg15[%c0_82, %c0_83, %c0_84], %212 {strides = array<i32>} : memref<1x8x32xbf16, #tpu.memory_space<vmem>>, vector<1x8x32xbf16>,
    return
  }
  func.func @transform_0(%arg0: i32, %arg1: i32) -> (i32, i32, i32) {
    %c0_i32 = arith.constant 0 : i32
    %c0_i32_0 = arith.constant 0 : i32
    %c0_i32_1 = arith.constant 0 : i32
    return %arg0, %c0_i32, %c0_i32_0 : i32, i32, i32
  }
  func.func @transform_1(%arg0: i32, %arg1: i32) -> (i32, i32, i32) {
    %c0_i32 = arith.constant 0 : i32
    %c0_i32_0 = arith.constant 0 : i32
    %c0_i32_1 = arith.constant 0 : i32
    return %arg1, %c0_i32, %c0_i32_0 : i32, i32, i32
  }
  func.func @transform_2(%arg0: i32, %arg1: i32) -> (i32, i32, i32) {
    %c0_i32 = arith.constant 0 : i32
    %c0_i32_0 = arith.constant 0 : i32
    %c0_i32_1 = arith.constant 0 : i32
    return %arg1, %c0_i32, %c0_i32_0 : i32, i32, i32
  }
  func.func @transform_3(%arg0: i32, %arg1: i32) -> (i32, i32, i32) {
    %c0_i32 = arith.constant 0 : i32
    %c0_i32_0 = arith.constant 0 : i32
    %c0_i32_1 = arith.constant 0 : i32
    return %arg1, %c0_i32, %c0_i32_0 : i32, i32, i32
  }
  func.func @transform_4(%arg0: i32, %arg1: i32) -> (i32, i32, i32) {
    %c0_i32 = arith.constant 0 : i32
    %c0_i32_0 = arith.constant 0 : i32
    %c0_i32_1 = arith.constant 0 : i32
    return %arg1, %c0_i32, %c0_i32_0 : i32, i32, i32
  }
  func.func @transform_5(%arg0: i32, %arg1: i32) -> (i32, i32, i32) {
    %c0_i32 = arith.constant 0 : i32
    %c0_i32_0 = arith.constant 0 : i32
    %c0_i32_1 = arith.constant 0 : i32
    return %arg1, %c0_i32, %c0_i32_0 : i32, i32, i32
  }
  func.func @transform_6(%arg0: i32, %arg1: i32) -> (i32, i32, i32) {
    %c0_i32 = arith.constant 0 : i32
    %c0_i32_0 = arith.constant 0 : i32
    %c0_i32_1 = arith.constant 0 : i32
    return %arg1, %c0_i32, %c0_i32_0 : i32, i32, i32
  }
  func.func @transform_7(%arg0: i32, %arg1: i32) -> (i32, i32, i32) {
    %c0_i32 = arith.constant 0 : i32
    %c0_i32_0 = arith.constant 0 : i32
    %c0_i32_1 = arith.constant 0 : i32
    return %arg1, %c0_i32, %c0_i32_0 : i32, i32, i32
  }
  func.func @transform_8(%arg0: i32, %arg1: i32) -> (i32, i32, i32) {
    %c0_i32 = arith.constant 0 : i32
    %c0_i32_0 = arith.constant 0 : i32
    %c0_i32_1 = arith.constant 0 : i32
    return %arg1, %c0_i32, %c0_i32_0 : i32, i32, i32
  }
  func.func @transform_9(%arg0: i32, %arg1: i32) -> (i32, i32, i32) {
    %c0_i32 = arith.constant 0 : i32
    %c0_i32_0 = arith.constant 0 : i32
    %c0_i32_1 = arith.constant 0 : i32
    return %arg1, %c0_i32, %c0_i32_0 : i32, i32, i32
  }
  func.func @transform_10(%arg0: i32, %arg1: i32) -> (i32, i32, i32) {
    %c0_i32 = arith.constant 0 : i32
    %c0_i32_0 = arith.constant 0 : i32
    %c0_i32_1 = arith.constant 0 : i32
    return %arg1, %c0_i32, %c0_i32_0 : i32, i32, i32
  }
  func.func @transform_11(%arg0: i32, %arg1: i32) -> (i32, i32, i32) {
    %c0_i32 = arith.constant 0 : i32
    %c0_i32_0 = arith.constant 0 : i32
    %c0_i32_1 = arith.constant 0 : i32
    return %arg1, %c0_i32, %c0_i32_0 : i32, i32, i32
  }
  func.func @transform_12(%arg0: i32, %arg1: i32) -> (i32, i32, i32) {
    %c0_i32 = arith.constant 0 : i32
    %c0_i32_0 = arith.constant 0 : i32
    %c0_i32_1 = arith.constant 0 : i32
    return %arg1, %c0_i32, %c0_i32_0 : i32, i32, i32
  }
  func.func @transform_13(%arg0: i32, %arg1: i32) -> (i32, i32, i32) {
    %c0_i32 = arith.constant 0 : i32
    %c0_i32_0 = arith.constant 0 : i32
    %c0_i32_1 = arith.constant 0 : i32
    return %arg0, %c0_i32, %c0_i32_0 : i32, i32, i32
  }
}

</mosaic_0001>

<llo_original>
// kernel: vision_transformer_forward.3
$region0: #{vision_transformer_forward.3}
  #allocation0 [shape = 'u32[]', space=smem, size = 0x4, offset = 0x4, fixed_abs, tag = 'smem constant byte address 0x4 - core index']
  #allocation1 [shape = 'u32[144,128]{1,0:T(1,128)}', space=vmem, size = 0x12000, scoped, tag = 'internal scratch']
  %s0 = inlined_call_operand.vmem [shape: bf16[2,4,192], index: 0, kind: input, shape index: {}]
  %s1 = inlined_call_operand.vmem [shape: bf16[192,32], index: 1, kind: input, shape index: {}]
  %s2 = inlined_call_operand.vmem [shape: bf16[1,32], index: 2, kind: input, shape index: {}]
  %s3 = inlined_call_operand.vmem [shape: bf16[1,32], index: 3, kind: input, shape index: {}]
  %s4 = inlined_call_operand.vmem [shape: bf16[5,32], index: 4, kind: input, shape index: {}]
  %s5 = inlined_call_operand.vmem [shape: bf16[2,8,32], index: 5, kind: output, shape index: {}]
  %s6 = sld [smem:[#allocation0]]
  $region53: #{vision_transformer_forward.3} parent=0
    _
  %s8 = ssub.s32 1, %s6
  %s9 = scalar_select 0, %s8, %s6
  loop: start=0, step=1, limit=4
  $region2: #{vision_transformer_forward.3} parent=0 // loop_pre_header
    _
  $region3: #{vision_transformer_forward.3} parent=0 // loop_header
    %s11 = sphi 0, %s15
    %p12 = scmp.ge.s32.totalorder %s11, 4
    %s21 = sphi 0, %s23
    %s24 = sphi 0, %s21
    %s25 = sphi 0, %s24
    %s41 = sphi 0, %s25
    %s45 = sphi 0, %s45
    %s47 = sphi 0, %s45
    %s48 = sphi 0, %s47
    %s62 = sphi 0, %s48
    %s66 = sphi 0, %s66
    %s68 = sphi 0, %s66
    %s69 = sphi 0, %s68
    %s83 = sphi 0, %s69
    %s87 = sphi 0, %s87
    %s89 = sphi 0, %s87
    %s90 = sphi 0, %s89
    %s104 = sphi 0, %s90
    %s108 = sphi 0, %s108
    %s110 = sphi 0, %s108
    %s111 = sphi 0, %s110
    %s125 = sphi 0, %s111
    %s131 = sphi 0, %s133
    %s134 = sphi 0, %s131
    %s135 = sphi 0, %s134
    %s151 = sphi 0, %s135
  $region4: #{vision_transformer_forward.3} parent=0 // loop_header_branch
    %14 = sbr.rel (%p12) target = $region8
  $region5: #{vision_transformer_forward.3} parent=0 // loop_body
    %s16 = ssub.s32 %s11, 1
    %s17 = ssub.s32 %s11, 2
    %s18 = sadd.s32 %s11, 1
    %s19 = ssub.s32 %s11, %s18
    %p20 = scmp.eq.s32.totalorder %s19, 0
    %s22 = sadd.s32 %s21, 1
    %s23 = scalar_select %p20, %s21, %s22
    %p26 = pneg %p20
    %p27 = scmp.eq.s32.totalorder %s11, 1
    %p28 = por %p26, %p27
    %p29 = scmp.ne.s32.totalorder %s21, %s24
    %p30 = scmp.eq.s32.totalorder %s11, 0
    %p31 = por %p29, %p30
    %p32 = scmp.ne.s32.totalorder %s21, %s24
    %p33 = scmp.eq.s32.totalorder %s16, 1
    %p34 = por %p32, %p33
    %p35 = scmp.ne.s32.totalorder %s24, %s25
    %p36 = scmp.eq.s32.totalorder %s16, 0
    %p37 = por %p35, %p36
    %p38 = scmp.ne.s32.totalorder %s24, %s25
    %p39 = scmp.eq.s32.totalorder %s17, 1
    %p40 = por %p38, %p39
    %p42 = scmp.ne.s32.totalorder %s25, %s41
    %p43 = scmp.eq.s32.totalorder %s17, 0
    %p44 = por %p42, %p43
    %s46 = sadd.s32 %s45, 1
    %p49 = scmp.eq.s32.totalorder %s11, 1
    %p50 = scmp.ne.s32.totalorder %s45, %s47
    %p51 = scmp.eq.s32.totalorder %s11, 0
    %p52 = por %p50, %p51
    %p53 = scmp.ne.s32.totalorder %s45, %s47
    %p54 = scmp.eq.s32.totalorder %s16, 1
    %p55 = por %p53, %p54
    %p56 = scmp.ne.s32.totalorder %s47, %s48
    %p57 = scmp.eq.s32.totalorder %s16, 0
    %p58 = por %p56, %p57
    %p59 = scmp.ne.s32.totalorder %s47, %s48
    %p60 = scmp.eq.s32.totalorder %s17, 1
    %p61 = por %p59, %p60
    %p63 = scmp.ne.s32.totalorder %s48, %s62
    %p64 = scmp.eq.s32.totalorder %s17, 0
    %p65 = por %p63, %p64
    %s67 = sadd.s32 %s66, 1
    %p70 = scmp.eq.s32.totalorder %s11, 1
    %p71 = scmp.ne.s32.totalorder %s66, %s68
    %p72 = scmp.eq.s32.totalorder %s11, 0
    %p73 = por %p71, %p72
    %p74 = scmp.ne.s32.totalorder %s66, %s68
    %p75 = scmp.eq.s32.totalorder %s16, 1
    %p76 = por %p74, %p75
    %p77 = scmp.ne.s32.totalorder %s68, %s69
    %p78 = scmp.eq.s32.totalorder %s16, 0
    %p79 = por %p77, %p78
    %p80 = scmp.ne.s32.totalorder %s68, %s69
    %p81 = scmp.eq.s32.totalorder %s17, 1
    %p82 = por %p80, %p81
    %p84 = scmp.ne.s32.totalorder %s69, %s83
    %p85 = scmp.eq.s32.totalorder %s17, 0
    %p86 = por %p84, %p85
    %s88 = sadd.s32 %s87, 1
    %p91 = scmp.eq.s32.totalorder %s11, 1
    %p92 = scmp.ne.s32.totalorder %s87, %s89
    %p93 = scmp.eq.s32.totalorder %s11, 0
    %p94 = por %p92, %p93
    %p95 = scmp.ne.s32.totalorder %s87, %s89
    %p96 = scmp.eq.s32.totalorder %s16, 1
    %p97 = por %p95, %p96
    %p98 = scmp.ne.s32.totalorder %s89, %s90
    %p99 = scmp.eq.s32.totalorder %s16, 0
    %p100 = por %p98, %p99
    %p101 = scmp.ne.s32.totalorder %s89, %s90
    %p102 = scmp.eq.s32.totalorder %s17, 1
    %p103 = por %p101, %p102
    %p105 = scmp.ne.s32.totalorder %s90, %s104
    %p106 = scmp.eq.s32.totalorder %s17, 0
    %p107 = por %p105, %p106
    %s109 = sadd.s32 %s108, 1
    %p112 = scmp.eq.s32.totalorder %s11, 1
    %p113 = scmp.ne.s32.totalorder %s108, %s110
    %p114 = scmp.eq.s32.totalorder %s11, 0
    %p115 = por %p113, %p114
    %p116 = scmp.ne.s32.totalorder %s108, %s110
    %p117 = scmp.eq.s32.totalorder %s16, 1
    %p118 = por %p116, %p117
    %p119 = scmp.ne.s32.totalorder %s110, %s111
    %p120 = scmp.eq.s32.totalorder %s16, 0
    %p121 = por %p119, %p120
    %p122 = scmp.ne.s32.totalorder %s110, %s111
    %p123 = scmp.eq.s32.totalorder %s17, 1
    %p124 = por %p122, %p123
    %p126 = scmp.ne.s32.totalorder %s111, %s125
    %p127 = scmp.eq.s32.totalorder %s17, 0
    %p128 = por %p126, %p127
    %s129 = ssub.s32 %s11, %s18
    %p130 = scmp.eq.s32.totalorder %s129, 0
    %s132 = sadd.s32 %s131, 1
    %s133 = scalar_select %p130, %s131, %s132
    %p136 = pneg %p130
    %p137 = scmp.eq.s32.totalorder %s11, 1
    %p138 = por %p136, %p137
    %p139 = scmp.ne.s32.totalorder %s131, %s134
    %p140 = scmp.eq.s32.totalorder %s11, 0
    %p141 = por %p139, %p140
    %p142 = scmp.ne.s32.totalorder %s131, %s134
    %p143 = scmp.eq.s32.totalorder %s16, 1
    %p144 = por %p142, %p143
    %p145 = scmp.ne.s32.totalorder %s134, %s135
    %p146 = scmp.eq.s32.totalorder %s16, 0
    %p147 = por %p145, %p146
    %p148 = scmp.ne.s32.totalorder %s134, %s135
    %p149 = scmp.eq.s32.totalorder %s17, 1
    %p150 = por %p148, %p149
    %p152 = scmp.ne.s32.totalorder %s135, %s151
    %p153 = scmp.eq.s32.totalorder %s17, 0
    %p154 = por %p152, %p153
    %p155 = scmp.le.s32.totalorder 1, %s11
    %p156 = scmp.lt.s32.totalorder %s11, 3
    %p157 = pnand %p155, %p156
    %p158 = pneg %p157
    // Predicated region
    $region9: #{vision_transformer_forward.3} parent=5 // pred_check
      _
    $region10: #{vision_transformer_forward.3} parent=5 // pred_check_branch
      %160 = sbr.rel (%p157) target = $region12
    $region11: #{vision_transformer_forward.3} parent=5 // pred_region
      %s161 = ssub.s32 %s11, 1
      // Predicated region
      $region13: #{vision_transformer_forward.3} parent=11 // pred_check
        %p162 = pneg %p58
      $region14: #{vision_transformer_forward.3} parent=11 // pred_check_branch
        %164 = sbr.rel (%p162) target = $region16
      $region15: #{vision_transformer_forward.3} parent=11 // pred_region
        _
      $region16: #{vision_transformer_forward.3} parent=11 // pred_fallthru
        _
      // Predicated region
      $region17: #{vision_transformer_forward.3} parent=11 // pred_check
        %p165 = pneg %p79
      $region18: #{vision_transformer_forward.3} parent=11 // pred_check_branch
        %167 = sbr.rel (%p165) target = $region20
      $region19: #{vision_transformer_forward.3} parent=11 // pred_region
        _
      $region20: #{vision_transformer_forward.3} parent=11 // pred_fallthru
        _
      // Predicated region
      $region21: #{vision_transformer_forward.3} parent=11 // pred_check
        %p168 = pneg %p100
      $region22: #{vision_transformer_forward.3} parent=11 // pred_check_branch
        %170 = sbr.rel (%p168) target = $region24
      $region23: #{vision_transformer_forward.3} parent=11 // pred_region
        _
      $region24: #{vision_transformer_forward.3} parent=11 // pred_fallthru
        _
      // Predicated region
      $region25: #{vision_transformer_forward.3} parent=11 // pred_check
        %p171 = pneg %p121
      $region26: #{vision_transformer_forward.3} parent=11 // pred_check_branch
        %173 = sbr.rel (%p171) target = $region28
      $region27: #{vision_transformer_forward.3} parent=11 // pred_region
        _
      $region28: #{vision_transformer_forward.3} parent=11 // pred_fallthru
        _
    $region12: #{vision_transformer_forward.3} parent=5 // pred_fallthru
      _
    %p174 = scmp.lt.s32.totalorder %s11, 2
    // Predicated region
    $region29: #{vision_transformer_forward.3} parent=5 // pred_check
      %p175 = pneg %p174
    $region30: #{vision_transformer_forward.3} parent=5 // pred_check_branch
      %177 = sbr.rel (%p175) target = $region32
    $region31: #{vision_transformer_forward.3} parent=5 // pred_region
      // Predicated region
      $region33: #{vision_transformer_forward.3} parent=31 // pred_check
        %p178 = pneg %p31
      $region34: #{vision_transformer_forward.3} parent=31 // pred_check_branch
        %180 = sbr.rel (%p178) target = $region36
      $region35: #{vision_transformer_forward.3} parent=31 // pred_region
        %p181 = scmp.lt.s32.totalorder %s11, 1
        %s182 = scalar_select %p181, %s11, 1
        %s183 = smul.addr %s182, 2
        %s184 = smul.addr %s183, 2
        %s185 = scalar_lea.vmem %s0, %s184
      $region36: #{vision_transformer_forward.3} parent=31 // pred_fallthru
        _
    $region32: #{vision_transformer_forward.3} parent=5 // pred_fallthru
      _
    %p186 = scmp.le.s32.totalorder 1, %s11
    %p187 = scmp.lt.s32.totalorder %s11, 3
    %p188 = pnand %p186, %p187
    %p189 = pneg %p188
    // Predicated region
    $region37: #{vision_transformer_forward.3} parent=5 // pred_check
      _
    $region38: #{vision_transformer_forward.3} parent=5 // pred_check_branch
      %191 = sbr.rel (%p188) target = $region40
    $region39: #{vision_transformer_forward.3} parent=5 // pred_region
      %s192 = ssub.s32 %s11, 1
      %p193 = scmp.lt.s32.totalorder %s16, 1
      %s194 = scalar_select %p193, %s16, 1
      %s195 = smul.addr %s194, 2
      %s196 = smul.addr %s195, 2
      %s197 = scalar_lea.vmem %s0, %s196
      %p198 = pneg %p37
      %p199 = pneg %p34
      %p200 = pneg %p58
      %p201 = pneg %p55
      %p202 = pneg %p79
      %p203 = pneg %p76
      %p204 = pneg %p100
      %p205 = pneg %p97
      %p206 = pneg %p121
      %p207 = pneg %p118
      %p208 = pneg %p147
      %p209 = pneg %p144
      %p210 = scmp.lt.s32.totalorder %s16, 1
      %s211 = scalar_select %p210, %s16, 1
      %s212 = smul.addr %s211, 4
      %s213 = scalar_lea.vmem %s5, %s212
      %p214 = scmp.lt.s32.totalorder %s16, 1
      %s215 = scalar_select %p214, %s16, 1
      %s216 = smul.addr %s215, 2
      %s217 = smul.addr %s216, 2
      %s218 = scalar_lea.vmem %s0, %s217
      %p219 = scmp.lt.s32.totalorder %s16, 1
      %s220 = scalar_select %p219, %s16, 1
      %s221 = smul.addr %s220, 4
      %s222 = scalar_lea.vmem %s5, %s221
      %v224 = vld [vmem:[%s218] sm:$0xf]
      %v225 = vld [vmem:[%s1] sm:$0xf]
      %v226 = vld [vmem:[%s1 + $0x4] sm:$0xf]
      %v227 = vld [vmem:[%s1 + $0x8] sm:$0xf]
      %v228 = vld [vmem:[%s1 + $0xc] sm:$0xf]
      %v229 = vld [vmem:[%s1 + $0x10] sm:$0xf]
      %v230 = vld [vmem:[%s1 + $0x14] sm:$0xf]
      %v231 = vld [vmem:[%s1 + $0x18] sm:$0xf]
      %v232 = vld [vmem:[%s1 + $0x1c] sm:$0xf]
      %v233 = vld [vmem:[%s1 + $0x20] sm:$0xf]
      %v234 = vld [vmem:[%s1 + $0x24] sm:$0xf]
      %v235 = vld [vmem:[%s1 + $0x28] sm:$0xf]
      %v236 = vld [vmem:[%s1 + $0x2c] sm:$0xf]
      %v237 = vld [vmem:[%s1 + $0x30] sm:$0xf]
      %v238 = vld [vmem:[%s1 + $0x34] sm:$0xf]
      %v239 = vld [vmem:[%s1 + $0x38] sm:$0xf]
      %v240 = vld [vmem:[%s1 + $0x3c] sm:$0xf]
      %v241 = vld [vmem:[%s1 + $0x40] sm:$0xf]
      %v242 = vld [vmem:[%s1 + $0x44] sm:$0xf]
      %v243 = vld [vmem:[%s1 + $0x48] sm:$0xf]
      %v244 = vld [vmem:[%s1 + $0x4c] sm:$0xf]
      %v245 = vld [vmem:[%s1 + $0x50] sm:$0xf]
      %v246 = vld [vmem:[%s1 + $0x54] sm:$0xf]
      %v247 = vld [vmem:[%s1 + $0x58] sm:$0xf]
      %v248 = vld [vmem:[%s1 + $0x5c] sm:$0xf]
      %v249 = vld [vmem:[%s2] sm:$0x1]
      %v250 = vunpack.c.l.bf16 %v249
      %v251 = vlaneseq
      %v252 = vshrl.u32 %v251, 7
      %v253 = vsub.s32 0, %v252
      %v254 = vrot.slane %v250, %v253
      %v257 = vunpack.c.l.s4 1983009808
      %v258 = vunpack.c.0.s8 %v257
      %v259 = vlaneseq
      %v260 = vshrl.u32 %v259, 7
      %v261 = vsub.s32 %v258, %v260
      %v262 = vrot.slane %v224, %v261
      %v263 = vcombine.high %v262, %v262
      %v289 = vunpack.c.l.b16 %v225
      %v290 = vunpack.c.l.b16 %v226
      %v291 = vunpack.c.l.b16 %v227
      %v292 = vunpack.c.l.b16 %v228
      %v293 = vunpack.c.l.b16 %v229
      %v294 = vunpack.c.l.b16 %v230
      %v295 = vunpack.c.l.b16 %v231
      %v296 = vunpack.c.l.b16 %v232
      %v297 = vunpack.c.l.b16 %v233
      %v298 = vunpack.c.l.b16 %v234
      %v299 = vunpack.c.l.b16 %v235
      %v300 = vunpack.c.l.b16 %v236
      %v301 = vunpack.c.l.b16 %v237
      %v302 = vunpack.c.l.b16 %v238
      %v303 = vunpack.c.l.b16 %v239
      %v304 = vunpack.c.l.b16 %v240
      %v305 = vunpack.c.l.b16 %v241
      %v306 = vunpack.c.l.b16 %v242
      %v307 = vunpack.c.l.b16 %v243
      %v308 = vunpack.c.l.b16 %v244
      %v309 = vunpack.c.l.b16 %v245
      %v310 = vunpack.c.l.b16 %v246
      %v311 = vunpack.c.l.b16 %v247
      %v312 = vunpack.c.l.b16 %v248
      %v313 = vpack.c.b16 %v290, %v289
      %v314 = vpack.c.b16 %v292, %v291
      %v315 = vpack.c.b16 %v294, %v293
      %v316 = vpack.c.b16 %v296, %v295
      %v317 = vpack.c.b16 %v298, %v297
      %v318 = vpack.c.b16 %v300, %v299
      %v319 = vpack.c.b16 %v302, %v301
      %v320 = vpack.c.b16 %v304, %v303
      %v321 = vpack.c.b16 %v306, %v305
      %v322 = vpack.c.b16 %v308, %v307
      %v323 = vpack.c.b16 %v310, %v309
      %v324 = vpack.c.b16 %v312, %v311
      %vm337 = vcmask 523264
      %v339 = vsel %vm337, %v263, 0
      %341 = vmatprep.subr.bf16.mxu0 0
      %342 = vmatpush1.bf16.msra.mxu0 %v313
      %343 = vmatprep.subr.bf16.mxu0 0
      %344 = vmatpush1.bf16.msra.mxu0 %v314
      %345 = vmatprep.subr.bf16.mxu0 0
      %346 = vmatpush1.bf16.msra.mxu0 %v315
      %347 = vmatprep.subr.bf16.mxu0 0
      %348 = vmatpush1.bf16.msra.mxu0 %v316
      %349 = vmatprep.subr.bf16.mxu0 0
      %350 = vmatpush1.bf16.msra.mxu0 %v317
      %351 = vmatprep.subr.bf16.mxu0 0
      %352 = vmatpush1.bf16.msra.mxu0 %v318
      %353 = vmatprep.subr.bf16.mxu0 0
      %354 = vmatpush1.bf16.msra.mxu0 %v319
      %355 = vmatprep.subr.bf16.mxu0 0
      %356 = vmatpush1.bf16.msra.mxu0 %v320
      %357 = vmatprep.subr.bf16.mxu0 0
      %358 = vmatpush1.bf16.msra.mxu0 %v321
      %359 = vmatprep.subr.bf16.mxu0 0
      %360 = vmatpush1.bf16.msra.mxu0 %v322
      %361 = vmatprep.subr.bf16.mxu0 0
      %362 = vmatpush1.bf16.msra.mxu0 %v323
      %363 = vmatprep.subr.bf16.mxu0 0
      %364 = vmatpush1.bf16.msra.mxu0 %v324
      %365 = vmatprep.subr.bf16.mxu0 0
      %366 = vmatpush1.bf16.msra.mxu0 0
      %367 = vmatprep.subr.bf16.mxu0 0
      %368 = vmatpush1.bf16.msra.mxu0 0
      %369 = vmatprep.subr.bf16.mxu0 0
      %370 = vmatpush1.bf16.msra.mxu0 0
      %371 = vmatprep.subr.bf16.mxu0 0
      %372 = vmatpush1.bf16.msra.mxu0 0
      %373 = vmatprep.mubr.bf16.mxu0 %v339
      %374 = vmatmul.mubr.bf16.gmra.mrb[0].mxu0 %v262
      %v375 = vpop.f32.mrb[0].mxu0
      %v376 = vadd.f32 %v254, %v375
      %v377 = vpop.f32.mrb[0].mxu0
      %v378 = vpop.f32.mrb[0].mxu0
      %v379 = vpop.f32.mrb[0].mxu0
      %380 = vdwg.mxu0
      %v381 = vld [vmem:[%s4] sm:$0x7]
      %v382 = vunpack.c.l.bf16 %v381
      %v383 = vld [vmem:[%s3] sm:$0x1]
      %v384 = vunpack.c.l.bf16 %v383
      %v385 = vadd.f32 %v384, %v382
      %v387 = vrot.slane %v382, 1
      %v389 = vadd.f32 %v376, %v387
      %v391 = vrot.slane %v389, 7
      %vm393 = vcmask 1040384
      %v394 = vsel %vm393, %v385, %v391
      %vm395 = vcmask 1044480
      %v396 = vsel %vm395, %v394, 0.0
      %v397 = vpack.c.bf16 %v396, %v396
      %vm398 = vcmask 257024
      %399 = vst.msk [vmem:[%s222] sm:$0xf] %vm398, %v397
      %p400 = scmp.lt.s32.totalorder %s16, 1
      %s401 = scalar_select %p400, %s16, 1
      %s402 = smul.addr %s401, 4
      %s403 = scalar_lea.vmem %s5, %s402
      // Predicated region
      $region41: #{vision_transformer_forward.3} parent=39 // pred_check
        %p404 = pneg %p144
      $region42: #{vision_transformer_forward.3} parent=39 // pred_check_branch
        %406 = sbr.rel (%p404) target = $region44
      $region43: #{vision_transformer_forward.3} parent=39 // pred_region
        _
      $region44: #{vision_transformer_forward.3} parent=39 // pred_fallthru
        _
    $region40: #{vision_transformer_forward.3} parent=5 // pred_fallthru
      _
    %p407 = scmp.le.s32.totalorder 2, %s11
    // Predicated region
    $region45: #{vision_transformer_forward.3} parent=5 // pred_check
      %p408 = pneg %p407
    $region46: #{vision_transformer_forward.3} parent=5 // pred_check_branch
      %410 = sbr.rel (%p408) target = $region48
    $region47: #{vision_transformer_forward.3} parent=5 // pred_region
      %s411 = ssub.s32 %s11, 2
      // Predicated region
      $region49: #{vision_transformer_forward.3} parent=47 // pred_check
        %p412 = pneg %p150
      $region50: #{vision_transformer_forward.3} parent=47 // pred_check_branch
        %414 = sbr.rel (%p412) target = $region52
      $region51: #{vision_transformer_forward.3} parent=47 // pred_region
        %p415 = scmp.lt.s32.totalorder %s17, 1
        %s416 = scalar_select %p415, %s17, 1
        %s417 = smul.addr %s416, 4
        %s418 = scalar_lea.vmem %s5, %s417
      $region52: #{vision_transformer_forward.3} parent=47 // pred_fallthru
        _
    $region48: #{vision_transformer_forward.3} parent=5 // pred_fallthru
      _
  $region6: #{vision_transformer_forward.3} parent=0 // loop_footer
    %s15 = sadd.s32 1, %s11
  $region7: #{vision_transformer_forward.3} parent=0 // loop_footer_branch
    %10 = sbr.rel target = $region3
  $region8: #{vision_transformer_forward.3} parent=0 // loop_exit
    _

// kernel: vision_transformer_forward.5
$region0: #{vision_transformer_forward.5}
  #allocation0 [shape = 'u32[]', space=smem, size = 0x4, offset = 0x4, fixed_abs, tag = 'smem constant byte address 0x4 - core index']
  #allocation1 [shape = 'u32[144,128]{1,0:T(1,128)}', space=vmem, size = 0x12000, scoped, tag = 'internal scratch']
  #allocation2 [shape = 'f32[2,256]{1,0:T(2,128)}', space=vmem, size = 0x800, scoped, tag = 'scratch operand']
  %s0 = inlined_call_operand.vmem [shape: bf16[2,8,32], index: 0, kind: input, shape index: {}]
  %s1 = inlined_call_operand.vmem [shape: bf16[1,32], index: 1, kind: input, shape index: {}]
  %s2 = inlined_call_operand.vmem [shape: bf16[1,32], index: 2, kind: input, shape index: {}]
  %s3 = inlined_call_operand.vmem [shape: bf16[32,128], index: 3, kind: input, shape index: {}]
  %s4 = inlined_call_operand.vmem [shape: bf16[1,128], index: 4, kind: input, shape index: {}]
  %s5 = inlined_call_operand.vmem [shape: bf16[128,256], index: 5, kind: input, shape index: {}]
  %s6 = inlined_call_operand.vmem [shape: bf16[1,256], index: 6, kind: input, shape index: {}]
  %s7 = inlined_call_operand.vmem [shape: bf16[256,768], index: 7, kind: input, shape index: {}]
  %s8 = inlined_call_operand.vmem [shape: bf16[1,768], index: 8, kind: input, shape index: {}]
  %s9 = inlined_call_operand.vmem [shape: f32[2,768], index: 9, kind: output, shape index: {}]
  %s10 = sld [smem:[#allocation0]]
  $region111: #{vision_transformer_forward.5} parent=0
    _
  %s12 = ssub.s32 1, %s10
  %s13 = scalar_select 0, %s12, %s10
  $region1: #{vision_transformer_forward.5} parent=0
    #allocation3 [shape = 'u8[262144]{0}', space=vmem, size = 0x40000, scoped, tag = 'input window, operand 7']
    loop: start=0, step=1, limit=5
    $region2: #{vision_transformer_forward.5} parent=1 // loop_pre_header
      _
    $region3: #{vision_transformer_forward.5} parent=1 // loop_header
      %s15 = sphi 0, %s19
      %p16 = scmp.ge.s32.totalorder %s15, 5
      %s23 = sphi 0, %s23
      %s25 = sphi 0, %s23
      %s26 = sphi 0, %s25
      %s40 = sphi 0, %s26
      %s44 = sphi 0, %s44
      %s46 = sphi 0, %s44
      %s47 = sphi 0, %s46
      %s61 = sphi 0, %s47
      %s65 = sphi 0, %s65
      %s67 = sphi 0, %s65
      %s68 = sphi 0, %s67
      %s82 = sphi 0, %s68
      %s86 = sphi 0, %s86
      %s88 = sphi 0, %s86
      %s89 = sphi 0, %s88
      %s103 = sphi 0, %s89
      %s107 = sphi 0, %s107
      %s109 = sphi 0, %s107
      %s110 = sphi 0, %s109
      %s124 = sphi 0, %s110
      %s128 = sphi 0, %s128
      %s130 = sphi 0, %s128
      %s131 = sphi 0, %s130
      %s145 = sphi 0, %s131
      %s149 = sphi 0, %s149
      %s151 = sphi 0, %s149
      %s152 = sphi 0, %s151
      %s166 = sphi 0, %s152
      %s172 = sphi 0, %s174
      %s175 = sphi 0, %s172
      %s176 = sphi 0, %s175
      %s192 = sphi 0, %s176
      %s198 = sphi 0, %s200
      %s201 = sphi 0, %s198
      %s202 = sphi 0, %s201
      %s218 = sphi 0, %s202
      %s224 = sphi 0, %s226
      %s227 = sphi 0, %s224
      %s228 = sphi 0, %s227
      %s244 = sphi 0, %s228
    $region4: #{vision_transformer_forward.5} parent=1 // loop_header_branch
      %18 = sbr.rel (%p16) target = $region8
    $region5: #{vision_transformer_forward.5} parent=1 // loop_body
      %s20 = ssub.s32 %s15, 1
      %s21 = ssub.s32 %s15, 2
      %s22 = sadd.s32 %s15, 1
      %s24 = sadd.s32 %s23, 1
      %p27 = scmp.eq.s32.totalorder %s15, 2
      %p28 = scmp.ne.s32.totalorder %s23, %s25
      %p29 = scmp.eq.s32.totalorder %s15, 0
      %p30 = por %p28, %p29
      %p31 = scmp.ne.s32.totalorder %s23, %s25
      %p32 = scmp.eq.s32.totalorder %s20, 2
      %p33 = por %p31, %p32
      %p34 = scmp.ne.s32.totalorder %s25, %s26
      %p35 = scmp.eq.s32.totalorder %s20, 0
      %p36 = por %p34, %p35
      %p37 = scmp.ne.s32.totalorder %s25, %s26
      %p38 = scmp.eq.s32.totalorder %s21, 2
      %p39 = por %p37, %p38
      %p41 = scmp.ne.s32.totalorder %s26, %s40
      %p42 = scmp.eq.s32.totalorder %s21, 0
      %p43 = por %p41, %p42
      %s45 = sadd.s32 %s44, 1
      %p48 = scmp.eq.s32.totalorder %s15, 2
      %p49 = scmp.ne.s32.totalorder %s44, %s46
      %p50 = scmp.eq.s32.totalorder %s15, 0
      %p51 = por %p49, %p50
      %p52 = scmp.ne.s32.totalorder %s44, %s46
      %p53 = scmp.eq.s32.totalorder %s20, 2
      %p54 = por %p52, %p53
      %p55 = scmp.ne.s32.totalorder %s46, %s47
      %p56 = scmp.eq.s32.totalorder %s20, 0
      %p57 = por %p55, %p56
      %p58 = scmp.ne.s32.totalorder %s46, %s47
      %p59 = scmp.eq.s32.totalorder %s21, 2
      %p60 = por %p58, %p59
      %p62 = scmp.ne.s32.totalorder %s47, %s61
      %p63 = scmp.eq.s32.totalorder %s21, 0
      %p64 = por %p62, %p63
      %s66 = sadd.s32 %s65, 1
      %p69 = scmp.eq.s32.totalorder %s15, 2
      %p70 = scmp.ne.s32.totalorder %s65, %s67
      %p71 = scmp.eq.s32.totalorder %s15, 0
      %p72 = por %p70, %p71
      %p73 = scmp.ne.s32.totalorder %s65, %s67
      %p74 = scmp.eq.s32.totalorder %s20, 2
      %p75 = por %p73, %p74
      %p76 = scmp.ne.s32.totalorder %s67, %s68
      %p77 = scmp.eq.s32.totalorder %s20, 0
      %p78 = por %p76, %p77
      %p79 = scmp.ne.s32.totalorder %s67, %s68
      %p80 = scmp.eq.s32.totalorder %s21, 2
      %p81 = por %p79, %p80
      %p83 = scmp.ne.s32.totalorder %s68, %s82
      %p84 = scmp.eq.s32.totalorder %s21, 0
      %p85 = por %p83, %p84
      %s87 = sadd.s32 %s86, 1
      %p90 = scmp.eq.s32.totalorder %s15, 2
      %p91 = scmp.ne.s32.totalorder %s86, %s88
      %p92 = scmp.eq.s32.totalorder %s15, 0
      %p93 = por %p91, %p92
      %p94 = scmp.ne.s32.totalorder %s86, %s88
      %p95 = scmp.eq.s32.totalorder %s20, 2
      %p96 = por %p94, %p95
      %p97 = scmp.ne.s32.totalorder %s88, %s89
      %p98 = scmp.eq.s32.totalorder %s20, 0
      %p99 = por %p97, %p98
      %p100 = scmp.ne.s32.totalorder %s88, %s89
      %p101 = scmp.eq.s32.totalorder %s21, 2
      %p102 = por %p100, %p101
      %p104 = scmp.ne.s32.totalorder %s89, %s103
      %p105 = scmp.eq.s32.totalorder %s21, 0
      %p106 = por %p104, %p105
      %s108 = sadd.s32 %s107, 1
      %p111 = scmp.eq.s32.totalorder %s15, 2
      %p112 = scmp.ne.s32.totalorder %s107, %s109
      %p113 = scmp.eq.s32.totalorder %s15, 0
      %p114 = por %p112, %p113
      %p115 = scmp.ne.s32.totalorder %s107, %s109
      %p116 = scmp.eq.s32.totalorder %s20, 2
      %p117 = por %p115, %p116
      %p118 = scmp.ne.s32.totalorder %s109, %s110
      %p119 = scmp.eq.s32.totalorder %s20, 0
      %p120 = por %p118, %p119
      %p121 = scmp.ne.s32.totalorder %s109, %s110
      %p122 = scmp.eq.s32.totalorder %s21, 2
      %p123 = por %p121, %p122
      %p125 = scmp.ne.s32.totalorder %s110, %s124
      %p126 = scmp.eq.s32.totalorder %s21, 0
      %p127 = por %p125, %p126
      %s129 = sadd.s32 %s128, 1
      %p132 = scmp.eq.s32.totalorder %s15, 2
      %p133 = scmp.ne.s32.totalorder %s128, %s130
      %p134 = scmp.eq.s32.totalorder %s15, 0
      %p135 = por %p133, %p134
      %p136 = scmp.ne.s32.totalorder %s128, %s130
      %p137 = scmp.eq.s32.totalorder %s20, 2
      %p138 = por %p136, %p137
      %p139 = scmp.ne.s32.totalorder %s130, %s131
      %p140 = scmp.eq.s32.totalorder %s20, 0
      %p141 = por %p139, %p140
      %p142 = scmp.ne.s32.totalorder %s130, %s131
      %p143 = scmp.eq.s32.totalorder %s21, 2
      %p144 = por %p142, %p143
      %p146 = scmp.ne.s32.totalorder %s131, %s145
      %p147 = scmp.eq.s32.totalorder %s21, 0
      %p148 = por %p146, %p147
      %s150 = sadd.s32 %s149, 1
      %p153 = scmp.eq.s32.totalorder %s15, 2
      %p154 = scmp.ne.s32.totalorder %s149, %s151
      %p155 = scmp.eq.s32.totalorder %s15, 0
      %p156 = por %p154, %p155
      %p157 = scmp.ne.s32.totalorder %s149, %s151
      %p158 = scmp.eq.s32.totalorder %s20, 2
      %p159 = por %p157, %p158
      %p160 = scmp.ne.s32.totalorder %s151, %s152
      %p161 = scmp.eq.s32.totalorder %s20, 0
      %p162 = por %p160, %p161
      %p163 = scmp.ne.s32.totalorder %s151, %s152
      %p164 = scmp.eq.s32.totalorder %s21, 2
      %p165 = por %p163, %p164
      %p167 = scmp.ne.s32.totalorder %s152, %s166
      %p168 = scmp.eq.s32.totalorder %s21, 0
      %p169 = por %p167, %p168
      %s170 = ssub.s32 %s15, %s22
      %p171 = scmp.eq.s32.totalorder %s170, 0
      %s173 = sadd.s32 %s172, 1
      %s174 = scalar_select %p171, %s172, %s173
      %p177 = pneg %p171
      %p178 = scmp.eq.s32.totalorder %s15, 2
      %p179 = por %p177, %p178
      %p180 = scmp.ne.s32.totalorder %s172, %s175
      %p181 = scmp.eq.s32.totalorder %s15, 0
      %p182 = por %p180, %p181
      %p183 = scmp.ne.s32.totalorder %s172, %s175
      %p184 = scmp.eq.s32.totalorder %s20, 2
      %p185 = por %p183, %p184
      %p186 = scmp.ne.s32.totalorder %s175, %s176
      %p187 = scmp.eq.s32.totalorder %s20, 0
      %p188 = por %p186, %p187
      %p189 = scmp.ne.s32.totalorder %s175, %s176
      %p190 = scmp.eq.s32.totalorder %s21, 2
      %p191 = por %p189, %p190
      %p193 = scmp.ne.s32.totalorder %s176, %s192
      %p194 = scmp.eq.s32.totalorder %s21, 0
      %p195 = por %p193, %p194
      %s196 = ssub.s32 %s15, %s22
      %p197 = scmp.eq.s32.totalorder %s196, 0
      %s199 = sadd.s32 %s198, 1
      %s200 = scalar_select %p197, %s198, %s199
      %p203 = pneg %p197
      %p204 = scmp.eq.s32.totalorder %s15, 2
      %p205 = por %p203, %p204
      %p206 = scmp.ne.s32.totalorder %s198, %s201
      %p207 = scmp.eq.s32.totalorder %s15, 0
      %p208 = por %p206, %p207
      %p209 = scmp.ne.s32.totalorder %s198, %s201
      %p210 = scmp.eq.s32.totalorder %s20, 2
      %p211 = por %p209, %p210
      %p212 = scmp.ne.s32.totalorder %s201, %s202
      %p213 = scmp.eq.s32.totalorder %s20, 0
      %p214 = por %p212, %p213
      %p215 = scmp.ne.s32.totalorder %s201, %s202
      %p216 = scmp.eq.s32.totalorder %s21, 2
      %p217 = por %p215, %p216
      %p219 = scmp.ne.s32.totalorder %s202, %s218
      %p220 = scmp.eq.s32.totalorder %s21, 0
      %p221 = por %p219, %p220
      %s222 = ssub.s32 %s15, %s22
      %p223 = scmp.eq.s32.totalorder %s222, 0
      %s225 = sadd.s32 %s224, 1
      %s226 = scalar_select %p223, %s224, %s225
      %p229 = pneg %p223
      %p230 = scmp.eq.s32.totalorder %s15, 2
      %p231 = por %p229, %p230
      %p232 = scmp.ne.s32.totalorder %s224, %s227
      %p233 = scmp.eq.s32.totalorder %s15, 0
      %p234 = por %p232, %p233
      %p235 = scmp.ne.s32.totalorder %s224, %s227
      %p236 = scmp.eq.s32.totalorder %s20, 2
      %p237 = por %p235, %p236
      %p238 = scmp.ne.s32.totalorder %s227, %s228
      %p239 = scmp.eq.s32.totalorder %s20, 0
      %p240 = por %p238, %p239
      %p241 = scmp.ne.s32.totalorder %s227, %s228
      %p242 = scmp.eq.s32.totalorder %s21, 2
      %p243 = por %p241, %p242
      %p245 = scmp.ne.s32.totalorder %s228, %s244
      %p246 = scmp.eq.s32.totalorder %s21, 0
      %p247 = por %p245, %p246
      %p248 = scmp.le.s32.totalorder 1, %s15
      %p249 = scmp.lt.s32.totalorder %s15, 4
      %p250 = pnand %p248, %p249
      %p251 = pneg %p250
      // Predicated region
      $region9: #{vision_transformer_forward.5} parent=5 // pred_check
        _
      $region10: #{vision_transformer_forward.5} parent=5 // pred_check_branch
        %253 = sbr.rel (%p250) target = $region12
      $region11: #{vision_transformer_forward.5} parent=5 // pred_region
        %s254 = ssub.s32 %s15, 1
        // Predicated region
        $region13: #{vision_transformer_forward.5} parent=11 // pred_check
          %p255 = pneg %p36
        $region14: #{vision_transformer_forward.5} parent=11 // pred_check_branch
          %257 = sbr.rel (%p255) target = $region16
        $region15: #{vision_transformer_forward.5} parent=11 // pred_region
          _
        $region16: #{vision_transformer_forward.5} parent=11 // pred_fallthru
          _
        // Predicated region
        $region17: #{vision_transformer_forward.5} parent=11 // pred_check
          %p258 = pneg %p57
        $region18: #{vision_transformer_forward.5} parent=11 // pred_check_branch
          %260 = sbr.rel (%p258) target = $region20
        $region19: #{vision_transformer_forward.5} parent=11 // pred_region
          _
        $region20: #{vision_transformer_forward.5} parent=11 // pred_fallthru
          _
        // Predicated region
        $region21: #{vision_transformer_forward.5} parent=11 // pred_check
          %p261 = pneg %p78
        $region22: #{vision_transformer_forward.5} parent=11 // pred_check_branch
          %263 = sbr.rel (%p261) target = $region24
        $region23: #{vision_transformer_forward.5} parent=11 // pred_region
          _
        $region24: #{vision_transformer_forward.5} parent=11 // pred_fallthru
          _
        // Predicated region
        $region25: #{vision_transformer_forward.5} parent=11 // pred_check
          %p264 = pneg %p99
        $region26: #{vision_transformer_forward.5} parent=11 // pred_check_branch
          %266 = sbr.rel (%p264) target = $region28
        $region27: #{vision_transformer_forward.5} parent=11 // pred_region
          _
        $region28: #{vision_transformer_forward.5} parent=11 // pred_fallthru
          _
        // Predicated region
        $region29: #{vision_transformer_forward.5} parent=11 // pred_check
          %p267 = pneg %p120
        $region30: #{vision_transformer_forward.5} parent=11 // pred_check_branch
          %269 = sbr.rel (%p267) target = $region32
        $region31: #{vision_transformer_forward.5} parent=11 // pred_region
          _
        $region32: #{vision_transformer_forward.5} parent=11 // pred_fallthru
          _
        // Predicated region
        $region33: #{vision_transformer_forward.5} parent=11 // pred_check
          %p270 = pneg %p141
        $region34: #{vision_transformer_forward.5} parent=11 // pred_check_branch
          %272 = sbr.rel (%p270) target = $region36
        $region35: #{vision_transformer_forward.5} parent=11 // pred_region
          _
        $region36: #{vision_transformer_forward.5} parent=11 // pred_fallthru
          _
        // Predicated region
        $region37: #{vision_transformer_forward.5} parent=11 // pred_check
          %p273 = pneg %p162
        $region38: #{vision_transformer_forward.5} parent=11 // pred_check_branch
          %275 = sbr.rel (%p273) target = $region40
        $region39: #{vision_transformer_forward.5} parent=11 // pred_region
          _
        $region40: #{vision_transformer_forward.5} parent=11 // pred_fallthru
          _
      $region12: #{vision_transformer_forward.5} parent=5 // pred_fallthru
        _
      %p276 = scmp.lt.s32.totalorder %s15, 3
      // Predicated region
      $region41: #{vision_transformer_forward.5} parent=5 // pred_check
        %p277 = pneg %p276
      $region42: #{vision_transformer_forward.5} parent=5 // pred_check_branch
        %279 = sbr.rel (%p277) target = $region44
      $region43: #{vision_transformer_forward.5} parent=5 // pred_region
        // Predicated region
        $region45: #{vision_transformer_forward.5} parent=43 // pred_check
          %p280 = pneg %p182
        $region46: #{vision_transformer_forward.5} parent=43 // pred_check_branch
          %282 = sbr.rel (%p280) target = $region48
        $region47: #{vision_transformer_forward.5} parent=43 // pred_region
          %s283 = sand.u32 %s172, 1
          %s284 = sand.u32 %s172, 1
          %s285 = smul.addr %s284, 256
          %s286 = scalar_lea.vmem [#allocation3], %s285
          %s287 = smul.u32 2, %s15
          %s288 = smul.addr %s287, 4
          %s289 = scalar_lea.vmem %s7, %s288
          // Predicated region
          $region49: #{vision_transformer_forward.5} parent=47 // pred_check
            _
          $region50: #{vision_transformer_forward.5} parent=47 // pred_check_branch
            %291 = sbr.rel (0) target = $region52
          $region51: #{vision_transformer_forward.5} parent=47 // pred_region
            // Predicated region
            $region53: #{vision_transformer_forward.5} parent=51 // pred_check
              _
            $region54: #{vision_transformer_forward.5} parent=51 // pred_check_branch
              %293 = sbr.rel (0) target = $region56
            $region55: #{vision_transformer_forward.5} parent=51 // pred_region
              // Predicated region
              $region68: #{vision_transformer_forward.5} parent=55 // pred_check
                _
              $region69: #{vision_transformer_forward.5} parent=55 // pred_check_branch
                %370 = sbr.rel (0) target = $region71
              $region70: #{vision_transformer_forward.5} parent=55 // pred_region
                loop: start=0, step=1, limit=1
                $region72: #{vision_transformer_forward.5} parent=70 // loop_pre_header
                  _
                $region73: #{vision_transformer_forward.5} parent=70 // loop_header
                  %s372 = sphi 0, %s376
                  %p373 = scmp.ge.s32.totalorder %s372, 1
                  %s377 = sphi %s289, %s289
                  %s378 = sphi %s286, %s286
                $region74: #{vision_transformer_forward.5} parent=70 // loop_header_branch
                  %375 = sbr.rel (%p373) target = $region78
                $region75: #{vision_transformer_forward.5} parent=70 // loop_body
                  %v379 = vld [vmem:[%s377] sm:$0xff]
                  %380 = vst [vmem:[%s378] sm:$0xff] %v379
                  %v381 = vld [vmem:[%s377 + $0x18] sm:$0xff]
                  %382 = vst [vmem:[%s378 + $0x8] sm:$0xff] %v381
                  %v383 = vld [vmem:[%s377 + $0x30] sm:$0xff]
                  %384 = vst [vmem:[%s378 + $0x10] sm:$0xff] %v383
                  %v385 = vld [vmem:[%s377 + $0x48] sm:$0xff]
                  %386 = vst [vmem:[%s378 + $0x18] sm:$0xff] %v385
                  %v387 = vld [vmem:[%s377 + $0x60] sm:$0xff]
                  %388 = vst [vmem:[%s378 + $0x20] sm:$0xff] %v387
                  %v389 = vld [vmem:[%s377 + $0x78] sm:$0xff]
                  %390 = vst [vmem:[%s378 + $0x28] sm:$0xff] %v389
                  %v391 = vld [vmem:[%s377 + $0x90] sm:$0xff]
                  %392 = vst [vmem:[%s378 + $0x30] sm:$0xff] %v391
                  %v393 = vld [vmem:[%s377 + $0xa8] sm:$0xff]
                  %394 = vst [vmem:[%s378 + $0x38] sm:$0xff] %v393
                  %v395 = vld [vmem:[%s377 + $0xc0] sm:$0xff]
                  %396 = vst [vmem:[%s378 + $0x40] sm:$0xff] %v395
                  %v397 = vld [vmem:[%s377 + $0xd8] sm:$0xff]
                  %398 = vst [vmem:[%s378 + $0x48] sm:$0xff] %v397
                  %v399 = vld [vmem:[%s377 + $0xf0] sm:$0xff]
                  %400 = vst [vmem:[%s378 + $0x50] sm:$0xff] %v399
                  %v401 = vld [vmem:[%s377 + $0x108] sm:$0xff]
                  %402 = vst [vmem:[%s378 + $0x58] sm:$0xff] %v401
                  %v403 = vld [vmem:[%s377 + $0x120] sm:$0xff]
                  %404 = vst [vmem:[%s378 + $0x60] sm:$0xff] %v403
                  %v405 = vld [vmem:[%s377 + $0x138] sm:$0xff]
                  %406 = vst [vmem:[%s378 + $0x68] sm:$0xff] %v405
                  %v407 = vld [vmem:[%s377 + $0x150] sm:$0xff]
                  %408 = vst [vmem:[%s378 + $0x70] sm:$0xff] %v407
                  %v409 = vld [vmem:[%s377 + $0x168] sm:$0xff]
                  %410 = vst [vmem:[%s378 + $0x78] sm:$0xff] %v409
                  %v411 = vld [vmem:[%s377 + $0x180] sm:$0xff]
                  %412 = vst [vmem:[%s378 + $0x80] sm:$0xff] %v411
                  %v413 = vld [vmem:[%s377 + $0x198] sm:$0xff]
                  %414 = vst [vmem:[%s378 + $0x88] sm:$0xff] %v413
                  %v415 = vld [vmem:[%s377 + $0x1b0] sm:$0xff]
                  %416 = vst [vmem:[%s378 + $0x90] sm:$0xff] %v415
                  %v417 = vld [vmem:[%s377 + $0x1c8] sm:$0xff]
                  %418 = vst [vmem:[%s378 + $0x98] sm:$0xff] %v417
                  %v419 = vld [vmem:[%s377 + $0x1e0] sm:$0xff]
                  %420 = vst [vmem:[%s378 + $0xa0] sm:$0xff] %v419
                  %v421 = vld [vmem:[%s377 + $0x1f8] sm:$0xff]
                  %422 = vst [vmem:[%s378 + $0xa8] sm:$0xff] %v421
                  %v423 = vld [vmem:[%s377 + $0x210] sm:$0xff]
                  %424 = vst [vmem:[%s378 + $0xb0] sm:$0xff] %v423
                  %v425 = vld [vmem:[%s377 + $0x228] sm:$0xff]
                  %426 = vst [vmem:[%s378 + $0xb8] sm:$0xff] %v425
                  %v427 = vld [vmem:[%s377 + $0x240] sm:$0xff]
                  %428 = vst [vmem:[%s378 + $0xc0] sm:$0xff] %v427
                  %v429 = vld [vmem:[%s377 + $0x258] sm:$0xff]
                  %430 = vst [vmem:[%s378 + $0xc8] sm:$0xff] %v429
                  %v431 = vld [vmem:[%s377 + $0x270] sm:$0xff]
                  %432 = vst [vmem:[%s378 + $0xd0] sm:$0xff] %v431
                  %v433 = vld [vmem:[%s377 + $0x288] sm:$0xff]
                  %434 = vst [vmem:[%s378 + $0xd8] sm:$0xff] %v433
                  %v435 = vld [vmem:[%s377 + $0x2a0] sm:$0xff]
                  %436 = vst [vmem:[%s378 + $0xe0] sm:$0xff] %v435
                  %v437 = vld [vmem:[%s377 + $0x2b8] sm:$0xff]
                  %438 = vst [vmem:[%s378 + $0xe8] sm:$0xff] %v437
                  %v439 = vld [vmem:[%s377 + $0x2d0] sm:$0xff]
                  %440 = vst [vmem:[%s378 + $0xf0] sm:$0xff] %v439
                  %v441 = vld [vmem:[%s377 + $0x2e8] sm:$0xff]
                  %442 = vst [vmem:[%s378 + $0xf8] sm:$0xff] %v441
                $region76: #{vision_transformer_forward.5} parent=70 // loop_footer
                  %s376 = sadd.s32 1, %s372
                $region77: #{vision_transformer_forward.5} parent=70 // loop_footer_branch
                  %371 = sbr.rel target = $region73
                $region78: #{vision_transformer_forward.5} parent=70 // loop_exit
                  _
              $region71: #{vision_transformer_forward.5} parent=55 // pred_fallthru
                _
              // Predicated region
              $region79: #{vision_transformer_forward.5} parent=55 // pred_check
                _
              $region80: #{vision_transformer_forward.5} parent=55 // pred_check_branch
                %444 = sbr.rel target = $region82
              $region81: #{vision_transformer_forward.5} parent=55 // pred_region
                _
              $region82: #{vision_transformer_forward.5} parent=55 // pred_fallthru
                _
            $region56: #{vision_transformer_forward.5} parent=51 // pred_fallthru
              _
            // Predicated region
            $region57: #{vision_transformer_forward.5} parent=51 // pred_check
              _
            $region58: #{vision_transformer_forward.5} parent=51 // pred_check_branch
              %295 = sbr.rel target = $region60
            $region59: #{vision_transformer_forward.5} parent=51 // pred_region
              loop: start=0, step=1, limit=1
              $region61: #{vision_transformer_forward.5} parent=59 // loop_pre_header
                _
              $region62: #{vision_transformer_forward.5} parent=59 // loop_header
                %s298 = sphi 0, %s302
                %p299 = scmp.ge.s32.totalorder %s298, 1
                %s303 = sphi %s289, %s289
                %s304 = sphi %s286, %s286
              $region63: #{vision_transformer_forward.5} parent=59 // loop_header_branch
                %301 = sbr.rel (%p299) target = $region67
              $region64: #{vision_transformer_forward.5} parent=59 // loop_body
                %v305 = vld [vmem:[%s303] sm:$0xff]
                %306 = vst [vmem:[%s304] sm:$0xff] %v305
                %v307 = vld [vmem:[%s303 + $0x18] sm:$0xff]
                %308 = vst [vmem:[%s304 + $0x8] sm:$0xff] %v307
                %v309 = vld [vmem:[%s303 + $0x30] sm:$0xff]
                %310 = vst [vmem:[%s304 + $0x10] sm:$0xff] %v309
                %v311 = vld [vmem:[%s303 + $0x48] sm:$0xff]
                %312 = vst [vmem:[%s304 + $0x18] sm:$0xff] %v311
                %v313 = vld [vmem:[%s303 + $0x60] sm:$0xff]
                %314 = vst [vmem:[%s304 + $0x20] sm:$0xff] %v313
                %v315 = vld [vmem:[%s303 + $0x78] sm:$0xff]
                %316 = vst [vmem:[%s304 + $0x28] sm:$0xff] %v315
                %v317 = vld [vmem:[%s303 + $0x90] sm:$0xff]
                %318 = vst [vmem:[%s304 + $0x30] sm:$0xff] %v317
                %v319 = vld [vmem:[%s303 + $0xa8] sm:$0xff]
                %320 = vst [vmem:[%s304 + $0x38] sm:$0xff] %v319
                %v321 = vld [vmem:[%s303 + $0xc0] sm:$0xff]
                %322 = vst [vmem:[%s304 + $0x40] sm:$0xff] %v321
                %v323 = vld [vmem:[%s303 + $0xd8] sm:$0xff]
                %324 = vst [vmem:[%s304 + $0x48] sm:$0xff] %v323
                %v325 = vld [vmem:[%s303 + $0xf0] sm:$0xff]
                %326 = vst [vmem:[%s304 + $0x50] sm:$0xff] %v325
                %v327 = vld [vmem:[%s303 + $0x108] sm:$0xff]
                %328 = vst [vmem:[%s304 + $0x58] sm:$0xff] %v327
                %v329 = vld [vmem:[%s303 + $0x120] sm:$0xff]
                %330 = vst [vmem:[%s304 + $0x60] sm:$0xff] %v329
                %v331 = vld [vmem:[%s303 + $0x138] sm:$0xff]
                %332 = vst [vmem:[%s304 + $0x68] sm:$0xff] %v331
                %v333 = vld [vmem:[%s303 + $0x150] sm:$0xff]
                %334 = vst [vmem:[%s304 + $0x70] sm:$0xff] %v333
                %v335 = vld [vmem:[%s303 + $0x168] sm:$0xff]
                %336 = vst [vmem:[%s304 + $0x78] sm:$0xff] %v335
                %v337 = vld [vmem:[%s303 + $0x180] sm:$0xff]
                %338 = vst [vmem:[%s304 + $0x80] sm:$0xff] %v337
                %v339 = vld [vmem:[%s303 + $0x198] sm:$0xff]
                %340 = vst [vmem:[%s304 + $0x88] sm:$0xff] %v339
                %v341 = vld [vmem:[%s303 + $0x1b0] sm:$0xff]
                %342 = vst [vmem:[%s304 + $0x90] sm:$0xff] %v341
                %v343 = vld [vmem:[%s303 + $0x1c8] sm:$0xff]
                %344 = vst [vmem:[%s304 + $0x98] sm:$0xff] %v343
                %v345 = vld [vmem:[%s303 + $0x1e0] sm:$0xff]
                %346 = vst [vmem:[%s304 + $0xa0] sm:$0xff] %v345
                %v347 = vld [vmem:[%s303 + $0x1f8] sm:$0xff]
                %348 = vst [vmem:[%s304 + $0xa8] sm:$0xff] %v347
                %v349 = vld [vmem:[%s303 + $0x210] sm:$0xff]
                %350 = vst [vmem:[%s304 + $0xb0] sm:$0xff] %v349
                %v351 = vld [vmem:[%s303 + $0x228] sm:$0xff]
                %352 = vst [vmem:[%s304 + $0xb8] sm:$0xff] %v351
                %v353 = vld [vmem:[%s303 + $0x240] sm:$0xff]
                %354 = vst [vmem:[%s304 + $0xc0] sm:$0xff] %v353
                %v355 = vld [vmem:[%s303 + $0x258] sm:$0xff]
                %356 = vst [vmem:[%s304 + $0xc8] sm:$0xff] %v355
                %v357 = vld [vmem:[%s303 + $0x270] sm:$0xff]
                %358 = vst [vmem:[%s304 + $0xd0] sm:$0xff] %v357
                %v359 = vld [vmem:[%s303 + $0x288] sm:$0xff]
                %360 = vst [vmem:[%s304 + $0xd8] sm:$0xff] %v359
                %v361 = vld [vmem:[%s303 + $0x2a0] sm:$0xff]
                %362 = vst [vmem:[%s304 + $0xe0] sm:$0xff] %v361
                %v363 = vld [vmem:[%s303 + $0x2b8] sm:$0xff]
                %364 = vst [vmem:[%s304 + $0xe8] sm:$0xff] %v363
                %v365 = vld [vmem:[%s303 + $0x2d0] sm:$0xff]
                %366 = vst [vmem:[%s304 + $0xf0] sm:$0xff] %v365
                %v367 = vld [vmem:[%s303 + $0x2e8] sm:$0xff]
                %368 = vst [vmem:[%s304 + $0xf8] sm:$0xff] %v367
              $region65: #{vision_transformer_forward.5} parent=59 // loop_footer
                %s302 = sadd.s32 1, %s298
              $region66: #{vision_transformer_forward.5} parent=59 // loop_footer_branch
                %297 = sbr.rel target = $region62
              $region67: #{vision_transformer_forward.5} parent=59 // loop_exit
                _
            $region60: #{vision_transformer_forward.5} parent=51 // pred_fallthru
              _
          $region52: #{vision_transformer_forward.5} parent=47 // pred_fallthru
            _
          %445 = vnop
        $region48: #{vision_transformer_forward.5} parent=43 // pred_fallthru
          _
        // Predicated region
        $region83: #{vision_transformer_forward.5} parent=43 // pred_check
          %p446 = pneg %p208
        $region84: #{vision_transformer_forward.5} parent=43 // pred_check_branch
          %448 = sbr.rel (%p446) target = $region86
        $region85: #{vision_transformer_forward.5} parent=43 // pred_region
          %s449 = smul.u32 2, %s15
          %p450 = scmp.lt.s32.totalorder %s449, 5
          %s451 = scalar_select %p450, %s449, 5
          %s452 = scalar_lea.vmem %s8, %s451
          %s453 = smul.u32 2, %s15
        $region86: #{vision_transformer_forward.5} parent=43 // pred_fallthru
          _
      $region44: #{vision_transformer_forward.5} parent=5 // pred_fallthru
        _
      %p454 = scmp.le.s32.totalorder 1, %s15
      %p455 = scmp.lt.s32.totalorder %s15, 4
      %p456 = pnand %p454, %p455
      %p457 = pneg %p456
      // Predicated region
      $region87: #{vision_transformer_forward.5} parent=5 // pred_check
        _
      $region88: #{vision_transformer_forward.5} parent=5 // pred_check_branch
        %459 = sbr.rel (%p456) target = $region90
      $region89: #{vision_transformer_forward.5} parent=5 // pred_region
        %s460 = ssub.s32 %s15, 1
        %s461 = sand.u32 %s175, 1
        %s462 = sand.u32 %s175, 1
        %s463 = smul.addr %s462, 256
        %s464 = scalar_lea.vmem [#allocation3], %s463
        // Predicated region
        $region91: #{vision_transformer_forward.5} parent=89 // pred_check
          %p465 = pneg %p188
        $region92: #{vision_transformer_forward.5} parent=89 // pred_check_branch
          %467 = sbr.rel (%p465) target = $region94
        $region93: #{vision_transformer_forward.5} parent=89 // pred_region
          _
        $region94: #{vision_transformer_forward.5} parent=89 // pred_fallthru
          _
        %p468 = pneg %p36
        %p469 = pneg %p33
        %p470 = pneg %p57
        %p471 = pneg %p54
        %p472 = pneg %p78
        %p473 = pneg %p75
        %p474 = pneg %p99
        %p475 = pneg %p96
        %p476 = pneg %p120
        %p477 = pneg %p117
        %p478 = pneg %p141
        %p479 = pneg %p138
        %p480 = pneg %p162
        %p481 = pneg %p159
        %s482 = sand.u32 %s175, 1
        %s483 = sand.u32 %s175, 1
        %s484 = smul.addr %s483, 256
        %s485 = scalar_lea.vmem [#allocation3], %s484
        %p486 = pneg %p188
        %p487 = pneg %p185
        %s488 = smul.u32 2, %s20
        %p489 = scmp.lt.s32.totalorder %s488, 5
        %s490 = scalar_select %p489, %s488, 5
        %s491 = scalar_lea.vmem %s8, %s490
        %p492 = pneg %p214
        %p493 = pneg %p211
        %p494 = pneg %p240
        %p495 = pneg %p237
        %s496 = smul.u32 2, %s20
        %p497 = scmp.lt.s32.totalorder %s496, 5
        %s498 = scalar_select %p497, %s496, 5
        %s499 = smul.addr %s498, 2
        %s500 = scalar_lea.vmem %s9, %s499
        %s501 = smul.u32 2, %s20
        %s502 = smul.u32 2, %s20
        %p503 = scmp.lt.s32.totalorder %s502, 5
        %s504 = scalar_select %p503, %s502, 5
        %s505 = scalar_lea.vmem %s8, %s504
        %s506 = smul.u32 2, %s20
        %s507 = smul.u32 2, %s20
        %p508 = scmp.lt.s32.totalorder %s507, 5
        %s509 = scalar_select %p508, %s507, 5
        %s510 = smul.addr %s509, 2
        %s511 = scalar_lea.vmem %s9, %s510
        %s512 = smul.u32 2, %s20
        %p514 = scmp.eq.s32.totalorder %s20, 0
        // Predicated region
        $region95: #{vision_transformer_forward.5} parent=89 // pred_check
          %p515 = pneg %p514
        $region96: #{vision_transformer_forward.5} parent=89 // pred_check_branch
          %517 = sbr.rel (%p515) target = $region98
        $region97: #{vision_transformer_forward.5} parent=89 // pred_region
          %v518 = vld [vmem:[%s0] sm:$0xf]
          %v519 = vld [vmem:[%s0 + $0x4] sm:$0xf]
          %v520 = vunpack.c.l.bf16 %v518
          %v521 = vunpack.c.l.bf16 %v519
          %v522 = vld [vmem:[%s1] sm:$0x1]
          %v523 = vld [vmem:[%s2] sm:$0x1]
          %v526 = vrot.slane %v521, 7
          %vm527 = vcmask 1041409
          %v528 = vsel %vm527, %v526, %v520
          %vm530 = vcmask 254976
          %v531 = vsel %vm530, %v528, 0.0
          %532 = vadd.xlane.f32.xlu0 %v531
          %v533 = vpop.xlane.xlu0 %532
          %v534 = vrcp.pop 32.0
          %v535 = vmul.f32 %v533, %v534
          %v537 = vrot.slane %v535, 1
          %v540 = vsub.f32 %v520, %v535
          %v541 = vsub.f32 %v521, %v537
          %v542 = vmul.f32 %v540, %v540
          %v543 = vmul.f32 %v541, %v541
          %v546 = vrot.slane %v543, 7
          %v547 = vsel %vm527, %v546, %v542
          %v549 = vsel %vm530, %v547, 0.0
          %550 = vadd.xlane.f32.xlu0 %v549
          %v551 = vpop.xlane.xlu0 %550
          %v552 = vmul.f32 %v551, %v534
          %v553 = vadd.f32 %v552, 1e-06
          %v554 = vrsqrt.pop %v553
          %v556 = vrot.slane %v554, 1
          %v559 = vmul.f32 %v540, %v554
          %v560 = vmul.f32 %v541, %v556
          %v561 = vunpack.c.l.bf16 %v522
          %v562 = vlaneseq
          %v563 = vshrl.u32 %v562, 7
          %v564 = vsub.s32 0, %v563
          %v565 = vrot.slane %v561, %v564
          %v566 = vmul.f32 %v559, %v565
          %v567 = vmul.f32 %v560, %v565
          %v568 = vunpack.c.l.bf16 %v523
          %v569 = vlaneseq
          %v570 = vshrl.u32 %v569, 7
          %v571 = vsub.s32 0, %v570
          %v572 = vrot.slane %v568, %v571
          %v573 = vadd.f32 %v566, %v572
          %v574 = vadd.f32 %v567, %v572
          %v575 = vpack.c.bf16 %v573, %v573
          %v576 = vpack.c.bf16 %v574, %v574
          %v577 = vld [vmem:[%s3] sm:$0xf]
          %v578 = vld [vmem:[%s3 + $0x4] sm:$0xf]
          %v579 = vld [vmem:[%s3 + $0x8] sm:$0xf]
          %v580 = vld [vmem:[%s3 + $0xc] sm:$0xf]
          %v581 = vld [vmem:[%s4] sm:$0x1]
          %v582 = vunpack.c.l.bf16 %v581
          %v583 = vlaneseq
          %v584 = vshrl.u32 %v583, 7
          %v585 = vsub.s32 0, %v584
          %v586 = vrot.slane %v582, %v585
          %v589 = vunpack.c.l.b16 %v575
          %v590 = vunpack.c.l.b16 %v576
          %v591 = vrot.slane %v590, 7
          %v592 = vsel %vm527, %v591, %v589
          %v593 = vpack.c.b16 %v592, %v592
          %v598 = vunpack.c.l.b16 %v577
          %v599 = vunpack.c.l.b16 %v578
          %v600 = vunpack.c.l.b16 %v579
          %v601 = vunpack.c.l.b16 %v580
          %v602 = vpack.c.b16 %v599, %v598
          %v603 = vpack.c.b16 %v601, %v600
          %vm606 = vcmask 261120
          %v608 = vsel %vm606, %v593, 0
          %610 = vmatprep.subr.bf16.mxu0 0
          %611 = vmatpush1.bf16.msra.mxu0 %v602
          %612 = vmatprep.subr.bf16.mxu0 0
          %613 = vmatpush1.bf16.msra.mxu0 %v603
          %614 = vmatprep.subr.bf16.mxu0 0
          %615 = vmatpush1.bf16.msra.mxu0 0
          %616 = vmatprep.subr.bf16.mxu0 0
          %617 = vmatpush1.bf16.msra.mxu0 0
          %618 = vmatprep.subr.bf16.mxu0 0
          %619 = vmatpush1.bf16.msra.mxu0 0
          %620 = vmatprep.subr.bf16.mxu0 0
          %621 = vmatpush1.bf16.msra.mxu0 0
          %622 = vmatprep.subr.bf16.mxu0 0
          %623 = vmatpush1.bf16.msra.mxu0 0
          %624 = vmatprep.subr.bf16.mxu0 0
          %625 = vmatpush1.bf16.msra.mxu0 0
          %626 = vmatprep.subr.bf16.mxu0 0
          %627 = vmatpush1.bf16.msra.mxu0 0
          %628 = vmatprep.subr.bf16.mxu0 0
          %629 = vmatpush1.bf16.msra.mxu0 0
          %630 = vmatprep.subr.bf16.mxu0 0
          %631 = vmatpush1.bf16.msra.mxu0 0
          %632 = vmatprep.subr.bf16.mxu0 0
          %633 = vmatpush1.bf16.msra.mxu0 0
          %634 = vmatprep.subr.bf16.mxu0 0
          %635 = vmatpush1.bf16.msra.mxu0 0
          %636 = vmatprep.subr.bf16.mxu0 0
          %637 = vmatpush1.bf16.msra.mxu0 0
          %638 = vmatprep.subr.bf16.mxu0 0
          %639 = vmatpush1.bf16.msra.mxu0 0
          %640 = vmatprep.subr.bf16.mxu0 0
          %641 = vmatpush1.bf16.msra.mxu0 0
          %642 = vmatprep.mubr.bf16.mxu0 0
          %643 = vmatmul.mubr.bf16.gmra.mrb[0].mxu0 %v608
          %v644 = vpop.f32.mrb[0].mxu0
          %v645 = vadd.f32 %v586, %v644
          %v646 = vpop.f32.mrb[0].mxu0
          %v647 = vpop.f32.mrb[0].mxu0
          %v648 = vpop.f32.mrb[0].mxu0
          %649 = vdwg.mxu0
          %v650 = vpack.c.bf16 %v645, %v645
          %v651 = vld [vmem:[%s5] sm:$0xff]
          %v652 = vld [vmem:[%s5 + $0x8] sm:$0xff]
          %v653 = vld [vmem:[%s5 + $0x10] sm:$0xff]
          %v654 = vld [vmem:[%s5 + $0x18] sm:$0xff]
          %v655 = vld [vmem:[%s5 + $0x20] sm:$0xff]
          %v656 = vld [vmem:[%s5 + $0x28] sm:$0xff]
          %v657 = vld [vmem:[%s5 + $0x30] sm:$0xff]
          %v658 = vld [vmem:[%s5 + $0x38] sm:$0xff]
          %v659 = vld [vmem:[%s5 + $0x40] sm:$0xff]
          %v660 = vld [vmem:[%s5 + $0x48] sm:$0xff]
          %v661 = vld [vmem:[%s5 + $0x50] sm:$0xff]
          %v662 = vld [vmem:[%s5 + $0x58] sm:$0xff]
          %v663 = vld [vmem:[%s5 + $0x60] sm:$0xff]
          %v664 = vld [vmem:[%s5 + $0x68] sm:$0xff]
          %v665 = vld [vmem:[%s5 + $0x70] sm:$0xff]
          %v666 = vld [vmem:[%s5 + $0x78] sm:$0xff]
          %v667 = vld [vmem:[%s6] sm:$0x3]
          %v668 = vunpack.c.l.bf16 %v667
          %v670 = vlaneseq
          %v671 = vshrl.u32 %v670, 7
          %v672 = vsub.s32 0, %v671
          %v673 = vrot.slane %v668, %v672
          %v674 = vlaneseq
          %v675 = vshrl.u32 %v674, 7
          %v676 = vsub.s32 2, %v675
          %v677 = vrot.slane %v668, %v676
          %v680 = vlaneseq
          %v681 = vshrl.u32 %v680, 7
          %v682 = vsub.s32 0, %v681
          %v683 = vrot.slane %v673, %v682
          %v684 = vlaneseq
          %v685 = vshrl.u32 %v684, 7
          %v686 = vsub.s32 0, %v685
          %v687 = vrot.slane %v677, %v686
          %v704 = vunpack.c.l.b16 %v651
          %v705 = vunpack.c.h.b16 %v651
          %v706 = vunpack.c.l.b16 %v652
          %v707 = vunpack.c.h.b16 %v652
          %v708 = vunpack.c.l.b16 %v653
          %v709 = vunpack.c.h.b16 %v653
          %v710 = vunpack.c.l.b16 %v654
          %v711 = vunpack.c.h.b16 %v654
          %v712 = vunpack.c.l.b16 %v655
          %v713 = vunpack.c.h.b16 %v655
          %v714 = vunpack.c.l.b16 %v656
          %v715 = vunpack.c.h.b16 %v656
          %v716 = vunpack.c.l.b16 %v657
          %v717 = vunpack.c.h.b16 %v657
          %v718 = vunpack.c.l.b16 %v658
          %v719 = vunpack.c.h.b16 %v658
          %v720 = vunpack.c.l.b16 %v659
          %v721 = vunpack.c.h.b16 %v659
          %v722 = vunpack.c.l.b16 %v660
          %v723 = vunpack.c.h.b16 %v660
          %v724 = vunpack.c.l.b16 %v661
          %v725 = vunpack.c.h.b16 %v661
          %v726 = vunpack.c.l.b16 %v662
          %v727 = vunpack.c.h.b16 %v662
          %v728 = vunpack.c.l.b16 %v663
          %v729 = vunpack.c.h.b16 %v663
          %v730 = vunpack.c.l.b16 %v664
          %v731 = vunpack.c.h.b16 %v664
          %v732 = vunpack.c.l.b16 %v665
          %v733 = vunpack.c.h.b16 %v665
          %v734 = vunpack.c.l.b16 %v666
          %v735 = vunpack.c.h.b16 %v666
          %v736 = vpack.c.b16 %v706, %v704
          %v737 = vpack.c.b16 %v707, %v705
          %v738 = vpack.c.b16 %v710, %v708
          %v739 = vpack.c.b16 %v711, %v709
          %v740 = vpack.c.b16 %v714, %v712
          %v741 = vpack.c.b16 %v715, %v713
          %v742 = vpack.c.b16 %v718, %v716
          %v743 = vpack.c.b16 %v719, %v717
          %v744 = vpack.c.b16 %v722, %v720
          %v745 = vpack.c.b16 %v723, %v721
          %v746 = vpack.c.b16 %v726, %v724
          %v747 = vpack.c.b16 %v727, %v725
          %v748 = vpack.c.b16 %v730, %v728
          %v749 = vpack.c.b16 %v731, %v729
          %v750 = vpack.c.b16 %v734, %v732
          %v751 = vpack.c.b16 %v735, %v733
          %768 = vmatprep.subr.bf16.mxu0 %v737
          %769 = vmatpush1.bf16.msra.mxu0 %v736
          %770 = vmatprep.subr.bf16.mxu0 %v739
          %771 = vmatpush1.bf16.msra.mxu0 %v738
          %772 = vmatprep.subr.bf16.mxu0 %v741
          %773 = vmatpush1.bf16.msra.mxu0 %v740
          %774 = vmatprep.subr.bf16.mxu0 %v743
          %775 = vmatpush1.bf16.msra.mxu0 %v742
          %776 = vmatprep.subr.bf16.mxu0 %v745
          %777 = vmatpush1.bf16.msra.mxu0 %v744
          %778 = vmatprep.subr.bf16.mxu0 %v747
          %779 = vmatpush1.bf16.msra.mxu0 %v746
          %780 = vmatprep.subr.bf16.mxu0 %v749
          %781 = vmatpush1.bf16.msra.mxu0 %v748
          %782 = vmatprep.subr.bf16.mxu0 %v751
          %783 = vmatpush1.bf16.msra.mxu0 %v750
          %784 = vmatprep.subr.bf16.mxu0 0
          %785 = vmatpush1.bf16.msra.mxu0 0
          %786 = vmatprep.subr.bf16.mxu0 0
          %787 = vmatpush1.bf16.msra.mxu0 0
          %788 = vmatprep.subr.bf16.mxu0 0
          %789 = vmatpush1.bf16.msra.mxu0 0
          %790 = vmatprep.subr.bf16.mxu0 0
          %791 = vmatpush1.bf16.msra.mxu0 0
          %792 = vmatprep.subr.bf16.mxu0 0
          %793 = vmatpush1.bf16.msra.mxu0 0
          %794 = vmatprep.subr.bf16.mxu0 0
          %795 = vmatpush1.bf16.msra.mxu0 0
          %796 = vmatprep.subr.bf16.mxu0 0
          %797 = vmatpush1.bf16.msra.mxu0 0
          %798 = vmatprep.subr.bf16.mxu0 0
          %799 = vmatpush1.bf16.msra.mxu0 0
          %800 = vmatprep.mubr.bf16.mxu0 0
          %801 = vmatmul.mubr.bf16.gmra.mrb[0].mxu0 %v650
          %v802 = vpop.f32.mrb[0].mxu0
          %v803 = vadd.f32 %v683, %v802
          %v804 = vpop.f32.mrb[0].mxu0
          %v805 = vadd.f32 %v687, %v804
          %v806 = vpop.f32.mrb[0].mxu0
          %v807 = vpop.f32.mrb[0].mxu0
          %808 = vdwg.mxu0
          %v809 = vmax.f32 %v803, 0.0
          %v810 = vmax.f32 %v805, 0.0
          %v813 = vcombine.low %v809, %v810
          %v815 = vunpack.c.l.s4 1983009808
          %v816 = vunpack.c.0.s8 %v815
          %v817 = vlaneseq
          %v818 = vshrl.u32 %v817, 7
          %v819 = vsub.s32 %v816, %v818
          %v820 = vrot.slane %v813, %v819
          %822 = vst [vmem:[#allocation2] sm:$0xf] %v820
        $region98: #{vision_transformer_forward.5} parent=89 // pred_fallthru
          _
        %v823 = vld [vmem:[#allocation2] sm:$0xf]
        %v826 = vunpack.c.l.s4 1983009808
        %v827 = vunpack.c.0.s8 %v826
        %v828 = vlaneseq
        %v829 = vshrl.u32 %v828, 7
        %v830 = vsub.s32 %v827, %v829
        %v831 = vrot.slane %v823, %v830
        %v832 = vcombine.high %v831, %v831
        %v835 = vpack.c.bf16 %v831, %v831
        %v836 = vpack.c.bf16 %v832, %v832
        %v837 = vld [vmem:[%s464] sm:$0xff]
        %v838 = vld [vmem:[%s464 + $0x8] sm:$0xff]
        %v839 = vld [vmem:[%s464 + $0x10] sm:$0xff]
        %v840 = vld [vmem:[%s464 + $0x18] sm:$0xff]
        %v841 = vld [vmem:[%s464 + $0x20] sm:$0xff]
        %v842 = vld [vmem:[%s464 + $0x28] sm:$0xff]
        %v843 = vld [vmem:[%s464 + $0x30] sm:$0xff]
        %v844 = vld [vmem:[%s464 + $0x38] sm:$0xff]
        %v845 = vld [vmem:[%s464 + $0x40] sm:$0xff]
        %v846 = vld [vmem:[%s464 + $0x48] sm:$0xff]
        %v847 = vld [vmem:[%s464 + $0x50] sm:$0xff]
        %v848 = vld [vmem:[%s464 + $0x58] sm:$0xff]
        %v849 = vld [vmem:[%s464 + $0x60] sm:$0xff]
        %v850 = vld [vmem:[%s464 + $0x68] sm:$0xff]
        %v851 = vld [vmem:[%s464 + $0x70] sm:$0xff]
        %v852 = vld [vmem:[%s464 + $0x78] sm:$0xff]
        %v853 = vld [vmem:[%s464 + $0x80] sm:$0xff]
        %v854 = vld [vmem:[%s464 + $0x88] sm:$0xff]
        %v855 = vld [vmem:[%s464 + $0x90] sm:$0xff]
        %v856 = vld [vmem:[%s464 + $0x98] sm:$0xff]
        %v857 = vld [vmem:[%s464 + $0xa0] sm:$0xff]
        %v858 = vld [vmem:[%s464 + $0xa8] sm:$0xff]
        %v859 = vld [vmem:[%s464 + $0xb0] sm:$0xff]
        %v860 = vld [vmem:[%s464 + $0xb8] sm:$0xff]
        %v861 = vld [vmem:[%s464 + $0xc0] sm:$0xff]
        %v862 = vld [vmem:[%s464 + $0xc8] sm:$0xff]
        %v863 = vld [vmem:[%s464 + $0xd0] sm:$0xff]
        %v864 = vld [vmem:[%s464 + $0xd8] sm:$0xff]
        %v865 = vld [vmem:[%s464 + $0xe0] sm:$0xff]
        %v866 = vld [vmem:[%s464 + $0xe8] sm:$0xff]
        %v867 = vld [vmem:[%s464 + $0xf0] sm:$0xff]
        %v868 = vld [vmem:[%s464 + $0xf8] sm:$0xff]
        %v869 = vld [vmem:[%s505] sm:$0x3]
        %v870 = vunpack.c.l.bf16 %v869
        %v872 = vlaneseq
        %v873 = vshrl.u32 %v872, 7
        %v874 = vsub.s32 0, %v873
        %v875 = vrot.slane %v870, %v874
        %v876 = vlaneseq
        %v877 = vshrl.u32 %v876, 7
        %v878 = vsub.s32 2, %v877
        %v879 = vrot.slane %v870, %v878
        %v882 = vlaneseq
        %v883 = vshrl.u32 %v882, 7
        %v884 = vsub.s32 0, %v883
        %v885 = vrot.slane %v875, %v884
        %v886 = vlaneseq
        %v887 = vshrl.u32 %v886, 7
        %v888 = vsub.s32 0, %v887
        %v889 = vrot.slane %v879, %v888
        %v922 = vunpack.c.l.b16 %v837
        %v923 = vunpack.c.h.b16 %v837
        %v924 = vunpack.c.l.b16 %v838
        %v925 = vunpack.c.h.b16 %v838
        %v926 = vunpack.c.l.b16 %v839
        %v927 = vunpack.c.h.b16 %v839
        %v928 = vunpack.c.l.b16 %v840
        %v929 = vunpack.c.h.b16 %v840
        %v930 = vunpack.c.l.b16 %v841
        %v931 = vunpack.c.h.b16 %v841
        %v932 = vunpack.c.l.b16 %v842
        %v933 = vunpack.c.h.b16 %v842
        %v934 = vunpack.c.l.b16 %v843
        %v935 = vunpack.c.h.b16 %v843
        %v936 = vunpack.c.l.b16 %v844
        %v937 = vunpack.c.h.b16 %v844
        %v938 = vunpack.c.l.b16 %v845
        %v939 = vunpack.c.h.b16 %v845
        %v940 = vunpack.c.l.b16 %v846
        %v941 = vunpack.c.h.b16 %v846
        %v942 = vunpack.c.l.b16 %v847
        %v943 = vunpack.c.h.b16 %v847
        %v944 = vunpack.c.l.b16 %v848
        %v945 = vunpack.c.h.b16 %v848
        %v946 = vunpack.c.l.b16 %v849
        %v947 = vunpack.c.h.b16 %v849
        %v948 = vunpack.c.l.b16 %v850
        %v949 = vunpack.c.h.b16 %v850
        %v950 = vunpack.c.l.b16 %v851
        %v951 = vunpack.c.h.b16 %v851
        %v952 = vunpack.c.l.b16 %v852
        %v953 = vunpack.c.h.b16 %v852
        %v954 = vunpack.c.l.b16 %v853
        %v955 = vunpack.c.h.b16 %v853
        %v956 = vunpack.c.l.b16 %v854
        %v957 = vunpack.c.h.b16 %v854
        %v958 = vunpack.c.l.b16 %v855
        %v959 = vunpack.c.h.b16 %v855
        %v960 = vunpack.c.l.b16 %v856
        %v961 = vunpack.c.h.b16 %v856
        %v962 = vunpack.c.l.b16 %v857
        %v963 = vunpack.c.h.b16 %v857
        %v964 = vunpack.c.l.b16 %v858
        %v965 = vunpack.c.h.b16 %v858
        %v966 = vunpack.c.l.b16 %v859
        %v967 = vunpack.c.h.b16 %v859
        %v968 = vunpack.c.l.b16 %v860
        %v969 = vunpack.c.h.b16 %v860
        %v970 = vunpack.c.l.b16 %v861
        %v971 = vunpack.c.h.b16 %v861
        %v972 = vunpack.c.l.b16 %v862
        %v973 = vunpack.c.h.b16 %v862
        %v974 = vunpack.c.l.b16 %v863
        %v975 = vunpack.c.h.b16 %v863
        %v976 = vunpack.c.l.b16 %v864
        %v977 = vunpack.c.h.b16 %v864
        %v978 = vunpack.c.l.b16 %v865
        %v979 = vunpack.c.h.b16 %v865
        %v980 = vunpack.c.l.b16 %v866
        %v981 = vunpack.c.h.b16 %v866
        %v982 = vunpack.c.l.b16 %v867
        %v983 = vunpack.c.h.b16 %v867
        %v984 = vunpack.c.l.b16 %v868
        %v985 = vunpack.c.h.b16 %v868
        %v986 = vpack.c.b16 %v924, %v922
        %v987 = vpack.c.b16 %v925, %v923
        %v988 = vpack.c.b16 %v928, %v926
        %v989 = vpack.c.b16 %v929, %v927
        %v990 = vpack.c.b16 %v932, %v930
        %v991 = vpack.c.b16 %v933, %v931
        %v992 = vpack.c.b16 %v936, %v934
        %v993 = vpack.c.b16 %v937, %v935
        %v994 = vpack.c.b16 %v940, %v938
        %v995 = vpack.c.b16 %v941, %v939
        %v996 = vpack.c.b16 %v944, %v942
        %v997 = vpack.c.b16 %v945, %v943
        %v998 = vpack.c.b16 %v948, %v946
        %v999 = vpack.c.b16 %v949, %v947
        %v1000 = vpack.c.b16 %v952, %v950
        %v1001 = vpack.c.b16 %v953, %v951
        %v1002 = vpack.c.b16 %v956, %v954
        %v1003 = vpack.c.b16 %v957, %v955
        %v1004 = vpack.c.b16 %v960, %v958
        %v1005 = vpack.c.b16 %v961, %v959
        %v1006 = vpack.c.b16 %v964, %v962
        %v1007 = vpack.c.b16 %v965, %v963
        %v1008 = vpack.c.b16 %v968, %v966
        %v1009 = vpack.c.b16 %v969, %v967
        %v1010 = vpack.c.b16 %v972, %v970
        %v1011 = vpack.c.b16 %v973, %v971
        %v1012 = vpack.c.b16 %v976, %v974
        %v1013 = vpack.c.b16 %v977, %v975
        %v1014 = vpack.c.b16 %v980, %v978
        %v1015 = vpack.c.b16 %v981, %v979
        %v1016 = vpack.c.b16 %v984, %v982
        %v1017 = vpack.c.b16 %v985, %v983
        %1050 = vmatprep.subr.bf16.mxu0 %v987
        %1051 = vmatpush1.bf16.msra.mxu0 %v986
        %1052 = vmatprep.subr.bf16.mxu0 %v989
        %1053 = vmatpush1.bf16.msra.mxu0 %v988
        %1054 = vmatprep.subr.bf16.mxu0 %v991
        %1055 = vmatpush1.bf16.msra.mxu0 %v990
        %1056 = vmatprep.subr.bf16.mxu0 %v993
        %1057 = vmatpush1.bf16.msra.mxu0 %v992
        %1058 = vmatprep.subr.bf16.mxu0 %v995
        %1059 = vmatpush1.bf16.msra.mxu0 %v994
        %1060 = vmatprep.subr.bf16.mxu0 %v997
        %1061 = vmatpush1.bf16.msra.mxu0 %v996
        %1062 = vmatprep.subr.bf16.mxu0 %v999
        %1063 = vmatpush1.bf16.msra.mxu0 %v998
        %1064 = vmatprep.subr.bf16.mxu0 %v1001
        %1065 = vmatpush1.bf16.msra.mxu0 %v1000
        %1066 = vmatprep.subr.bf16.mxu0 %v1003
        %1067 = vmatpush1.bf16.msra.mxu0 %v1002
        %1068 = vmatprep.subr.bf16.mxu0 %v1005
        %1069 = vmatpush1.bf16.msra.mxu0 %v1004
        %1070 = vmatprep.subr.bf16.mxu0 %v1007
        %1071 = vmatpush1.bf16.msra.mxu0 %v1006
        %1072 = vmatprep.subr.bf16.mxu0 %v1009
        %1073 = vmatpush1.bf16.msra.mxu0 %v1008
        %1074 = vmatprep.subr.bf16.mxu0 %v1011
        %1075 = vmatpush1.bf16.msra.mxu0 %v1010
        %1076 = vmatprep.subr.bf16.mxu0 %v1013
        %1077 = vmatpush1.bf16.msra.mxu0 %v1012
        %1078 = vmatprep.subr.bf16.mxu0 %v1015
        %1079 = vmatpush1.bf16.msra.mxu0 %v1014
        %1080 = vmatprep.subr.bf16.mxu0 %v1017
        %1081 = vmatpush1.bf16.msra.mxu0 %v1016
        %1082 = vmatprep.mubr.bf16.mxu0 %v836
        %1083 = vmatmul.mubr.bf16.gmra.mrb[0].mxu0 %v835
        %v1084 = vpop.f32.mrb[0].mxu0
        %v1085 = vadd.f32 %v885, %v1084
        %v1086 = vpop.f32.mrb[0].mxu0
        %v1087 = vadd.f32 %v889, %v1086
        %v1088 = vpop.f32.mrb[0].mxu0
        %v1089 = vpop.f32.mrb[0].mxu0
        %1090 = vdwg.mxu0
        %v1091 = vtanh.pop %v1085
        %v1092 = vtanh.pop %v1087
        %v1095 = vcombine.low %v1091, %v1092
        %v1097 = vunpack.c.l.s4 1983009808
        %v1098 = vunpack.c.0.s8 %v1097
        %v1099 = vlaneseq
        %v1100 = vshrl.u32 %v1099, 7
        %v1101 = vsub.s32 %v1098, %v1100
        %v1102 = vrot.slane %v1095, %v1101
        %1104 = vst [vmem:[%s511] sm:$0xf] %v1102
        %s1105 = smul.u32 2, %s20
        %p1106 = scmp.lt.s32.totalorder %s1105, 5
        %s1107 = scalar_select %p1106, %s1105, 5
        %s1108 = smul.addr %s1107, 2
        %s1109 = scalar_lea.vmem %s9, %s1108
        // Predicated region
        $region99: #{vision_transformer_forward.5} parent=89 // pred_check
          %p1110 = pneg %p237
        $region100: #{vision_transformer_forward.5} parent=89 // pred_check_branch
          %1112 = sbr.rel (%p1110) target = $region102
        $region101: #{vision_transformer_forward.5} parent=89 // pred_region
          %s1113 = smul.u32 2, %s20
        $region102: #{vision_transformer_forward.5} parent=89 // pred_fallthru
          _
      $region90: #{vision_transformer_forward.5} parent=5 // pred_fallthru
        _
      %p1114 = scmp.le.s32.totalorder 2, %s15
      // Predicated region
      $region103: #{vision_transformer_forward.5} parent=5 // pred_check
        %p1115 = pneg %p1114
      $region104: #{vision_transformer_forward.5} parent=5 // pred_check_branch
        %1117 = sbr.rel (%p1115) target = $region106
      $region105: #{vision_transformer_forward.5} parent=5 // pred_region
        %s1118 = ssub.s32 %s15, 2
        // Predicated region
        $region107: #{vision_transformer_forward.5} parent=105 // pred_check
          %p1119 = pneg %p243
        $region108: #{vision_transformer_forward.5} parent=105 // pred_check_branch
          %1121 = sbr.rel (%p1119) target = $region110
        $region109: #{vision_transformer_forward.5} parent=105 // pred_region
          %s1122 = smul.u32 2, %s21
          %p1123 = scmp.lt.s32.totalorder %s1122, 5
          %s1124 = scalar_select %p1123, %s1122, 5
          %s1125 = smul.addr %s1124, 2
          %s1126 = scalar_lea.vmem %s9, %s1125
        $region110: #{vision_transformer_forward.5} parent=105 // pred_fallthru
          _
      $region106: #{vision_transformer_forward.5} parent=5 // pred_fallthru
        _
    $region6: #{vision_transformer_forward.5} parent=1 // loop_footer
      %s19 = sadd.s32 1, %s15
    $region7: #{vision_transformer_forward.5} parent=1 // loop_footer_branch
      %14 = sbr.rel target = $region3
    $region8: #{vision_transformer_forward.5} parent=1 // loop_exit
      _

// kernel: vision_transformer_forward.4
$region0: #{vision_transformer_forward.4}
  #allocation0 [shape = 'u32[]', space=smem, size = 0x4, offset = 0x4, fixed_abs, tag = 'smem constant byte address 0x4 - core index']
  #allocation1 [shape = 'u32[144,128]{1,0:T(1,128)}', space=vmem, size = 0x12000, scoped, tag = 'internal scratch']
  %s0 = inlined_call_operand.vmem [shape: bf16[2,8,32], index: 0, kind: input, shape index: {}]
  %s1 = inlined_call_operand.vmem [shape: bf16[2,1,32], index: 1, kind: input, shape index: {}]
  %s2 = inlined_call_operand.vmem [shape: bf16[2,1,32], index: 2, kind: input, shape index: {}]
  %s3 = inlined_call_operand.vmem [shape: bf16[2,32,96], index: 3, kind: input, shape index: {}]
  %s4 = inlined_call_operand.vmem [shape: bf16[2,1,96], index: 4, kind: input, shape index: {}]
  %s5 = inlined_call_operand.vmem [shape: bf16[2,32,32], index: 5, kind: input, shape index: {}]
  %s6 = inlined_call_operand.vmem [shape: bf16[2,1,32], index: 6, kind: input, shape index: {}]
  %s7 = inlined_call_operand.vmem [shape: bf16[2,1,32], index: 7, kind: input, shape index: {}]
  %s8 = inlined_call_operand.vmem [shape: bf16[2,1,32], index: 8, kind: input, shape index: {}]
  %s9 = inlined_call_operand.vmem [shape: bf16[2,32,64], index: 9, kind: input, shape index: {}]
  %s10 = inlined_call_operand.vmem [shape: bf16[2,1,64], index: 10, kind: input, shape index: {}]
  %s11 = inlined_call_operand.vmem [shape: bf16[2,64,32], index: 11, kind: input, shape index: {}]
  %s12 = inlined_call_operand.vmem [shape: bf16[2,1,32], index: 12, kind: input, shape index: {}]
  %s13 = inlined_call_operand.vmem [shape: bf16[2,8,32], index: 13, kind: output, shape index: {}]
  %s14 = sld [smem:[#allocation0]]
  $region89: #{vision_transformer_forward.4} parent=0
    _
  %s16 = ssub.s32 1, %s14
  %s17 = scalar_select 0, %s16, %s14
  loop: start=0, step=1, limit=6
  $region2: #{vision_transformer_forward.4} parent=0 // loop_pre_header
    _
  $region3: #{vision_transformer_forward.4} parent=0 // loop_header
    %s19 = sphi 0, %s23
    %p20 = scmp.ge.s32.totalorder %s19, 6
    %s26 = sphi 0, %s38
    %s27 = sphi 0, %s34
    %s28 = sphi 0, %s26
    %s29 = sphi 0, %s27
    %s30 = sphi 0, %s28
    %s31 = sphi 0, %s29
    %s41 = sphi 0, %s43
    %s44 = sphi 0, %s41
    %s45 = sphi 0, %s44
    %s61 = sphi 0, %s45
    %s67 = sphi 0, %s69
    %s70 = sphi 0, %s67
    %s71 = sphi 0, %s70
    %s87 = sphi 0, %s71
    %s93 = sphi 0, %s95
    %s96 = sphi 0, %s93
    %s97 = sphi 0, %s96
    %s113 = sphi 0, %s97
    %s119 = sphi 0, %s121
    %s122 = sphi 0, %s119
    %s123 = sphi 0, %s122
    %s139 = sphi 0, %s123
    %s145 = sphi 0, %s147
    %s148 = sphi 0, %s145
    %s149 = sphi 0, %s148
    %s165 = sphi 0, %s149
    %s171 = sphi 0, %s173
    %s174 = sphi 0, %s171
    %s175 = sphi 0, %s174
    %s191 = sphi 0, %s175
    %s197 = sphi 0, %s199
    %s200 = sphi 0, %s197
    %s201 = sphi 0, %s200
    %s217 = sphi 0, %s201
    %s223 = sphi 0, %s225
    %s226 = sphi 0, %s223
    %s227 = sphi 0, %s226
    %s243 = sphi 0, %s227
    %s249 = sphi 0, %s251
    %s252 = sphi 0, %s249
    %s253 = sphi 0, %s252
    %s269 = sphi 0, %s253
    %s275 = sphi 0, %s277
    %s278 = sphi 0, %s275
    %s279 = sphi 0, %s278
    %s295 = sphi 0, %s279
    %s301 = sphi 0, %s303
    %s304 = sphi 0, %s301
    %s305 = sphi 0, %s304
    %s321 = sphi 0, %s305
    %s327 = sphi 0, %s329
    %s330 = sphi 0, %s327
    %s331 = sphi 0, %s330
    %s347 = sphi 0, %s331
    %s353 = sphi 0, %s355
    %s356 = sphi 0, %s353
    %s357 = sphi 0, %s356
    %s373 = sphi 0, %s357
    %s379 = sphi 0, %s381
    %s382 = sphi 0, %s379
    %s383 = sphi 0, %s382
    %s399 = sphi 0, %s383
  $region4: #{vision_transformer_forward.4} parent=0 // loop_header_branch
    %22 = sbr.rel (%p20) target = $region8
  $region5: #{vision_transformer_forward.4} parent=0 // loop_body
    %s24 = ssub.s32 %s19, 1
    %s25 = ssub.s32 %s19, 2
    %s32 = sadd.s32 1, %s27
    %p33 = scmp.ge.s32.totalorder %s32, 2
    %s34 = scalar_select %p33, 0, %s32
    %s35 = sadd.s32 1, %s26
    %s36 = scalar_select %p33, %s35, %s26
    %p37 = scmp.ge.s32.totalorder %s36, 2
    %s38 = scalar_select %p37, 0, %s36
    %s39 = ssub.s32 %s26, %s38
    %p40 = scmp.eq.s32.totalorder %s39, 0
    %s42 = sadd.s32 %s41, 1
    %s43 = scalar_select %p40, %s41, %s42
    %p46 = pneg %p40
    %p47 = scmp.eq.s32.totalorder %s19, 3
    %p48 = por %p46, %p47
    %p49 = scmp.ne.s32.totalorder %s41, %s44
    %p50 = scmp.eq.s32.totalorder %s19, 0
    %p51 = por %p49, %p50
    %p52 = scmp.ne.s32.totalorder %s41, %s44
    %p53 = scmp.eq.s32.totalorder %s24, 3
    %p54 = por %p52, %p53
    %p55 = scmp.ne.s32.totalorder %s44, %s45
    %p56 = scmp.eq.s32.totalorder %s24, 0
    %p57 = por %p55, %p56
    %p58 = scmp.ne.s32.totalorder %s44, %s45
    %p59 = scmp.eq.s32.totalorder %s25, 3
    %p60 = por %p58, %p59
    %p62 = scmp.ne.s32.totalorder %s45, %s61
    %p63 = scmp.eq.s32.totalorder %s25, 0
    %p64 = por %p62, %p63
    %s65 = ssub.s32 %s27, %s34
    %p66 = scmp.eq.s32.totalorder %s65, 0
    %s68 = sadd.s32 %s67, 1
    %s69 = scalar_select %p66, %s67, %s68
    %p72 = pneg %p66
    %p73 = scmp.eq.s32.totalorder %s19, 3
    %p74 = por %p72, %p73
    %p75 = scmp.ne.s32.totalorder %s67, %s70
    %p76 = scmp.eq.s32.totalorder %s19, 0
    %p77 = por %p75, %p76
    %p78 = scmp.ne.s32.totalorder %s67, %s70
    %p79 = scmp.eq.s32.totalorder %s24, 3
    %p80 = por %p78, %p79
    %p81 = scmp.ne.s32.totalorder %s70, %s71
    %p82 = scmp.eq.s32.totalorder %s24, 0
    %p83 = por %p81, %p82
    %p84 = scmp.ne.s32.totalorder %s70, %s71
    %p85 = scmp.eq.s32.totalorder %s25, 3
    %p86 = por %p84, %p85
    %p88 = scmp.ne.s32.totalorder %s71, %s87
    %p89 = scmp.eq.s32.totalorder %s25, 0
    %p90 = por %p88, %p89
    %s91 = ssub.s32 %s27, %s34
    %p92 = scmp.eq.s32.totalorder %s91, 0
    %s94 = sadd.s32 %s93, 1
    %s95 = scalar_select %p92, %s93, %s94
    %p98 = pneg %p92
    %p99 = scmp.eq.s32.totalorder %s19, 3
    %p100 = por %p98, %p99
    %p101 = scmp.ne.s32.totalorder %s93, %s96
    %p102 = scmp.eq.s32.totalorder %s19, 0
    %p103 = por %p101, %p102
    %p104 = scmp.ne.s32.totalorder %s93, %s96
    %p105 = scmp.eq.s32.totalorder %s24, 3
    %p106 = por %p104, %p105
    %p107 = scmp.ne.s32.totalorder %s96, %s97
    %p108 = scmp.eq.s32.totalorder %s24, 0
    %p109 = por %p107, %p108
    %p110 = scmp.ne.s32.totalorder %s96, %s97
    %p111 = scmp.eq.s32.totalorder %s25, 3
    %p112 = por %p110, %p111
    %p114 = scmp.ne.s32.totalorder %s97, %s113
    %p115 = scmp.eq.s32.totalorder %s25, 0
    %p116 = por %p114, %p115
    %s117 = ssub.s32 %s27, %s34
    %p118 = scmp.eq.s32.totalorder %s117, 0
    %s120 = sadd.s32 %s119, 1
    %s121 = scalar_select %p118, %s119, %s120
    %p124 = pneg %p118
    %p125 = scmp.eq.s32.totalorder %s19, 3
    %p126 = por %p124, %p125
    %p127 = scmp.ne.s32.totalorder %s119, %s122
    %p128 = scmp.eq.s32.totalorder %s19, 0
    %p129 = por %p127, %p128
    %p130 = scmp.ne.s32.totalorder %s119, %s122
    %p131 = scmp.eq.s32.totalorder %s24, 3
    %p132 = por %p130, %p131
    %p133 = scmp.ne.s32.totalorder %s122, %s123
    %p134 = scmp.eq.s32.totalorder %s24, 0
    %p135 = por %p133, %p134
    %p136 = scmp.ne.s32.totalorder %s122, %s123
    %p137 = scmp.eq.s32.totalorder %s25, 3
    %p138 = por %p136, %p137
    %p140 = scmp.ne.s32.totalorder %s123, %s139
    %p141 = scmp.eq.s32.totalorder %s25, 0
    %p142 = por %p140, %p141
    %s143 = ssub.s32 %s27, %s34
    %p144 = scmp.eq.s32.totalorder %s143, 0
    %s146 = sadd.s32 %s145, 1
    %s147 = scalar_select %p144, %s145, %s146
    %p150 = pneg %p144
    %p151 = scmp.eq.s32.totalorder %s19, 3
    %p152 = por %p150, %p151
    %p153 = scmp.ne.s32.totalorder %s145, %s148
    %p154 = scmp.eq.s32.totalorder %s19, 0
    %p155 = por %p153, %p154
    %p156 = scmp.ne.s32.totalorder %s145, %s148
    %p157 = scmp.eq.s32.totalorder %s24, 3
    %p158 = por %p156, %p157
    %p159 = scmp.ne.s32.totalorder %s148, %s149
    %p160 = scmp.eq.s32.totalorder %s24, 0
    %p161 = por %p159, %p160
    %p162 = scmp.ne.s32.totalorder %s148, %s149
    %p163 = scmp.eq.s32.totalorder %s25, 3
    %p164 = por %p162, %p163
    %p166 = scmp.ne.s32.totalorder %s149, %s165
    %p167 = scmp.eq.s32.totalorder %s25, 0
    %p168 = por %p166, %p167
    %s169 = ssub.s32 %s27, %s34
    %p170 = scmp.eq.s32.totalorder %s169, 0
    %s172 = sadd.s32 %s171, 1
    %s173 = scalar_select %p170, %s171, %s172
    %p176 = pneg %p170
    %p177 = scmp.eq.s32.totalorder %s19, 3
    %p178 = por %p176, %p177
    %p179 = scmp.ne.s32.totalorder %s171, %s174
    %p180 = scmp.eq.s32.totalorder %s19, 0
    %p181 = por %p179, %p180
    %p182 = scmp.ne.s32.totalorder %s171, %s174
    %p183 = scmp.eq.s32.totalorder %s24, 3
    %p184 = por %p182, %p183
    %p185 = scmp.ne.s32.totalorder %s174, %s175
    %p186 = scmp.eq.s32.totalorder %s24, 0
    %p187 = por %p185, %p186
    %p188 = scmp.ne.s32.totalorder %s174, %s175
    %p189 = scmp.eq.s32.totalorder %s25, 3
    %p190 = por %p188, %p189
    %p192 = scmp.ne.s32.totalorder %s175, %s191
    %p193 = scmp.eq.s32.totalorder %s25, 0
    %p194 = por %p192, %p193
    %s195 = ssub.s32 %s27, %s34
    %p196 = scmp.eq.s32.totalorder %s195, 0
    %s198 = sadd.s32 %s197, 1
    %s199 = scalar_select %p196, %s197, %s198
    %p202 = pneg %p196
    %p203 = scmp.eq.s32.totalorder %s19, 3
    %p204 = por %p202, %p203
    %p205 = scmp.ne.s32.totalorder %s197, %s200
    %p206 = scmp.eq.s32.totalorder %s19, 0
    %p207 = por %p205, %p206
    %p208 = scmp.ne.s32.totalorder %s197, %s200
    %p209 = scmp.eq.s32.totalorder %s24, 3
    %p210 = por %p208, %p209
    %p211 = scmp.ne.s32.totalorder %s200, %s201
    %p212 = scmp.eq.s32.totalorder %s24, 0
    %p213 = por %p211, %p212
    %p214 = scmp.ne.s32.totalorder %s200, %s201
    %p215 = scmp.eq.s32.totalorder %s25, 3
    %p216 = por %p214, %p215
    %p218 = scmp.ne.s32.totalorder %s201, %s217
    %p219 = scmp.eq.s32.totalorder %s25, 0
    %p220 = por %p218, %p219
    %s221 = ssub.s32 %s27, %s34
    %p222 = scmp.eq.s32.totalorder %s221, 0
    %s224 = sadd.s32 %s223, 1
    %s225 = scalar_select %p222, %s223, %s224
    %p228 = pneg %p222
    %p229 = scmp.eq.s32.totalorder %s19, 3
    %p230 = por %p228, %p229
    %p231 = scmp.ne.s32.totalorder %s223, %s226
    %p232 = scmp.eq.s32.totalorder %s19, 0
    %p233 = por %p231, %p232
    %p234 = scmp.ne.s32.totalorder %s223, %s226
    %p235 = scmp.eq.s32.totalorder %s24, 3
    %p236 = por %p234, %p235
    %p237 = scmp.ne.s32.totalorder %s226, %s227
    %p238 = scmp.eq.s32.totalorder %s24, 0
    %p239 = por %p237, %p238
    %p240 = scmp.ne.s32.totalorder %s226, %s227
    %p241 = scmp.eq.s32.totalorder %s25, 3
    %p242 = por %p240, %p241
    %p244 = scmp.ne.s32.totalorder %s227, %s243
    %p245 = scmp.eq.s32.totalorder %s25, 0
    %p246 = por %p244, %p245
    %s247 = ssub.s32 %s27, %s34
    %p248 = scmp.eq.s32.totalorder %s247, 0
    %s250 = sadd.s32 %s249, 1
    %s251 = scalar_select %p248, %s249, %s250
    %p254 = pneg %p248
    %p255 = scmp.eq.s32.totalorder %s19, 3
    %p256 = por %p254, %p255
    %p257 = scmp.ne.s32.totalorder %s249, %s252
    %p258 = scmp.eq.s32.totalorder %s19, 0
    %p259 = por %p257, %p258
    %p260 = scmp.ne.s32.totalorder %s249, %s252
    %p261 = scmp.eq.s32.totalorder %s24, 3
    %p262 = por %p260, %p261
    %p263 = scmp.ne.s32.totalorder %s252, %s253
    %p264 = scmp.eq.s32.totalorder %s24, 0
    %p265 = por %p263, %p264
    %p266 = scmp.ne.s32.totalorder %s252, %s253
    %p267 = scmp.eq.s32.totalorder %s25, 3
    %p268 = por %p266, %p267
    %p270 = scmp.ne.s32.totalorder %s253, %s269
    %p271 = scmp.eq.s32.totalorder %s25, 0
    %p272 = por %p270, %p271
    %s273 = ssub.s32 %s27, %s34
    %p274 = scmp.eq.s32.totalorder %s273, 0
    %s276 = sadd.s32 %s275, 1
    %s277 = scalar_select %p274, %s275, %s276
    %p280 = pneg %p274
    %p281 = scmp.eq.s32.totalorder %s19, 3
    %p282 = por %p280, %p281
    %p283 = scmp.ne.s32.totalorder %s275, %s278
    %p284 = scmp.eq.s32.totalorder %s19, 0
    %p285 = por %p283, %p284
    %p286 = scmp.ne.s32.totalorder %s275, %s278
    %p287 = scmp.eq.s32.totalorder %s24, 3
    %p288 = por %p286, %p287
    %p289 = scmp.ne.s32.totalorder %s278, %s279
    %p290 = scmp.eq.s32.totalorder %s24, 0
    %p291 = por %p289, %p290
    %p292 = scmp.ne.s32.totalorder %s278, %s279
    %p293 = scmp.eq.s32.totalorder %s25, 3
    %p294 = por %p292, %p293
    %p296 = scmp.ne.s32.totalorder %s279, %s295
    %p297 = scmp.eq.s32.totalorder %s25, 0
    %p298 = por %p296, %p297
    %s299 = ssub.s32 %s27, %s34
    %p300 = scmp.eq.s32.totalorder %s299, 0
    %s302 = sadd.s32 %s301, 1
    %s303 = scalar_select %p300, %s301, %s302
    %p306 = pneg %p300
    %p307 = scmp.eq.s32.totalorder %s19, 3
    %p308 = por %p306, %p307
    %p309 = scmp.ne.s32.totalorder %s301, %s304
    %p310 = scmp.eq.s32.totalorder %s19, 0
    %p311 = por %p309, %p310
    %p312 = scmp.ne.s32.totalorder %s301, %s304
    %p313 = scmp.eq.s32.totalorder %s24, 3
    %p314 = por %p312, %p313
    %p315 = scmp.ne.s32.totalorder %s304, %s305
    %p316 = scmp.eq.s32.totalorder %s24, 0
    %p317 = por %p315, %p316
    %p318 = scmp.ne.s32.totalorder %s304, %s305
    %p319 = scmp.eq.s32.totalorder %s25, 3
    %p320 = por %p318, %p319
    %p322 = scmp.ne.s32.totalorder %s305, %s321
    %p323 = scmp.eq.s32.totalorder %s25, 0
    %p324 = por %p322, %p323
    %s325 = ssub.s32 %s27, %s34
    %p326 = scmp.eq.s32.totalorder %s325, 0
    %s328 = sadd.s32 %s327, 1
    %s329 = scalar_select %p326, %s327, %s328
    %p332 = pneg %p326
    %p333 = scmp.eq.s32.totalorder %s19, 3
    %p334 = por %p332, %p333
    %p335 = scmp.ne.s32.totalorder %s327, %s330
    %p336 = scmp.eq.s32.totalorder %s19, 0
    %p337 = por %p335, %p336
    %p338 = scmp.ne.s32.totalorder %s327, %s330
    %p339 = scmp.eq.s32.totalorder %s24, 3
    %p340 = por %p338, %p339
    %p341 = scmp.ne.s32.totalorder %s330, %s331
    %p342 = scmp.eq.s32.totalorder %s24, 0
    %p343 = por %p341, %p342
    %p344 = scmp.ne.s32.totalorder %s330, %s331
    %p345 = scmp.eq.s32.totalorder %s25, 3
    %p346 = por %p344, %p345
    %p348 = scmp.ne.s32.totalorder %s331, %s347
    %p349 = scmp.eq.s32.totalorder %s25, 0
    %p350 = por %p348, %p349
    %s351 = ssub.s32 %s27, %s34
    %p352 = scmp.eq.s32.totalorder %s351, 0
    %s354 = sadd.s32 %s353, 1
    %s355 = scalar_select %p352, %s353, %s354
    %p358 = pneg %p352
    %p359 = scmp.eq.s32.totalorder %s19, 3
    %p360 = por %p358, %p359
    %p361 = scmp.ne.s32.totalorder %s353, %s356
    %p362 = scmp.eq.s32.totalorder %s19, 0
    %p363 = por %p361, %p362
    %p364 = scmp.ne.s32.totalorder %s353, %s356
    %p365 = scmp.eq.s32.totalorder %s24, 3
    %p366 = por %p364, %p365
    %p367 = scmp.ne.s32.totalorder %s356, %s357
    %p368 = scmp.eq.s32.totalorder %s24, 0
    %p369 = por %p367, %p368
    %p370 = scmp.ne.s32.totalorder %s356, %s357
    %p371 = scmp.eq.s32.totalorder %s25, 3
    %p372 = por %p370, %p371
    %p374 = scmp.ne.s32.totalorder %s357, %s373
    %p375 = scmp.eq.s32.totalorder %s25, 0
    %p376 = por %p374, %p375
    %s377 = ssub.s32 %s26, %s38
    %p378 = scmp.eq.s32.totalorder %s377, 0
    %s380 = sadd.s32 %s379, 1
    %s381 = scalar_select %p378, %s379, %s380
    %p384 = pneg %p378
    %p385 = scmp.eq.s32.totalorder %s19, 3
    %p386 = por %p384, %p385
    %p387 = scmp.ne.s32.totalorder %s379, %s382
    %p388 = scmp.eq.s32.totalorder %s19, 0
    %p389 = por %p387, %p388
    %p390 = scmp.ne.s32.totalorder %s379, %s382
    %p391 = scmp.eq.s32.totalorder %s24, 3
    %p392 = por %p390, %p391
    %p393 = scmp.ne.s32.totalorder %s382, %s383
    %p394 = scmp.eq.s32.totalorder %s24, 0
    %p395 = por %p393, %p394
    %p396 = scmp.ne.s32.totalorder %s382, %s383
    %p397 = scmp.eq.s32.totalorder %s25, 3
    %p398 = por %p396, %p397
    %p400 = scmp.ne.s32.totalorder %s383, %s399
    %p401 = scmp.eq.s32.totalorder %s25, 0
    %p402 = por %p400, %p401
    %p403 = scmp.le.s32.totalorder 1, %s19
    %p404 = scmp.lt.s32.totalorder %s19, 5
    %p405 = pnand %p403, %p404
    %p406 = pneg %p405
    // Predicated region
    $region9: #{vision_transformer_forward.4} parent=5 // pred_check
      _
    $region10: #{vision_transformer_forward.4} parent=5 // pred_check_branch
      %408 = sbr.rel (%p405) target = $region12
    $region11: #{vision_transformer_forward.4} parent=5 // pred_region
      %s409 = ssub.s32 %s19, 1
    $region12: #{vision_transformer_forward.4} parent=5 // pred_fallthru
      _
    %p410 = scmp.lt.s32.totalorder %s19, 4
    // Predicated region
    $region13: #{vision_transformer_forward.4} parent=5 // pred_check
      %p411 = pneg %p410
    $region14: #{vision_transformer_forward.4} parent=5 // pred_check_branch
      %413 = sbr.rel (%p411) target = $region16
    $region15: #{vision_transformer_forward.4} parent=5 // pred_region
      // Predicated region
      $region17: #{vision_transformer_forward.4} parent=15 // pred_check
        %p414 = pneg %p51
      $region18: #{vision_transformer_forward.4} parent=15 // pred_check_branch
        %416 = sbr.rel (%p414) target = $region20
      $region19: #{vision_transformer_forward.4} parent=15 // pred_region
        %p417 = scmp.lt.s32.totalorder %s26, 1
        %s418 = scalar_select %p417, %s26, 1
        %s419 = smul.addr %s418, 4
        %s420 = scalar_lea.vmem %s0, %s419
      $region20: #{vision_transformer_forward.4} parent=15 // pred_fallthru
        _
      // Predicated region
      $region21: #{vision_transformer_forward.4} parent=15 // pred_check
        %p421 = pneg %p77
      $region22: #{vision_transformer_forward.4} parent=15 // pred_check_branch
        %423 = sbr.rel (%p421) target = $region24
      $region23: #{vision_transformer_forward.4} parent=15 // pred_region
        %p424 = scmp.lt.s32.totalorder %s27, 1
        %s425 = scalar_select %p424, %s27, 1
        %s426 = scalar_lea.vmem %s1, %s425
      $region24: #{vision_transformer_forward.4} parent=15 // pred_fallthru
        _
      // Predicated region
      $region25: #{vision_transformer_forward.4} parent=15 // pred_check
        %p427 = pneg %p103
      $region26: #{vision_transformer_forward.4} parent=15 // pred_check_branch
        %429 = sbr.rel (%p427) target = $region28
      $region27: #{vision_transformer_forward.4} parent=15 // pred_region
        %p430 = scmp.lt.s32.totalorder %s27, 1
        %s431 = scalar_select %p430, %s27, 1
        %s432 = scalar_lea.vmem %s2, %s431
      $region28: #{vision_transformer_forward.4} parent=15 // pred_fallthru
        _
      // Predicated region
      $region29: #{vision_transformer_forward.4} parent=15 // pred_check
        %p433 = pneg %p129
      $region30: #{vision_transformer_forward.4} parent=15 // pred_check_branch
        %435 = sbr.rel (%p433) target = $region32
      $region31: #{vision_transformer_forward.4} parent=15 // pred_region
        %p436 = scmp.lt.s32.totalorder %s27, 1
        %s437 = scalar_select %p436, %s27, 1
        %s438 = smul.addr %s437, 4
        %s439 = smul.addr %s438, 4
        %s440 = scalar_lea.vmem %s3, %s439
      $region32: #{vision_transformer_forward.4} parent=15 // pred_fallthru
        _
      // Predicated region
      $region33: #{vision_transformer_forward.4} parent=15 // pred_check
        %p441 = pneg %p155
      $region34: #{vision_transformer_forward.4} parent=15 // pred_check_branch
        %443 = sbr.rel (%p441) target = $region36
      $region35: #{vision_transformer_forward.4} parent=15 // pred_region
        %p444 = scmp.lt.s32.totalorder %s27, 1
        %s445 = scalar_select %p444, %s27, 1
        %s446 = scalar_lea.vmem %s4, %s445
      $region36: #{vision_transformer_forward.4} parent=15 // pred_fallthru
        _
      // Predicated region
      $region37: #{vision_transformer_forward.4} parent=15 // pred_check
        %p447 = pneg %p181
      $region38: #{vision_transformer_forward.4} parent=15 // pred_check_branch
        %449 = sbr.rel (%p447) target = $region40
      $region39: #{vision_transformer_forward.4} parent=15 // pred_region
        %p450 = scmp.lt.s32.totalorder %s27, 1
        %s451 = scalar_select %p450, %s27, 1
        %s452 = smul.addr %s451, 4
        %s453 = smul.addr %s452, 4
        %s454 = scalar_lea.vmem %s5, %s453
      $region40: #{vision_transformer_forward.4} parent=15 // pred_fallthru
        _
      // Predicated region
      $region41: #{vision_transformer_forward.4} parent=15 // pred_check
        %p455 = pneg %p207
      $region42: #{vision_transformer_forward.4} parent=15 // pred_check_branch
        %457 = sbr.rel (%p455) target = $region44
      $region43: #{vision_transformer_forward.4} parent=15 // pred_region
        %p458 = scmp.lt.s32.totalorder %s27, 1
        %s459 = scalar_select %p458, %s27, 1
        %s460 = scalar_lea.vmem %s6, %s459
      $region44: #{vision_transformer_forward.4} parent=15 // pred_fallthru
        _
      // Predicated region
      $region45: #{vision_transformer_forward.4} parent=15 // pred_check
        %p461 = pneg %p233
      $region46: #{vision_transformer_forward.4} parent=15 // pred_check_branch
        %463 = sbr.rel (%p461) target = $region48
      $region47: #{vision_transformer_forward.4} parent=15 // pred_region
        %p464 = scmp.lt.s32.totalorder %s27, 1
        %s465 = scalar_select %p464, %s27, 1
        %s466 = scalar_lea.vmem %s7, %s465
      $region48: #{vision_transformer_forward.4} parent=15 // pred_fallthru
        _
      // Predicated region
      $region49: #{vision_transformer_forward.4} parent=15 // pred_check
        %p467 = pneg %p259
      $region50: #{vision_transformer_forward.4} parent=15 // pred_check_branch
        %469 = sbr.rel (%p467) target = $region52
      $region51: #{vision_transformer_forward.4} parent=15 // pred_region
        %p470 = scmp.lt.s32.totalorder %s27, 1
        %s471 = scalar_select %p470, %s27, 1
        %s472 = scalar_lea.vmem %s8, %s471
      $region52: #{vision_transformer_forward.4} parent=15 // pred_fallthru
        _
      // Predicated region
      $region53: #{vision_transformer_forward.4} parent=15 // pred_check
        %p473 = pneg %p285
      $region54: #{vision_transformer_forward.4} parent=15 // pred_check_branch
        %475 = sbr.rel (%p473) target = $region56
      $region55: #{vision_transformer_forward.4} parent=15 // pred_region
        %p476 = scmp.lt.s32.totalorder %s27, 1
        %s477 = scalar_select %p476, %s27, 1
        %s478 = smul.addr %s477, 4
        %s479 = smul.addr %s478, 4
        %s480 = scalar_lea.vmem %s9, %s479
      $region56: #{vision_transformer_forward.4} parent=15 // pred_fallthru
        _
      // Predicated region
      $region57: #{vision_transformer_forward.4} parent=15 // pred_check
        %p481 = pneg %p311
      $region58: #{vision_transformer_forward.4} parent=15 // pred_check_branch
        %483 = sbr.rel (%p481) target = $region60
      $region59: #{vision_transformer_forward.4} parent=15 // pred_region
        %p484 = scmp.lt.s32.totalorder %s27, 1
        %s485 = scalar_select %p484, %s27, 1
        %s486 = scalar_lea.vmem %s10, %s485
      $region60: #{vision_transformer_forward.4} parent=15 // pred_fallthru
        _
      // Predicated region
      $region61: #{vision_transformer_forward.4} parent=15 // pred_check
        %p487 = pneg %p337
      $region62: #{vision_transformer_forward.4} parent=15 // pred_check_branch
        %489 = sbr.rel (%p487) target = $region64
      $region63: #{vision_transformer_forward.4} parent=15 // pred_region
        %p490 = scmp.lt.s32.totalorder %s27, 1
        %s491 = scalar_select %p490, %s27, 1
        %s492 = smul.addr %s491, 8
        %s493 = smul.addr %s492, 4
        %s494 = scalar_lea.vmem %s11, %s493
      $region64: #{vision_transformer_forward.4} parent=15 // pred_fallthru
        _
      // Predicated region
      $region65: #{vision_transformer_forward.4} parent=15 // pred_check
        %p495 = pneg %p363
      $region66: #{vision_transformer_forward.4} parent=15 // pred_check_branch
        %497 = sbr.rel (%p495) target = $region68
      $region67: #{vision_transformer_forward.4} parent=15 // pred_region
        %p498 = scmp.lt.s32.totalorder %s27, 1
        %s499 = scalar_select %p498, %s27, 1
        %s500 = scalar_lea.vmem %s12, %s499
      $region68: #{vision_transformer_forward.4} parent=15 // pred_fallthru
        _
    $region16: #{vision_transformer_forward.4} parent=5 // pred_fallthru
      _
    %p501 = scmp.le.s32.totalorder 1, %s19
    %p502 = scmp.lt.s32.totalorder %s19, 5
    %p503 = pnand %p501, %p502
    %p504 = pneg %p503
    // Predicated region
    $region69: #{vision_transformer_forward.4} parent=5 // pred_check
      _
    $region70: #{vision_transformer_forward.4} parent=5 // pred_check_branch
      %506 = sbr.rel (%p503) target = $region72
    $region71: #{vision_transformer_forward.4} parent=5 // pred_region
      %s507 = ssub.s32 %s19, 1
      %p508 = scmp.lt.s32.totalorder %s28, 1
      %s509 = scalar_select %p508, %s28, 1
      %s510 = smul.addr %s509, 4
      %s511 = scalar_lea.vmem %s0, %s510
      %p512 = pneg %p57
      %p513 = pneg %p54
      %p514 = scmp.lt.s32.totalorder %s29, 1
      %s515 = scalar_select %p514, %s29, 1
      %s516 = scalar_lea.vmem %s1, %s515
      %p517 = pneg %p83
      %p518 = pneg %p80
      %p519 = scmp.lt.s32.totalorder %s29, 1
      %s520 = scalar_select %p519, %s29, 1
      %s521 = scalar_lea.vmem %s2, %s520
      %p522 = pneg %p109
      %p523 = pneg %p106
      %p524 = scmp.lt.s32.totalorder %s29, 1
      %s525 = scalar_select %p524, %s29, 1
      %s526 = smul.addr %s525, 4
      %s527 = smul.addr %s526, 4
      %s528 = scalar_lea.vmem %s3, %s527
      %p529 = pneg %p135
      %p530 = pneg %p132
      %p531 = scmp.lt.s32.totalorder %s29, 1
      %s532 = scalar_select %p531, %s29, 1
      %s533 = scalar_lea.vmem %s4, %s532
      %p534 = pneg %p161
      %p535 = pneg %p158
      %p536 = scmp.lt.s32.totalorder %s29, 1
      %s537 = scalar_select %p536, %s29, 1
      %s538 = smul.addr %s537, 4
      %s539 = smul.addr %s538, 4
      %s540 = scalar_lea.vmem %s5, %s539
      %p541 = pneg %p187
      %p542 = pneg %p184
      %p543 = scmp.lt.s32.totalorder %s29, 1
      %s544 = scalar_select %p543, %s29, 1
      %s545 = scalar_lea.vmem %s6, %s544
      %p546 = pneg %p213
      %p547 = pneg %p210
      %p548 = scmp.lt.s32.totalorder %s29, 1
      %s549 = scalar_select %p548, %s29, 1
      %s550 = scalar_lea.vmem %s7, %s549
      %p551 = pneg %p239
      %p552 = pneg %p236
      %p553 = scmp.lt.s32.totalorder %s29, 1
      %s554 = scalar_select %p553, %s29, 1
      %s555 = scalar_lea.vmem %s8, %s554
      %p556 = pneg %p265
      %p557 = pneg %p262
      %p558 = scmp.lt.s32.totalorder %s29, 1
      %s559 = scalar_select %p558, %s29, 1
      %s560 = smul.addr %s559, 4
      %s561 = smul.addr %s560, 4
      %s562 = scalar_lea.vmem %s9, %s561
      %p563 = pneg %p291
      %p564 = pneg %p288
      %p565 = scmp.lt.s32.totalorder %s29, 1
      %s566 = scalar_select %p565, %s29, 1
      %s567 = scalar_lea.vmem %s10, %s566
      %p568 = pneg %p317
      %p569 = pneg %p314
      %p570 = scmp.lt.s32.totalorder %s29, 1
      %s571 = scalar_select %p570, %s29, 1
      %s572 = smul.addr %s571, 8
      %s573 = smul.addr %s572, 4
      %s574 = scalar_lea.vmem %s11, %s573
      %p575 = pneg %p343
      %p576 = pneg %p340
      %p577 = scmp.lt.s32.totalorder %s29, 1
      %s578 = scalar_select %p577, %s29, 1
      %s579 = scalar_lea.vmem %s12, %s578
      %p580 = pneg %p369
      %p581 = pneg %p366
      %p582 = pneg %p395
      %p583 = pneg %p392
      %p584 = scmp.lt.s32.totalorder %s28, 1
      %s585 = scalar_select %p584, %s28, 1
      %s586 = smul.addr %s585, 4
      %s587 = scalar_lea.vmem %s13, %s586
      %p588 = scmp.lt.s32.totalorder %s28, 1
      %s589 = scalar_select %p588, %s28, 1
      %s590 = smul.addr %s589, 4
      %s591 = scalar_lea.vmem %s0, %s590
      %p592 = scmp.lt.s32.totalorder %s29, 1
      %s593 = scalar_select %p592, %s29, 1
      %s594 = scalar_lea.vmem %s1, %s593
      %p595 = scmp.lt.s32.totalorder %s29, 1
      %s596 = scalar_select %p595, %s29, 1
      %s597 = scalar_lea.vmem %s2, %s596
      %p598 = scmp.lt.s32.totalorder %s29, 1
      %s599 = scalar_select %p598, %s29, 1
      %s600 = smul.addr %s599, 4
      %s601 = smul.addr %s600, 4
      %s602 = scalar_lea.vmem %s3, %s601
      %p603 = scmp.lt.s32.totalorder %s29, 1
      %s604 = scalar_select %p603, %s29, 1
      %s605 = scalar_lea.vmem %s4, %s604
      %p606 = scmp.lt.s32.totalorder %s29, 1
      %s607 = scalar_select %p606, %s29, 1
      %s608 = smul.addr %s607, 4
      %s609 = smul.addr %s608, 4
      %s610 = scalar_lea.vmem %s5, %s609
      %p611 = scmp.lt.s32.totalorder %s29, 1
      %s612 = scalar_select %p611, %s29, 1
      %s613 = scalar_lea.vmem %s6, %s612
      %p614 = scmp.lt.s32.totalorder %s29, 1
      %s615 = scalar_select %p614, %s29, 1
      %s616 = scalar_lea.vmem %s7, %s615
      %p617 = scmp.lt.s32.totalorder %s29, 1
      %s618 = scalar_select %p617, %s29, 1
      %s619 = scalar_lea.vmem %s8, %s618
      %p620 = scmp.lt.s32.totalorder %s29, 1
      %s621 = scalar_select %p620, %s29, 1
      %s622 = smul.addr %s621, 4
      %s623 = smul.addr %s622, 4
      %s624 = scalar_lea.vmem %s9, %s623
      %p625 = scmp.lt.s32.totalorder %s29, 1
      %s626 = scalar_select %p625, %s29, 1
      %s627 = scalar_lea.vmem %s10, %s626
      %p628 = scmp.lt.s32.totalorder %s29, 1
      %s629 = scalar_select %p628, %s29, 1
      %s630 = smul.addr %s629, 8
      %s631 = smul.addr %s630, 4
      %s632 = scalar_lea.vmem %s11, %s631
      %p633 = scmp.lt.s32.totalorder %s29, 1
      %s634 = scalar_select %p633, %s29, 1
      %s635 = scalar_lea.vmem %s12, %s634
      %p636 = scmp.lt.s32.totalorder %s28, 1
      %s637 = scalar_select %p636, %s28, 1
      %s638 = smul.addr %s637, 4
      %s639 = scalar_lea.vmem %s13, %s638
      %p641 = scmp.eq.s32.totalorder %s29, 0
      // Predicated region
      $region73: #{vision_transformer_forward.4} parent=71 // pred_check
        %p642 = pneg %p641
      $region74: #{vision_transformer_forward.4} parent=71 // pred_check_branch
        %644 = sbr.rel (%p642) target = $region76
      $region75: #{vision_transformer_forward.4} parent=71 // pred_region
        %v645 = vld [vmem:[%s591] sm:$0xf]
        %vm646 = vcmask 257024
        %647 = vst.msk [vmem:[%s639] sm:$0xf] %vm646, %v645
      $region76: #{vision_transformer_forward.4} parent=71 // pred_fallthru
        _
      %v648 = vld [vmem:[%s639] sm:$0xf]
      %v649 = vunpack.c.l.bf16 %v648
      %v650 = vld [vmem:[%s594] sm:$0x1]
      %v651 = vld [vmem:[%s597] sm:$0x1]
      %vm652 = vcmask 261120
      %v653 = vsel %vm652, %v649, 0.0
      %654 = vadd.xlane.f32.xlu0 %v653
      %v655 = vpop.xlane.xlu0 %654
      %v656 = vrcp.pop 32.0
      %v657 = vmul.f32 %v655, %v656
      %v658 = vsub.f32 %v649, %v657
      %v659 = vmul.f32 %v658, %v658
      %v660 = vsel %vm652, %v659, 0.0
      %661 = vadd.xlane.f32.xlu0 %v660
      %v662 = vpop.xlane.xlu0 %661
      %v663 = vmul.f32 %v662, %v656
      %v664 = vadd.f32 %v663, 1e-06
      %v665 = vrsqrt.pop %v664
      %v666 = vmul.f32 %v658, %v665
      %v667 = vunpack.c.l.bf16 %v650
      %v668 = vlaneseq
      %v669 = vshrl.u32 %v668, 7
      %v670 = vsub.s32 0, %v669
      %v671 = vrot.slane %v667, %v670
      %v672 = vmul.f32 %v666, %v671
      %v673 = vunpack.c.l.bf16 %v651
      %v674 = vlaneseq
      %v675 = vshrl.u32 %v674, 7
      %v676 = vsub.s32 0, %v675
      %v677 = vrot.slane %v673, %v676
      %v678 = vadd.f32 %v672, %v677
      %v679 = vpack.c.bf16 %v678, %v678
      %v680 = vld [vmem:[%s602] sm:$0xf]
      %v681 = vld [vmem:[%s602 + $0x4] sm:$0xf]
      %v682 = vld [vmem:[%s602 + $0x8] sm:$0xf]
      %v683 = vld [vmem:[%s602 + $0xc] sm:$0xf]
      %v684 = vld [vmem:[%s605] sm:$0x1]
      %v685 = vunpack.c.l.bf16 %v684
      %v686 = vlaneseq
      %v687 = vshrl.u32 %v686, 7
      %v688 = vsub.s32 0, %v687
      %v689 = vrot.slane %v685, %v688
      %v694 = vunpack.c.l.b16 %v680
      %v695 = vunpack.c.l.b16 %v681
      %v696 = vunpack.c.l.b16 %v682
      %v697 = vunpack.c.l.b16 %v683
      %v698 = vpack.c.b16 %v695, %v694
      %v699 = vpack.c.b16 %v697, %v696
      %v703 = vsel %vm652, %v679, 0
      %705 = vmatprep.subr.bf16.mxu0 0
      %706 = vmatpush1.bf16.msra.mxu0 %v698
      %707 = vmatprep.subr.bf16.mxu0 0
      %708 = vmatpush1.bf16.msra.mxu0 %v699
      %709 = vmatprep.subr.bf16.mxu0 0
      %710 = vmatpush1.bf16.msra.mxu0 0
      %711 = vmatprep.subr.bf16.mxu0 0
      %712 = vmatpush1.bf16.msra.mxu0 0
      %713 = vmatprep.subr.bf16.mxu0 0
      %714 = vmatpush1.bf16.msra.mxu0 0
      %715 = vmatprep.subr.bf16.mxu0 0
      %716 = vmatpush1.bf16.msra.mxu0 0
      %717 = vmatprep.subr.bf16.mxu0 0
      %718 = vmatpush1.bf16.msra.mxu0 0
      %719 = vmatprep.subr.bf16.mxu0 0
      %720 = vmatpush1.bf16.msra.mxu0 0
      %721 = vmatprep.subr.bf16.mxu0 0
      %722 = vmatpush1.bf16.msra.mxu0 0
      %723 = vmatprep.subr.bf16.mxu0 0
      %724 = vmatpush1.bf16.msra.mxu0 0
      %725 = vmatprep.subr.bf16.mxu0 0
      %726 = vmatpush1.bf16.msra.mxu0 0
      %727 = vmatprep.subr.bf16.mxu0 0
      %728 = vmatpush1.bf16.msra.mxu0 0
      %729 = vmatprep.subr.bf16.mxu0 0
      %730 = vmatpush1.bf16.msra.mxu0 0
      %731 = vmatprep.subr.bf16.mxu0 0
      %732 = vmatpush1.bf16.msra.mxu0 0
      %733 = vmatprep.subr.bf16.mxu0 0
      %734 = vmatpush1.bf16.msra.mxu0 0
      %735 = vmatprep.subr.bf16.mxu0 0
      %736 = vmatpush1.bf16.msra.mxu0 0
      %737 = vmatprep.mubr.bf16.mxu0 0
      %738 = vmatmul.mubr.bf16.gmra.mrb[0].mxu0 %v703
      %v739 = vpop.f32.mrb[0].mxu0
      %v740 = vadd.f32 %v689, %v739
      %v741 = vpop.f32.mrb[0].mxu0
      %v742 = vpop.f32.mrb[0].mxu0
      %v743 = vpop.f32.mrb[0].mxu0
      %744 = vdwg.mxu0
      %v745 = vpack.c.bf16 %v740, %v740
      %v746 = vlaneseq
      %v747 = vand.u32 %v746, 127
      %vm748 = vcmp.lt.s32.totalorder %v747, 5
      %v749 = vsel %vm748, 0.0, -1e+30
      %v750 = vld [vmem:[%s610] sm:$0xf]
      %v751 = vld [vmem:[%s610 + $0x4] sm:$0xf]
      %v752 = vld [vmem:[%s610 + $0x8] sm:$0xf]
      %v753 = vld [vmem:[%s610 + $0xc] sm:$0xf]
      %755 = vrot.lane.b32.xlu0 %v745, 96
      %v756 = vpop.permute.xlu0 %755
      %vm757 = vcmask 64512
      %v759 = vsel %vm757, %v745, 0
      %v762 = vsel %vm757, %v756, 0
      %764 = vmatprep.subr.bf16.mxu0 0
      %765 = vmatpush1.bf16.xpose.msra.mxu0 %v762
      %766 = vmatprep.subr.bf16.mxu0 0
      %767 = vmatpush1.bf16.xpose.msra.mxu0 0
      %768 = vmatprep.subr.bf16.mxu0 0
      %769 = vmatpush1.bf16.xpose.msra.mxu0 0
      %770 = vmatprep.subr.bf16.mxu0 0
      %771 = vmatpush1.bf16.xpose.msra.mxu0 0
      %772 = vmatprep.subr.bf16.mxu0 0
      %773 = vmatpush1.bf16.xpose.msra.mxu0 0
      %774 = vmatprep.subr.bf16.mxu0 0
      %775 = vmatpush1.bf16.xpose.msra.mxu0 0
      %776 = vmatprep.subr.bf16.mxu0 0
      %777 = vmatpush1.bf16.xpose.msra.mxu0 0
      %778 = vmatprep.subr.bf16.mxu0 0
      %779 = vmatpush1.bf16.xpose.msra.mxu0 0
      %780 = vmatprep.subr.bf16.mxu0 0
      %781 = vmatpush1.bf16.xpose.msra.mxu0 0
      %782 = vmatprep.subr.bf16.mxu0 0
      %783 = vmatpush1.bf16.xpose.msra.mxu0 0
      %784 = vmatprep.subr.bf16.mxu0 0
      %785 = vmatpush1.bf16.xpose.msra.mxu0 0
      %786 = vmatprep.subr.bf16.mxu0 0
      %787 = vmatpush1.bf16.xpose.msra.mxu0 0
      %788 = vmatprep.subr.bf16.mxu0 0
      %789 = vmatpush1.bf16.xpose.msra.mxu0 0
      %790 = vmatprep.subr.bf16.mxu0 0
      %791 = vmatpush1.bf16.xpose.msra.mxu0 0
      %792 = vmatprep.subr.bf16.mxu0 0
      %793 = vmatpush1.bf16.xpose.msra.mxu0 0
      %794 = vmatprep.subr.bf16.mxu0 0
      %795 = vmatpush1.bf16.xpose.msra.mxu0 0
      %796 = vmatprep.mubr.bf16.mxu0 0
      %797 = vmatmul.mubr.bf16.gmra.mrb[0].mxu0 %v759
      %v798 = vpop.f32.mrb[0].mxu0
      %v799 = vadd.f32 0.0, %v798
      %v800 = vpop.f32.mrb[0].mxu0
      %v801 = vpop.f32.mrb[0].mxu0
      %v802 = vpop.f32.mrb[0].mxu0
      %803 = vdwg.mxu0
      %v804 = vmul.f32 %v799, 0.35355338
      %v805 = vadd.f32 %v804, %v749
      %v806 = vsel %vm757, %v805, -inf
      %807 = vmax.xlane.f32.xlu0 %v806
      %v808 = vpop.xlane.xlu0 %807
      %v809 = vsub.f32 %v805, %v808
      %v810 = vmul.f32 %v809, 1.442695
      %v811 = vpow.pop %v810
      %v812 = vsel %vm757, %v811, 0.0
      %813 = vadd.xlane.f32.xlu0 %v812
      %v814 = vpop.xlane.xlu0 %813
      %v815 = vrcp.pop %v814
      %v816 = vmul.f32 %v811, %v815
      %v817 = vpack.c.bf16 %v816, %v816
      %818 = vrot.lane.b32.xlu0 %v745, 64
      %v819 = vpop.permute.xlu0 %818
      %v821 = vsel %vm757, %v817, 0
      %vm823 = vcmask 1043456
      %v825 = vsel %vm823, %v819, 0
      %827 = vmatprep.subr.bf16.mxu0 0
      %828 = vmatpush1.bf16.msra.mxu0 %v825
      %829 = vmatprep.subr.bf16.mxu0 0
      %830 = vmatpush1.bf16.msra.mxu0 0
      %831 = vmatprep.subr.bf16.mxu0 0
      %832 = vmatpush1.bf16.msra.mxu0 0
      %833 = vmatprep.subr.bf16.mxu0 0
      %834 = vmatpush1.bf16.msra.mxu0 0
      %835 = vmatprep.subr.bf16.mxu0 0
      %836 = vmatpush1.bf16.msra.mxu0 0
      %837 = vmatprep.subr.bf16.mxu0 0
      %838 = vmatpush1.bf16.msra.mxu0 0
      %839 = vmatprep.subr.bf16.mxu0 0
      %840 = vmatpush1.bf16.msra.mxu0 0
      %841 = vmatprep.subr.bf16.mxu0 0
      %842 = vmatpush1.bf16.msra.mxu0 0
      %843 = vmatprep.subr.bf16.mxu0 0
      %844 = vmatpush1.bf16.msra.mxu0 0
      %845 = vmatprep.subr.bf16.mxu0 0
      %846 = vmatpush1.bf16.msra.mxu0 0
      %847 = vmatprep.subr.bf16.mxu0 0
      %848 = vmatpush1.bf16.msra.mxu0 0
      %849 = vmatprep.subr.bf16.mxu0 0
      %850 = vmatpush1.bf16.msra.mxu0 0
      %851 = vmatprep.subr.bf16.mxu0 0
      %852 = vmatpush1.bf16.msra.mxu0 0
      %853 = vmatprep.subr.bf16.mxu0 0
      %854 = vmatpush1.bf16.msra.mxu0 0
      %855 = vmatprep.subr.bf16.mxu0 0
      %856 = vmatpush1.bf16.msra.mxu0 0
      %857 = vmatprep.subr.bf16.mxu0 0
      %858 = vmatpush1.bf16.msra.mxu0 0
      %859 = vmatprep.mubr.bf16.mxu0 0
      %860 = vmatmul.mubr.bf16.gmra.mrb[0].mxu0 %v821
      %v861 = vpop.f32.mrb[0].mxu0
      %v862 = vadd.f32 0.0, %v861
      %v863 = vpop.f32.mrb[0].mxu0
      %v864 = vpop.f32.mrb[0].mxu0
      %v865 = vpop.f32.mrb[0].mxu0
      %866 = vdwg.mxu0
      %v867 = vpack.c.bf16 %v862, %v862
      %868 = vrot.lane.b32.xlu0 %v745, 120
      %v869 = vpop.permute.xlu0 %868
      %870 = vrot.lane.b32.xlu0 %v745, 88
      %v871 = vpop.permute.xlu0 %870
      %v873 = vsel %vm757, %v869, 0
      %v876 = vsel %vm757, %v871, 0
      %878 = vmatprep.subr.bf16.mxu0 0
      %879 = vmatpush1.bf16.xpose.msra.mxu0 %v876
      %880 = vmatprep.subr.bf16.mxu0 0
      %881 = vmatpush1.bf16.xpose.msra.mxu0 0
      %882 = vmatprep.subr.bf16.mxu0 0
      %883 = vmatpush1.bf16.xpose.msra.mxu0 0
      %884 = vmatprep.subr.bf16.mxu0 0
      %885 = vmatpush1.bf16.xpose.msra.mxu0 0
      %886 = vmatprep.subr.bf16.mxu0 0
      %887 = vmatpush1.bf16.xpose.msra.mxu0 0
      %888 = vmatprep.subr.bf16.mxu0 0
      %889 = vmatpush1.bf16.xpose.msra.mxu0 0
      %890 = vmatprep.subr.bf16.mxu0 0
      %891 = vmatpush1.bf16.xpose.msra.mxu0 0
      %892 = vmatprep.subr.bf16.mxu0 0
      %893 = vmatpush1.bf16.xpose.msra.mxu0 0
      %894 = vmatprep.subr.bf16.mxu0 0
      %895 = vmatpush1.bf16.xpose.msra.mxu0 0
      %896 = vmatprep.subr.bf16.mxu0 0
      %897 = vmatpush1.bf16.xpose.msra.mxu0 0
      %898 = vmatprep.subr.bf16.mxu0 0
      %899 = vmatpush1.bf16.xpose.msra.mxu0 0
      %900 = vmatprep.subr.bf16.mxu0 0
      %901 = vmatpush1.bf16.xpose.msra.mxu0 0
      %902 = vmatprep.subr.bf16.mxu0 0
      %903 = vmatpush1.bf16.xpose.msra.mxu0 0
      %904 = vmatprep.subr.bf16.mxu0 0
      %905 = vmatpush1.bf16.xpose.msra.mxu0 0
      %906 = vmatprep.subr.bf16.mxu0 0
      %907 = vmatpush1.bf16.xpose.msra.mxu0 0
      %908 = vmatprep.subr.bf16.mxu0 0
      %909 = vmatpush1.bf16.xpose.msra.mxu0 0
      %910 = vmatprep.mubr.bf16.mxu0 0
      %911 = vmatmul.mubr.bf16.gmra.mrb[0].mxu0 %v873
      %v912 = vpop.f32.mrb[0].mxu0
      %v913 = vadd.f32 0.0, %v912
      %v914 = vpop.f32.mrb[0].mxu0
      %v915 = vpop.f32.mrb[0].mxu0
      %v916 = vpop.f32.mrb[0].mxu0
      %917 = vdwg.mxu0
      %v918 = vmul.f32 %v913, 0.35355338
      %v919 = vadd.f32 %v918, %v749
      %v920 = vsel %vm757, %v919, -inf
      %921 = vmax.xlane.f32.xlu0 %v920
      %v922 = vpop.xlane.xlu0 %921
      %v923 = vsub.f32 %v919, %v922
      %v924 = vmul.f32 %v923, 1.442695
      %v925 = vpow.pop %v924
      %v926 = vsel %vm757, %v925, 0.0
      %927 = vadd.xlane.f32.xlu0 %v926
      %v928 = vpop.xlane.xlu0 %927
      %v929 = vrcp.pop %v928
      %v930 = vmul.f32 %v925, %v929
      %v931 = vpack.c.bf16 %v930, %v930
      %932 = vrot.lane.b32.xlu0 %v745, 56
      %v933 = vpop.permute.xlu0 %932
      %v935 = vsel %vm757, %v931, 0
      %v938 = vsel %vm823, %v933, 0
      %940 = vmatprep.subr.bf16.mxu0 0
      %941 = vmatpush1.bf16.msra.mxu0 %v938
      %942 = vmatprep.subr.bf16.mxu0 0
      %943 = vmatpush1.bf16.msra.mxu0 0
      %944 = vmatprep.subr.bf16.mxu0 0
      %945 = vmatpush1.bf16.msra.mxu0 0
      %946 = vmatprep.subr.bf16.mxu0 0
      %947 = vmatpush1.bf16.msra.mxu0 0
      %948 = vmatprep.subr.bf16.mxu0 0
      %949 = vmatpush1.bf16.msra.mxu0 0
      %950 = vmatprep.subr.bf16.mxu0 0
      %951 = vmatpush1.bf16.msra.mxu0 0
      %952 = vmatprep.subr.bf16.mxu0 0
      %953 = vmatpush1.bf16.msra.mxu0 0
      %954 = vmatprep.subr.bf16.mxu0 0
      %955 = vmatpush1.bf16.msra.mxu0 0
      %956 = vmatprep.subr.bf16.mxu0 0
      %957 = vmatpush1.bf16.msra.mxu0 0
      %958 = vmatprep.subr.bf16.mxu0 0
      %959 = vmatpush1.bf16.msra.mxu0 0
      %960 = vmatprep.subr.bf16.mxu0 0
      %961 = vmatpush1.bf16.msra.mxu0 0
      %962 = vmatprep.subr.bf16.mxu0 0
      %963 = vmatpush1.bf16.msra.mxu0 0
      %964 = vmatprep.subr.bf16.mxu0 0
      %965 = vmatpush1.bf16.msra.mxu0 0
      %966 = vmatprep.subr.bf16.mxu0 0
      %967 = vmatpush1.bf16.msra.mxu0 0
      %968 = vmatprep.subr.bf16.mxu0 0
      %969 = vmatpush1.bf16.msra.mxu0 0
      %970 = vmatprep.subr.bf16.mxu0 0
      %971 = vmatpush1.bf16.msra.mxu0 0
      %972 = vmatprep.mubr.bf16.mxu0 0
      %973 = vmatmul.mubr.bf16.gmra.mrb[0].mxu0 %v935
      %v974 = vpop.f32.mrb[0].mxu0
      %v975 = vadd.f32 0.0, %v974
      %v976 = vpop.f32.mrb[0].mxu0
      %v977 = vpop.f32.mrb[0].mxu0
      %v978 = vpop.f32.mrb[0].mxu0
      %979 = vdwg.mxu0
      %v980 = vpack.c.bf16 %v975, %v975
      %v982 = vsel %vm757, %v980, 0
      %v985 = vsel %vm823, %v751, 0
      %987 = vmatprep.subr.bf16.mxu0 0
      %988 = vmatpush1.bf16.msra.mxu0 %v985
      %989 = vmatprep.subr.bf16.mxu0 0
      %990 = vmatpush1.bf16.msra.mxu0 0
      %991 = vmatprep.subr.bf16.mxu0 0
      %992 = vmatpush1.bf16.msra.mxu0 0
      %993 = vmatprep.subr.bf16.mxu0 0
      %994 = vmatpush1.bf16.msra.mxu0 0
      %995 = vmatprep.subr.bf16.mxu0 0
      %996 = vmatpush1.bf16.msra.mxu0 0
      %997 = vmatprep.subr.bf16.mxu0 0
      %998 = vmatpush1.bf16.msra.mxu0 0
      %999 = vmatprep.subr.bf16.mxu0 0
      %1000 = vmatpush1.bf16.msra.mxu0 0
      %1001 = vmatprep.subr.bf16.mxu0 0
      %1002 = vmatpush1.bf16.msra.mxu0 0
      %1003 = vmatprep.subr.bf16.mxu0 0
      %1004 = vmatpush1.bf16.msra.mxu0 0
      %1005 = vmatprep.subr.bf16.mxu0 0
      %1006 = vmatpush1.bf16.msra.mxu0 0
      %1007 = vmatprep.subr.bf16.mxu0 0
      %1008 = vmatpush1.bf16.msra.mxu0 0
      %1009 = vmatprep.subr.bf16.mxu0 0
      %1010 = vmatpush1.bf16.msra.mxu0 0
      %1011 = vmatprep.subr.bf16.mxu0 0
      %1012 = vmatpush1.bf16.msra.mxu0 0
      %1013 = vmatprep.subr.bf16.mxu0 0
      %1014 = vmatpush1.bf16.msra.mxu0 0
      %1015 = vmatprep.subr.bf16.mxu0 0
      %1016 = vmatpush1.bf16.msra.mxu0 0
      %1017 = vmatprep.subr.bf16.mxu0 0
      %1018 = vmatpush1.bf16.msra.mxu0 0
      %1019 = vmatprep.mubr.bf16.mxu0 0
      %1020 = vmatmul.mubr.bf16.gmra.mrb[0].mxu0 %v982
      %v1021 = vpop.f32.mrb[0].mxu0
      %v1022 = vadd.f32 0.0, %v1021
      %v1023 = vpop.f32.mrb[0].mxu0
      %v1024 = vpop.f32.mrb[0].mxu0
      %v1025 = vpop.f32.mrb[0].mxu0
      %1026 = vdwg.mxu0
      %v1028 = vsel %vm757, %v867, 0
      %v1031 = vsel %vm823, %v750, 0
      %1033 = vmatprep.subr.bf16.mxu0 0
      %1034 = vmatpush1.bf16.msra.mxu0 %v1031
      %1035 = vmatprep.subr.bf16.mxu0 0
      %1036 = vmatpush1.bf16.msra.mxu0 0
      %1037 = vmatprep.subr.bf16.mxu0 0
      %1038 = vmatpush1.bf16.msra.mxu0 0
      %1039 = vmatprep.subr.bf16.mxu0 0
      %1040 = vmatpush1.bf16.msra.mxu0 0
      %1041 = vmatprep.subr.bf16.mxu0 0
      %1042 = vmatpush1.bf16.msra.mxu0 0
      %1043 = vmatprep.subr.bf16.mxu0 0
      %1044 = vmatpush1.bf16.msra.mxu0 0
      %1045 = vmatprep.subr.bf16.mxu0 0
      %1046 = vmatpush1.bf16.msra.mxu0 0
      %1047 = vmatprep.subr.bf16.mxu0 0
      %1048 = vmatpush1.bf16.msra.mxu0 0
      %1049 = vmatprep.subr.bf16.mxu0 0
      %1050 = vmatpush1.bf16.msra.mxu0 0
      %1051 = vmatprep.subr.bf16.mxu0 0
      %1052 = vmatpush1.bf16.msra.mxu0 0
      %1053 = vmatprep.subr.bf16.mxu0 0
      %1054 = vmatpush1.bf16.msra.mxu0 0
      %1055 = vmatprep.subr.bf16.mxu0 0
      %1056 = vmatpush1.bf16.msra.mxu0 0
      %1057 = vmatprep.subr.bf16.mxu0 0
      %1058 = vmatpush1.bf16.msra.mxu0 0
      %1059 = vmatprep.subr.bf16.mxu0 0
      %1060 = vmatpush1.bf16.msra.mxu0 0
      %1061 = vmatprep.subr.bf16.mxu0 0
      %1062 = vmatpush1.bf16.msra.mxu0 0
      %1063 = vmatprep.subr.bf16.mxu0 0
      %1064 = vmatpush1.bf16.msra.mxu0 0
      %1065 = vmatprep.mubr.bf16.mxu0 0
      %1066 = vmatmul.mubr.bf16.gmra.mrb[0].mxu0 %v1028
      %v1067 = vpop.f32.mrb[0].mxu0
      %v1068 = vadd.f32 %v1022, %v1067
      %v1069 = vpop.f32.mrb[0].mxu0
      %v1070 = vpop.f32.mrb[0].mxu0
      %v1071 = vpop.f32.mrb[0].mxu0
      %1072 = vdwg.mxu0
      %1073 = vrot.lane.b32.xlu0 %v745, 112
      %v1074 = vpop.permute.xlu0 %1073
      %1075 = vrot.lane.b32.xlu0 %v745, 80
      %v1076 = vpop.permute.xlu0 %1075
      %v1078 = vsel %vm757, %v1074, 0
      %v1081 = vsel %vm757, %v1076, 0
      %1083 = vmatprep.subr.bf16.mxu0 0
      %1084 = vmatpush1.bf16.xpose.msra.mxu0 %v1081
      %1085 = vmatprep.subr.bf16.mxu0 0
      %1086 = vmatpush1.bf16.xpose.msra.mxu0 0
      %1087 = vmatprep.subr.bf16.mxu0 0
      %1088 = vmatpush1.bf16.xpose.msra.mxu0 0
      %1089 = vmatprep.subr.bf16.mxu0 0
      %1090 = vmatpush1.bf16.xpose.msra.mxu0 0
      %1091 = vmatprep.subr.bf16.mxu0 0
      %1092 = vmatpush1.bf16.xpose.msra.mxu0 0
      %1093 = vmatprep.subr.bf16.mxu0 0
      %1094 = vmatpush1.bf16.xpose.msra.mxu0 0
      %1095 = vmatprep.subr.bf16.mxu0 0
      %1096 = vmatpush1.bf16.xpose.msra.mxu0 0
      %1097 = vmatprep.subr.bf16.mxu0 0
      %1098 = vmatpush1.bf16.xpose.msra.mxu0 0
      %1099 = vmatprep.subr.bf16.mxu0 0
      %1100 = vmatpush1.bf16.xpose.msra.mxu0 0
      %1101 = vmatprep.subr.bf16.mxu0 0
      %1102 = vmatpush1.bf16.xpose.msra.mxu0 0
      %1103 = vmatprep.subr.bf16.mxu0 0
      %1104 = vmatpush1.bf16.xpose.msra.mxu0 0
      %1105 = vmatprep.subr.bf16.mxu0 0
      %1106 = vmatpush1.bf16.xpose.msra.mxu0 0
      %1107 = vmatprep.subr.bf16.mxu0 0
      %1108 = vmatpush1.bf16.xpose.msra.mxu0 0
      %1109 = vmatprep.subr.bf16.mxu0 0
      %1110 = vmatpush1.bf16.xpose.msra.mxu0 0
      %1111 = vmatprep.subr.bf16.mxu0 0
      %1112 = vmatpush1.bf16.xpose.msra.mxu0 0
      %1113 = vmatprep.subr.bf16.mxu0 0
      %1114 = vmatpush1.bf16.xpose.msra.mxu0 0
      %1115 = vmatprep.mubr.bf16.mxu0 0
      %1116 = vmatmul.mubr.bf16.gmra.mrb[0].mxu0 %v1078
      %v1117 = vpop.f32.mrb[0].mxu0
      %v1118 = vadd.f32 0.0, %v1117
      %v1119 = vpop.f32.mrb[0].mxu0
      %v1120 = vpop.f32.mrb[0].mxu0
      %v1121 = vpop.f32.mrb[0].mxu0
      %1122 = vdwg.mxu0
      %v1123 = vmul.f32 %v1118, 0.35355338
      %v1124 = vadd.f32 %v1123, %v749
      %v1125 = vsel %vm757, %v1124, -inf
      %1126 = vmax.xlane.f32.xlu0 %v1125
      %v1127 = vpop.xlane.xlu0 %1126
      %v1128 = vsub.f32 %v1124, %v1127
      %v1129 = vmul.f32 %v1128, 1.442695
      %v1130 = vpow.pop %v1129
      %v1131 = vsel %vm757, %v1130, 0.0
      %1132 = vadd.xlane.f32.xlu0 %v1131
      %v1133 = vpop.xlane.xlu0 %1132
      %v1134 = vrcp.pop %v1133
      %v1135 = vmul.f32 %v1130, %v1134
      %v1136 = vpack.c.bf16 %v1135, %v1135
      %1137 = vrot.lane.b32.xlu0 %v745, 48
      %v1138 = vpop.permute.xlu0 %1137
      %v1140 = vsel %vm757, %v1136, 0
      %v1143 = vsel %vm823, %v1138, 0
      %1145 = vmatprep.subr.bf16.mxu0 0
      %1146 = vmatpush1.bf16.msra.mxu0 %v1143
      %1147 = vmatprep.subr.bf16.mxu0 0
      %1148 = vmatpush1.bf16.msra.mxu0 0
      %1149 = vmatprep.subr.bf16.mxu0 0
      %1150 = vmatpush1.bf16.msra.mxu0 0
      %1151 = vmatprep.subr.bf16.mxu0 0
      %1152 = vmatpush1.bf16.msra.mxu0 0
      %1153 = vmatprep.subr.bf16.mxu0 0
      %1154 = vmatpush1.bf16.msra.mxu0 0
      %1155 = vmatprep.subr.bf16.mxu0 0
      %1156 = vmatpush1.bf16.msra.mxu0 0
      %1157 = vmatprep.subr.bf16.mxu0 0
      %1158 = vmatpush1.bf16.msra.mxu0 0
      %1159 = vmatprep.subr.bf16.mxu0 0
      %1160 = vmatpush1.bf16.msra.mxu0 0
      %1161 = vmatprep.subr.bf16.mxu0 0
      %1162 = vmatpush1.bf16.msra.mxu0 0
      %1163 = vmatprep.subr.bf16.mxu0 0
      %1164 = vmatpush1.bf16.msra.mxu0 0
      %1165 = vmatprep.subr.bf16.mxu0 0
      %1166 = vmatpush1.bf16.msra.mxu0 0
      %1167 = vmatprep.subr.bf16.mxu0 0
      %1168 = vmatpush1.bf16.msra.mxu0 0
      %1169 = vmatprep.subr.bf16.mxu0 0
      %1170 = vmatpush1.bf16.msra.mxu0 0
      %1171 = vmatprep.subr.bf16.mxu0 0
      %1172 = vmatpush1.bf16.msra.mxu0 0
      %1173 = vmatprep.subr.bf16.mxu0 0
      %1174 = vmatpush1.bf16.msra.mxu0 0
      %1175 = vmatprep.subr.bf16.mxu0 0
      %1176 = vmatpush1.bf16.msra.mxu0 0
      %1177 = vmatprep.mubr.bf16.mxu0 0
      %1178 = vmatmul.mubr.bf16.gmra.mrb[0].mxu0 %v1140
      %v1179 = vpop.f32.mrb[0].mxu0
      %v1180 = vadd.f32 0.0, %v1179
      %v1181 = vpop.f32.mrb[0].mxu0
      %v1182 = vpop.f32.mrb[0].mxu0
      %v1183 = vpop.f32.mrb[0].mxu0
      %1184 = vdwg.mxu0
      %v1185 = vpack.c.bf16 %v1180, %v1180
      %v1187 = vsel %vm757, %v1185, 0
      %v1190 = vsel %vm823, %v752, 0
      %1192 = vmatprep.subr.bf16.mxu0 0
      %1193 = vmatpush1.bf16.msra.mxu0 %v1190
      %1194 = vmatprep.subr.bf16.mxu0 0
      %1195 = vmatpush1.bf16.msra.mxu0 0
      %1196 = vmatprep.subr.bf16.mxu0 0
      %1197 = vmatpush1.bf16.msra.mxu0 0
      %1198 = vmatprep.subr.bf16.mxu0 0
      %1199 = vmatpush1.bf16.msra.mxu0 0
      %1200 = vmatprep.subr.bf16.mxu0 0
      %1201 = vmatpush1.bf16.msra.mxu0 0
      %1202 = vmatprep.subr.bf16.mxu0 0
      %1203 = vmatpush1.bf16.msra.mxu0 0
      %1204 = vmatprep.subr.bf16.mxu0 0
      %1205 = vmatpush1.bf16.msra.mxu0 0
      %1206 = vmatprep.subr.bf16.mxu0 0
      %1207 = vmatpush1.bf16.msra.mxu0 0
      %1208 = vmatprep.subr.bf16.mxu0 0
      %1209 = vmatpush1.bf16.msra.mxu0 0
      %1210 = vmatprep.subr.bf16.mxu0 0
      %1211 = vmatpush1.bf16.msra.mxu0 0
      %1212 = vmatprep.subr.bf16.mxu0 0
      %1213 = vmatpush1.bf16.msra.mxu0 0
      %1214 = vmatprep.subr.bf16.mxu0 0
      %1215 = vmatpush1.bf16.msra.mxu0 0
      %1216 = vmatprep.subr.bf16.mxu0 0
      %1217 = vmatpush1.bf16.msra.mxu0 0
      %1218 = vmatprep.subr.bf16.mxu0 0
      %1219 = vmatpush1.bf16.msra.mxu0 0
      %1220 = vmatprep.subr.bf16.mxu0 0
      %1221 = vmatpush1.bf16.msra.mxu0 0
      %1222 = vmatprep.subr.bf16.mxu0 0
      %1223 = vmatpush1.bf16.msra.mxu0 0
      %1224 = vmatprep.mubr.bf16.mxu0 0
      %1225 = vmatmul.mubr.bf16.gmra.mrb[0].mxu0 %v1187
      %v1226 = vpop.f32.mrb[0].mxu0
      %v1227 = vadd.f32 0.0, %v1226
      %v1228 = vpop.f32.mrb[0].mxu0
      %v1229 = vpop.f32.mrb[0].mxu0
      %v1230 = vpop.f32.mrb[0].mxu0
      %1231 = vdwg.mxu0
      %v1232 = vadd.f32 %v1068, %v1227
      %1233 = vrot.lane.b32.xlu0 %v745, 104
      %v1234 = vpop.permute.xlu0 %1233
      %1235 = vrot.lane.b32.xlu0 %v745, 72
      %v1236 = vpop.permute.xlu0 %1235
      %v1238 = vsel %vm757, %v1234, 0
      %v1241 = vsel %vm757, %v1236, 0
      %1243 = vmatprep.subr.bf16.mxu0 0
      %1244 = vmatpush1.bf16.xpose.msra.mxu0 %v1241
      %1245 = vmatprep.subr.bf16.mxu0 0
      %1246 = vmatpush1.bf16.xpose.msra.mxu0 0
      %1247 = vmatprep.subr.bf16.mxu0 0
      %1248 = vmatpush1.bf16.xpose.msra.mxu0 0
      %1249 = vmatprep.subr.bf16.mxu0 0
      %1250 = vmatpush1.bf16.xpose.msra.mxu0 0
      %1251 = vmatprep.subr.bf16.mxu0 0
      %1252 = vmatpush1.bf16.xpose.msra.mxu0 0
      %1253 = vmatprep.subr.bf16.mxu0 0
      %1254 = vmatpush1.bf16.xpose.msra.mxu0 0
      %1255 = vmatprep.subr.bf16.mxu0 0
      %1256 = vmatpush1.bf16.xpose.msra.mxu0 0
      %1257 = vmatprep.subr.bf16.mxu0 0
      %1258 = vmatpush1.bf16.xpose.msra.mxu0 0
      %1259 = vmatprep.subr.bf16.mxu0 0
      %1260 = vmatpush1.bf16.xpose.msra.mxu0 0
      %1261 = vmatprep.subr.bf16.mxu0 0
      %1262 = vmatpush1.bf16.xpose.msra.mxu0 0
      %1263 = vmatprep.subr.bf16.mxu0 0
      %1264 = vmatpush1.bf16.xpose.msra.mxu0 0
      %1265 = vmatprep.subr.bf16.mxu0 0
      %1266 = vmatpush1.bf16.xpose.msra.mxu0 0
      %1267 = vmatprep.subr.bf16.mxu0 0
      %1268 = vmatpush1.bf16.xpose.msra.mxu0 0
      %1269 = vmatprep.subr.bf16.mxu0 0
      %1270 = vmatpush1.bf16.xpose.msra.mxu0 0
      %1271 = vmatprep.subr.bf16.mxu0 0
      %1272 = vmatpush1.bf16.xpose.msra.mxu0 0
      %1273 = vmatprep.subr.bf16.mxu0 0
      %1274 = vmatpush1.bf16.xpose.msra.mxu0 0
      %1275 = vmatprep.mubr.bf16.mxu0 0
      %1276 = vmatmul.mubr.bf16.gmra.mrb[0].mxu0 %v1238
      %v1277 = vpop.f32.mrb[0].mxu0
      %v1278 = vadd.f32 0.0, %v1277
      %v1279 = vpop.f32.mrb[0].mxu0
      %v1280 = vpop.f32.mrb[0].mxu0
      %v1281 = vpop.f32.mrb[0].mxu0
      %1282 = vdwg.mxu0
      %v1283 = vmul.f32 %v1278, 0.35355338
      %v1284 = vadd.f32 %v1283, %v749
      %v1285 = vsel %vm757, %v1284, -inf
      %1286 = vmax.xlane.f32.xlu0 %v1285
      %v1287 = vpop.xlane.xlu0 %1286
      %v1288 = vsub.f32 %v1284, %v1287
      %v1289 = vmul.f32 %v1288, 1.442695
      %v1290 = vpow.pop %v1289
      %v1291 = vsel %vm757, %v1290, 0.0
      %1292 = vadd.xlane.f32.xlu0 %v1291
      %v1293 = vpop.xlane.xlu0 %1292
      %v1294 = vrcp.pop %v1293
      %v1295 = vmul.f32 %v1290, %v1294
      %v1296 = vpack.c.bf16 %v1295, %v1295
      %1297 = vrot.lane.b32.xlu0 %v745, 40
      %v1298 = vpop.permute.xlu0 %1297
      %v1300 = vsel %vm757, %v1296, 0
      %v1303 = vsel %vm823, %v1298, 0
      %1305 = vmatprep.subr.bf16.mxu0 0
      %1306 = vmatpush1.bf16.msra.mxu0 %v1303
      %1307 = vmatprep.subr.bf16.mxu0 0
      %1308 = vmatpush1.bf16.msra.mxu0 0
      %1309 = vmatprep.subr.bf16.mxu0 0
      %1310 = vmatpush1.bf16.msra.mxu0 0
      %1311 = vmatprep.subr.bf16.mxu0 0
      %1312 = vmatpush1.bf16.msra.mxu0 0
      %1313 = vmatprep.subr.bf16.mxu0 0
      %1314 = vmatpush1.bf16.msra.mxu0 0
      %1315 = vmatprep.subr.bf16.mxu0 0
      %1316 = vmatpush1.bf16.msra.mxu0 0
      %1317 = vmatprep.subr.bf16.mxu0 0
      %1318 = vmatpush1.bf16.msra.mxu0 0
      %1319 = vmatprep.subr.bf16.mxu0 0
      %1320 = vmatpush1.bf16.msra.mxu0 0
      %1321 = vmatprep.subr.bf16.mxu0 0
      %1322 = vmatpush1.bf16.msra.mxu0 0
      %1323 = vmatprep.subr.bf16.mxu0 0
      %1324 = vmatpush1.bf16.msra.mxu0 0
      %1325 = vmatprep.subr.bf16.mxu0 0
      %1326 = vmatpush1.bf16.msra.mxu0 0
      %1327 = vmatprep.subr.bf16.mxu0 0
      %1328 = vmatpush1.bf16.msra.mxu0 0
      %1329 = vmatprep.subr.bf16.mxu0 0
      %1330 = vmatpush1.bf16.msra.mxu0 0
      %1331 = vmatprep.subr.bf16.mxu0 0
      %1332 = vmatpush1.bf16.msra.mxu0 0
      %1333 = vmatprep.subr.bf16.mxu0 0
      %1334 = vmatpush1.bf16.msra.mxu0 0
      %1335 = vmatprep.subr.bf16.mxu0 0
      %1336 = vmatpush1.bf16.msra.mxu0 0
      %1337 = vmatprep.mubr.bf16.mxu0 0
      %1338 = vmatmul.mubr.bf16.gmra.mrb[0].mxu0 %v1300
      %v1339 = vpop.f32.mrb[0].mxu0
      %v1340 = vadd.f32 0.0, %v1339
      %v1341 = vpop.f32.mrb[0].mxu0
      %v1342 = vpop.f32.mrb[0].mxu0
      %v1343 = vpop.f32.mrb[0].mxu0
      %1344 = vdwg.mxu0
      %v1345 = vpack.c.bf16 %v1340, %v1340
      %v1347 = vsel %vm757, %v1345, 0
      %v1350 = vsel %vm823, %v753, 0
      %1352 = vmatprep.subr.bf16.mxu0 0
      %1353 = vmatpush1.bf16.msra.mxu0 %v1350
      %1354 = vmatprep.subr.bf16.mxu0 0
      %1355 = vmatpush1.bf16.msra.mxu0 0
      %1356 = vmatprep.subr.bf16.mxu0 0
      %1357 = vmatpush1.bf16.msra.mxu0 0
      %1358 = vmatprep.subr.bf16.mxu0 0
      %1359 = vmatpush1.bf16.msra.mxu0 0
      %1360 = vmatprep.subr.bf16.mxu0 0
      %1361 = vmatpush1.bf16.msra.mxu0 0
      %1362 = vmatprep.subr.bf16.mxu0 0
      %1363 = vmatpush1.bf16.msra.mxu0 0
      %1364 = vmatprep.subr.bf16.mxu0 0
      %1365 = vmatpush1.bf16.msra.mxu0 0
      %1366 = vmatprep.subr.bf16.mxu0 0
      %1367 = vmatpush1.bf16.msra.mxu0 0
      %1368 = vmatprep.subr.bf16.mxu0 0
      %1369 = vmatpush1.bf16.msra.mxu0 0
      %1370 = vmatprep.subr.bf16.mxu0 0
      %1371 = vmatpush1.bf16.msra.mxu0 0
      %1372 = vmatprep.subr.bf16.mxu0 0
      %1373 = vmatpush1.bf16.msra.mxu0 0
      %1374 = vmatprep.subr.bf16.mxu0 0
      %1375 = vmatpush1.bf16.msra.mxu0 0
      %1376 = vmatprep.subr.bf16.mxu0 0
      %1377 = vmatpush1.bf16.msra.mxu0 0
      %1378 = vmatprep.subr.bf16.mxu0 0
      %1379 = vmatpush1.bf16.msra.mxu0 0
      %1380 = vmatprep.subr.bf16.mxu0 0
      %1381 = vmatpush1.bf16.msra.mxu0 0
      %1382 = vmatprep.subr.bf16.mxu0 0
      %1383 = vmatpush1.bf16.msra.mxu0 0
      %1384 = vmatprep.mubr.bf16.mxu0 0
      %1385 = vmatmul.mubr.bf16.gmra.mrb[0].mxu0 %v1347
      %v1386 = vpop.f32.mrb[0].mxu0
      %v1387 = vadd.f32 0.0, %v1386
      %v1388 = vpop.f32.mrb[0].mxu0
      %v1389 = vpop.f32.mrb[0].mxu0
      %v1390 = vpop.f32.mrb[0].mxu0
      %1391 = vdwg.mxu0
      %v1392 = vadd.f32 %v1232, %v1387
      %v1393 = vadd.f32 %v649, %v1392
      %v1394 = vld [vmem:[%s613] sm:$0x1]
      %v1395 = vunpack.c.l.bf16 %v1394
      %v1396 = vlaneseq
      %v1397 = vshrl.u32 %v1396, 7
      %v1398 = vsub.s32 0, %v1397
      %v1399 = vrot.slane %v1395, %v1398
      %v1400 = vadd.f32 %v1393, %v1399
      %v1401 = vld [vmem:[%s616] sm:$0x1]
      %v1402 = vld [vmem:[%s619] sm:$0x1]
      %v1403 = vsel %vm652, %v1400, 0.0
      %1404 = vadd.xlane.f32.xlu0 %v1403
      %v1405 = vpop.xlane.xlu0 %1404
      %v1406 = vmul.f32 %v1405, %v656
      %v1407 = vsub.f32 %v1400, %v1406
      %v1408 = vmul.f32 %v1407, %v1407
      %v1409 = vsel %vm652, %v1408, 0.0
      %1410 = vadd.xlane.f32.xlu0 %v1409
      %v1411 = vpop.xlane.xlu0 %1410
      %v1412 = vmul.f32 %v1411, %v656
      %v1413 = vadd.f32 %v1412, 1e-06
      %v1414 = vrsqrt.pop %v1413
      %v1415 = vmul.f32 %v1407, %v1414
      %v1416 = vunpack.c.l.bf16 %v1401
      %v1417 = vlaneseq
      %v1418 = vshrl.u32 %v1417, 7
      %v1419 = vsub.s32 0, %v1418
      %v1420 = vrot.slane %v1416, %v1419
      %v1421 = vmul.f32 %v1415, %v1420
      %v1422 = vunpack.c.l.bf16 %v1402
      %v1423 = vlaneseq
      %v1424 = vshrl.u32 %v1423, 7
      %v1425 = vsub.s32 0, %v1424
      %v1426 = vrot.slane %v1422, %v1425
      %v1427 = vadd.f32 %v1421, %v1426
      %v1428 = vpack.c.bf16 %v1427, %v1427
      %v1429 = vld [vmem:[%s624] sm:$0xf]
      %v1430 = vld [vmem:[%s624 + $0x4] sm:$0xf]
      %v1431 = vld [vmem:[%s624 + $0x8] sm:$0xf]
      %v1432 = vld [vmem:[%s624 + $0xc] sm:$0xf]
      %v1433 = vld [vmem:[%s627] sm:$0x1]
      %v1434 = vunpack.c.l.bf16 %v1433
      %v1435 = vlaneseq
      %v1436 = vshrl.u32 %v1435, 7
      %v1437 = vsub.s32 0, %v1436
      %v1438 = vrot.slane %v1434, %v1437
      %v1443 = vunpack.c.l.b16 %v1429
      %v1444 = vunpack.c.l.b16 %v1430
      %v1445 = vunpack.c.l.b16 %v1431
      %v1446 = vunpack.c.l.b16 %v1432
      %v1447 = vpack.c.b16 %v1444, %v1443
      %v1448 = vpack.c.b16 %v1446, %v1445
      %v1452 = vsel %vm652, %v1428, 0
      %1454 = vmatprep.subr.bf16.mxu0 0
      %1455 = vmatpush1.bf16.msra.mxu0 %v1447
      %1456 = vmatprep.subr.bf16.mxu0 0
      %1457 = vmatpush1.bf16.msra.mxu0 %v1448
      %1458 = vmatprep.subr.bf16.mxu0 0
      %1459 = vmatpush1.bf16.msra.mxu0 0
      %1460 = vmatprep.subr.bf16.mxu0 0
      %1461 = vmatpush1.bf16.msra.mxu0 0
      %1462 = vmatprep.subr.bf16.mxu0 0
      %1463 = vmatpush1.bf16.msra.mxu0 0
      %1464 = vmatprep.subr.bf16.mxu0 0
      %1465 = vmatpush1.bf16.msra.mxu0 0
      %1466 = vmatprep.subr.bf16.mxu0 0
      %1467 = vmatpush1.bf16.msra.mxu0 0
      %1468 = vmatprep.subr.bf16.mxu0 0
      %1469 = vmatpush1.bf16.msra.mxu0 0
      %1470 = vmatprep.subr.bf16.mxu0 0
      %1471 = vmatpush1.bf16.msra.mxu0 0
      %1472 = vmatprep.subr.bf16.mxu0 0
      %1473 = vmatpush1.bf16.msra.mxu0 0
      %1474 = vmatprep.subr.bf16.mxu0 0
      %1475 = vmatpush1.bf16.msra.mxu0 0
      %1476 = vmatprep.subr.bf16.mxu0 0
      %1477 = vmatpush1.bf16.msra.mxu0 0
      %1478 = vmatprep.subr.bf16.mxu0 0
      %1479 = vmatpush1.bf16.msra.mxu0 0
      %1480 = vmatprep.subr.bf16.mxu0 0
      %1481 = vmatpush1.bf16.msra.mxu0 0
      %1482 = vmatprep.subr.bf16.mxu0 0
      %1483 = vmatpush1.bf16.msra.mxu0 0
      %1484 = vmatprep.subr.bf16.mxu0 0
      %1485 = vmatpush1.bf16.msra.mxu0 0
      %1486 = vmatprep.mubr.bf16.mxu0 0
      %1487 = vmatmul.mubr.bf16.gmra.mrb[0].mxu0 %v1452
      %v1488 = vpop.f32.mrb[0].mxu0
      %v1489 = vadd.f32 %v1438, %v1488
      %v1490 = vpop.f32.mrb[0].mxu0
      %v1491 = vpop.f32.mrb[0].mxu0
      %v1492 = vpop.f32.mrb[0].mxu0
      %1493 = vdwg.mxu0
      %v1494 = vmul.f32 %v1489, %v1489
      %v1495 = vmul.f32 %v1489, %v1494
      %v1496 = vmul.f32 %v1495, 0.044715
      %v1497 = vadd.f32 %v1489, %v1496
      %v1498 = vmul.f32 %v1497, 0.7978846
      %v1499 = vtanh.pop %v1498
      %v1500 = vadd.f32 %v1499, 1.0
      %v1501 = vmul.f32 %v1500, 0.5
      %v1502 = vmul.f32 %v1489, %v1501
      %v1503 = vpack.c.bf16 %v1502, %v1502
      %v1504 = vld [vmem:[%s632] sm:$0xf]
      %v1505 = vld [vmem:[%s632 + $0x4] sm:$0xf]
      %v1506 = vld [vmem:[%s632 + $0x8] sm:$0xf]
      %v1507 = vld [vmem:[%s632 + $0xc] sm:$0xf]
      %v1508 = vld [vmem:[%s632 + $0x10] sm:$0xf]
      %v1509 = vld [vmem:[%s632 + $0x14] sm:$0xf]
      %v1510 = vld [vmem:[%s632 + $0x18] sm:$0xf]
      %v1511 = vld [vmem:[%s632 + $0x1c] sm:$0xf]
      %v1512 = vld [vmem:[%s635] sm:$0x1]
      %v1513 = vunpack.c.l.bf16 %v1512
      %v1514 = vlaneseq
      %v1515 = vshrl.u32 %v1514, 7
      %v1516 = vsub.s32 0, %v1515
      %v1517 = vrot.slane %v1513, %v1516
      %v1526 = vunpack.c.l.b16 %v1504
      %v1527 = vunpack.c.l.b16 %v1505
      %v1528 = vunpack.c.l.b16 %v1506
      %v1529 = vunpack.c.l.b16 %v1507
      %v1530 = vunpack.c.l.b16 %v1508
      %v1531 = vunpack.c.l.b16 %v1509
      %v1532 = vunpack.c.l.b16 %v1510
      %v1533 = vunpack.c.l.b16 %v1511
      %v1534 = vpack.c.b16 %v1527, %v1526
      %v1535 = vpack.c.b16 %v1529, %v1528
      %v1536 = vpack.c.b16 %v1531, %v1530
      %v1537 = vpack.c.b16 %v1533, %v1532
      %vm1542 = vcmask 523264
      %v1544 = vsel %vm1542, %v1503, 0
      %1546 = vmatprep.subr.bf16.mxu0 0
      %1547 = vmatpush1.bf16.msra.mxu0 %v1534
      %1548 = vmatprep.subr.bf16.mxu0 0
      %1549 = vmatpush1.bf16.msra.mxu0 %v1535
      %1550 = vmatprep.subr.bf16.mxu0 0
      %1551 = vmatpush1.bf16.msra.mxu0 %v1536
      %1552 = vmatprep.subr.bf16.mxu0 0
      %1553 = vmatpush1.bf16.msra.mxu0 %v1537
      %1554 = vmatprep.subr.bf16.mxu0 0
      %1555 = vmatpush1.bf16.msra.mxu0 0
      %1556 = vmatprep.subr.bf16.mxu0 0
      %1557 = vmatpush1.bf16.msra.mxu0 0
      %1558 = vmatprep.subr.bf16.mxu0 0
      %1559 = vmatpush1.bf16.msra.mxu0 0
      %1560 = vmatprep.subr.bf16.mxu0 0
      %1561 = vmatpush1.bf16.msra.mxu0 0
      %1562 = vmatprep.subr.bf16.mxu0 0
      %1563 = vmatpush1.bf16.msra.mxu0 0
      %1564 = vmatprep.subr.bf16.mxu0 0
      %1565 = vmatpush1.bf16.msra.mxu0 0
      %1566 = vmatprep.subr.bf16.mxu0 0
      %1567 = vmatpush1.bf16.msra.mxu0 0
      %1568 = vmatprep.subr.bf16.mxu0 0
      %1569 = vmatpush1.bf16.msra.mxu0 0
      %1570 = vmatprep.subr.bf16.mxu0 0
      %1571 = vmatpush1.bf16.msra.mxu0 0
      %1572 = vmatprep.subr.bf16.mxu0 0
      %1573 = vmatpush1.bf16.msra.mxu0 0
      %1574 = vmatprep.subr.bf16.mxu0 0
      %1575 = vmatpush1.bf16.msra.mxu0 0
      %1576 = vmatprep.subr.bf16.mxu0 0
      %1577 = vmatpush1.bf16.msra.mxu0 0
      %1578 = vmatprep.mubr.bf16.mxu0 0
      %1579 = vmatmul.mubr.bf16.gmra.mrb[0].mxu0 %v1544
      %v1580 = vpop.f32.mrb[0].mxu0
      %v1581 = vadd.f32 %v1517, %v1580
      %v1582 = vpop.f32.mrb[0].mxu0
      %v1583 = vpop.f32.mrb[0].mxu0
      %v1584 = vpop.f32.mrb[0].mxu0
      %1585 = vdwg.mxu0
      %v1586 = vadd.f32 %v1400, %v1581
      %v1587 = vpack.c.bf16 %v1586, %v1586
      %vm1588 = vcmask 257024
      %1589 = vst.msk [vmem:[%s639] sm:$0xf] %vm1588, %v1587
      %p1590 = scmp.lt.s32.totalorder %s28, 1
      %s1591 = scalar_select %p1590, %s28, 1
      %s1592 = smul.addr %s1591, 4
      %s1593 = scalar_lea.vmem %s13, %s1592
      // Predicated region
      $region77: #{vision_transformer_forward.4} parent=71 // pred_check
        %p1594 = pneg %p392
      $region78: #{vision_transformer_forward.4} parent=71 // pred_check_branch
        %1596 = sbr.rel (%p1594) target = $region80
      $region79: #{vision_transformer_forward.4} parent=71 // pred_region
        _
      $region80: #{vision_transformer_forward.4} parent=71 // pred_fallthru
        _
    $region72: #{vision_transformer_forward.4} parent=5 // pred_fallthru
      _
    %p1597 = scmp.le.s32.totalorder 2, %s19
    // Predicated region
    $region81: #{vision_transformer_forward.4} parent=5 // pred_check
      %p1598 = pneg %p1597
    $region82: #{vision_transformer_forward.4} parent=5 // pred_check_branch
      %1600 = sbr.rel (%p1598) target = $region84
    $region83: #{vision_transformer_forward.4} parent=5 // pred_region
      %s1601 = ssub.s32 %s19, 2
      // Predicated region
      $region85: #{vision_transformer_forward.4} parent=83 // pred_check
        %p1602 = pneg %p398
      $region86: #{vision_transformer_forward.4} parent=83 // pred_check_branch
        %1604 = sbr.rel (%p1602) target = $region88
      $region87: #{vision_transformer_forward.4} parent=83 // pred_region
        %p1605 = scmp.lt.s32.totalorder %s30, 1
        %s1606 = scalar_select %p1605, %s30, 1
        %s1607 = smul.addr %s1606, 4
        %s1608 = scalar_lea.vmem %s13, %s1607
      $region88: #{vision_transformer_forward.4} parent=83 // pred_fallthru
        _
    $region84: #{vision_transformer_forward.4} parent=5 // pred_fallthru
      _
  $region6: #{vision_transformer_forward.4} parent=0 // loop_footer
    %s23 = sadd.s32 1, %s19
  $region7: #{vision_transformer_forward.4} parent=0 // loop_footer_branch
    %18 = sbr.rel target = $region3
  $region8: #{vision_transformer_forward.4} parent=0 // loop_exit
    _

</llo_original>
